<compile_context>
chip_gen: v7x
topology: tpu7x:2x2x1
jax: 0.10.0
libtpu: 0.0.40
codegen_flags: <defaults>
</compile_context>

<pallas_src>
import numpy as np
import jax
import jax.numpy as jnp
from jax import lax
from jax.experimental import pallas as pl
from jax.experimental.pallas import tpu as pltpu

# ---------------- model hyper-params (small, lane-dense, forward-consistent) --
VOCAB = 128            # llama vocab (small, lane-dense)
HIDDEN = 128           # llama hidden size (one full 128-lane vreg)
FFN = 256              # SwiGLU intermediate size
N_IMG_TOKENS = 64      # MiniGPT-4 uses 64 image tokens ("np.ones((1, 64)) * -200")
SEG_LEN = 8            # synthetic text segment length
TOTAL_T = SEG_LEN + N_IMG_TOKENS + SEG_LEN   # 80 tokens total
PATCH = 4              # patch size for the toy vision encoder
PATCH_DIM = 3 * PATCH * PATCH                # 48 (raw patch features)
PATCH_DIM_PAD = 128                          # zero-padded K for a lane-dense encoder matmul
IGNORE_INDEX = -200    # nn.CrossEntropyLoss(ignore_index=-200)
NEG_INF = -1e30


# ----------------------------- fused Pallas kernel ----------------------------
def _minigpt_fused_kernel(
    seg0_ids_ref, seg1_ids_ref,        # SMEM scalar prefetch: [B, SEG_LEN] int32 each
    xp_ref,                            # [1, 64, 128] bf16 zero-padded patches
    labels_ref,                        # [1, T, 1] int32 pre-shifted labels (pad = IGNORE)
    emb_ref,                           # [VOCAB, H] f32 token-embedding table
    wenc_ref, benc_ref,                # [128, H] bf16 (rows>=48 zero), [1, H] f32
    wqkv_ref, wo_ref,                  # [H, 3H] bf16 (1/sqrt(H) folded into wq), [H, H] bf16
    wgu_ref, wd_ref,                   # [H, 2F] bf16, [F, H] bf16
    g1_ref, g2_ref, gf_ref,            # [1, H] f32 RMSNorm gains
    wlm_ref,                           # [H, VOCAB] bf16
    loss_ref,                          # out: [1, 1, 1] f32  (= -loss for this conversation)
    x_scr):                            # VMEM scratch [T, H] f32 (context-emb assembly)
  T = TOTAL_T
  b = pl.program_id(0)

  # --- encode_img: patch projection (bf16 MXU feed, K=128 lane-dense, f32 accumulate) ---
  img_emb = jnp.dot(xp_ref[0], wenc_ref[...],
                    preferred_element_type=jnp.float32) + benc_ref[...]      # [64, H]

  # --- get_context_emb: gather text embeddings in-kernel and assemble [seg0, img, seg1] ---
  for i in range(SEG_LEN):
    tok0 = seg0_ids_ref[b, i]                                  # SMEM scalar read
    x_scr[pl.ds(i, 1), :] = emb_ref[pl.ds(tok0, 1), :]
  x_scr[SEG_LEN:SEG_LEN + N_IMG_TOKENS, :] = img_emb
  for i in range(SEG_LEN):
    tok1 = seg1_ids_ref[b, i]
    x_scr[pl.ds(SEG_LEN + N_IMG_TOKENS + i, 1), :] = emb_ref[pl.ds(tok1, 1), :]
  x = x_scr[...]                                               # [T, H] f32

  def rmsnorm(h, g):
    var = jnp.mean(h * h, axis=-1, keepdims=True)
    return h * lax.rsqrt(var + 1e-6) * g

  # --- attention block: fused QKV matmul, single bf16 pack, in-kernel causal mask ---
  h1 = rmsnorm(x, g1_ref[...]).astype(jnp.bfloat16)
  qkv = jnp.dot(h1, wqkv_ref[...],
                preferred_element_type=jnp.float32).astype(jnp.bfloat16)     # [T, 3H]
  q = qkv[:, :HIDDEN]                    # wq pre-scaled by 1/sqrt(H) host-side
  k = qkv[:, HIDDEN:2 * HIDDEN]
  v = qkv[:, 2 * HIDDEN:]

  # q @ k^T without an explicit transpose: contract last dims of both operands.
  scores = lax.dot_general(q, k, (((1,), (1,)), ((), ())),
                           preferred_element_type=jnp.float32)               # [T, T]
  row = lax.broadcasted_iota(jnp.int32, (T, T), 0)
  col = lax.broadcasted_iota(jnp.int32, (T, T), 1)
  scores = jnp.where(col <= row, scores, NEG_INF)              # in-kernel causal mask
  scores = scores - jnp.max(scores, axis=-1, keepdims=True)
  p = jnp.exp(scores)
  p = (p * pl.reciprocal(jnp.sum(p, axis=-1, keepdims=True),
                         approx=True)).astype(jnp.bfloat16)

  attn = jnp.dot(p, v, preferred_element_type=jnp.float32).astype(jnp.bfloat16)
  x = x + jnp.dot(attn, wo_ref[...], preferred_element_type=jnp.float32)

  # --- SwiGLU MLP block: fused gate/up matmul (N=512) ---
  h2 = rmsnorm(x, g2_ref[...]).astype(jnp.bfloat16)
  gu = jnp.dot(h2, wgu_ref[...], preferred_element_type=jnp.float32)         # [T, 2F]
  gate = gu[:, :FFN]
  up = gu[:, FFN:]
  act = (gate * jax.nn.sigmoid(gate) * up).astype(jnp.bfloat16)
  x = x + jnp.dot(act, wd_ref[...], preferred_element_type=jnp.float32)

  # --- final norm + LM head (logits stay in VMEM, never written to HBM) ---
  hf = rmsnorm(x, gf_ref[...]).astype(jnp.bfloat16)
  logits = jnp.dot(hf, wlm_ref[...], preferred_element_type=jnp.float32)     # [T, V]

  # --- shifted cross-entropy, ignore_index=-200 ---
  # labels are pre-shifted (inputs_tokens[1:]) and padded with IGNORE in the last row,
  # so no logits[:-1] slicing is needed anywhere.
  labels = labels_ref[0]                                       # [T, 1] int32
  m = jnp.max(logits, axis=-1, keepdims=True)
  lse = jnp.log(jnp.sum(jnp.exp(logits - m), axis=-1, keepdims=True)) + m
  onehot = lax.broadcasted_iota(jnp.int32, logits.shape, 1) == labels
  logit_at_label = jnp.sum(jnp.where(onehot, logits, 0.0), axis=-1, keepdims=True)
  valid = (labels != IGNORE_INDEX).astype(jnp.float32)
  loss_sum = jnp.sum(valid * (lse - logit_at_label), axis=0, keepdims=True)  # [1,1]
  count = jnp.maximum(jnp.sum(valid, axis=0, keepdims=True), 1.0)            # [1,1]
  loss_ref[0] = -(loss_sum / count)                            # return -loss


def minigpt_fused(xp_b, labels_b, seg0_ids_b, seg1_ids_b, params):
  """Batched fused forward. Leading axis = conversations (parallel grid axis)."""
  B = xp_b.shape[0]
  per_b = lambda b, s0, s1: (b, 0, 0)          # per-conversation blocks
  const = lambda b, s0, s1: (0, 0)             # weights: constant index -> VMEM-resident
  full2 = lambda shape: pl.BlockSpec(shape, const)

  grid_spec = pltpu.PrefetchScalarGridSpec(
      num_scalar_prefetch=2,                   # seg0_ids, seg1_ids -> SMEM
      grid=(B,),
      in_specs=[
          pl.BlockSpec((1, N_IMG_TOKENS, PATCH_DIM_PAD), per_b),   # xp (padded patches)
          pl.BlockSpec((1, TOTAL_T, 1), per_b),                    # shifted labels
          full2((VOCAB, HIDDEN)),                                  # emb_table
          full2((PATCH_DIM_PAD, HIDDEN)),                          # w_enc
          full2((1, HIDDEN)),                                      # b_enc
          full2((HIDDEN, 3 * HIDDEN)),                             # wqkv (fused)
          full2((HIDDEN, HIDDEN)),                                 # wo
          full2((HIDDEN, 2 * FFN)),                                # w_gate|w_up (fused)
          full2((FFN, HIDDEN)),                                    # w_down
          full2((1, HIDDEN)),                                      # g1
          full2((1, HIDDEN)),                                      # g2
          full2((1, HIDDEN)),                                      # gf
          full2((HIDDEN, VOCAB)),                                  # w_lm
      ],
      out_specs=pl.BlockSpec((1, 1, 1), per_b),
      scratch_shapes=[pltpu.VMEM((TOTAL_T, HIDDEN), jnp.float32)],
  )
  return pl.pallas_call(
      _minigpt_fused_kernel,
      out_shape=jax.ShapeDtypeStruct((B, 1, 1), jnp.float32),
      grid_spec=grid_spec,
      compiler_params=pltpu.CompilerParams(dimension_semantics=("parallel",)),
  )(seg0_ids_b, seg1_ids_b, xp_b, labels_b,
    params["emb_table"], params["w_enc"], params["b_enc"],
    params["wqkv"], params["wo"], params["w_gu"], params["w_down"],
    params["g1"], params["g2"], params["gf"], params["w_lm"])


# ------------------------------- host-side glue --------------------------------
def patchify_pad(images):
  """NCHW [1, C, H, W] -> [num_patches, PATCH_DIM_PAD] (zero-padded 48 -> 128)."""
  B, C, H, W = images.shape
  p = PATCH
  x = images.reshape(B, C, H // p, p, W // p, p)
  x = jnp.transpose(x, (0, 2, 4, 1, 3, 5)).reshape(
      B, (H // p) * (W // p), C * p * p)[0]                      # [64, 48]
  return jnp.pad(x, ((0, 0), (0, PATCH_DIM_PAD - PATCH_DIM)))    # [64, 128]


def make_params(key):
  ks = jax.random.split(key, 10)
  s = 0.02
  n32 = lambda k, shp: (s * jax.random.normal(k, shp)).astype(jnp.float32)

  # fused QKV; 1/sqrt(H) attention scale folded into wq host-side
  wq = n32(ks[2], (HIDDEN, HIDDEN)) / np.sqrt(HIDDEN)
  wk = n32(ks[3], (HIDDEN, HIDDEN))
  wv = n32(ks[4], (HIDDEN, HIDDEN))
  wqkv = jnp.concatenate([wq, wk, wv], axis=1).astype(jnp.bfloat16)       # [H, 3H]

  # fused gate/up
  wg = n32(ks[6], (HIDDEN, FFN))
  wu = n32(ks[7], (HIDDEN, FFN))
  wgu = jnp.concatenate([wg, wu], axis=1).astype(jnp.bfloat16)            # [H, 2F]

  # vision encoder projection, rows zero-padded 48 -> 128 (extra FLOPs on zeros)
  w_enc = jnp.zeros((PATCH_DIM_PAD, HIDDEN), jnp.float32)
  w_enc = w_enc.at[:PATCH_DIM].set(n32(ks[0], (PATCH_DIM, HIDDEN))).astype(jnp.bfloat16)

  return {
      "w_enc": w_enc,
      "b_enc": jnp.zeros((1, HIDDEN), jnp.float32),
      "emb_table": n32(ks[1], (VOCAB, HIDDEN)),                 # gathered inside the kernel
      "wqkv": wqkv,
      "wo": n32(ks[5], (HIDDEN, HIDDEN)).astype(jnp.bfloat16),
      "w_gu": wgu,
      "w_down": n32(ks[8], (FFN, HIDDEN)).astype(jnp.bfloat16),
      "g1": jnp.ones((1, HIDDEN), jnp.float32),
      "g2": jnp.ones((1, HIDDEN), jnp.float32),
      "gf": jnp.ones((1, HIDDEN), jnp.float32),
      "w_lm": n32(ks[9], (HIDDEN, VOCAB)).astype(jnp.bfloat16),
  }


def make_conv_bank(key, num_convs=2, seg_len=SEG_LEN):
  """Synthetic stand-in for __init__'s conv/prompt construction, stacked as arrays.

  Per conversation k: inputs_tokens = [seg0, -200 * ones(64), seg1] and
  labels[k] = inputs_tokens[1:] padded with IGNORE_INDEX (length T)."""
  seg0s, seg1s, labels = [], [], []
  for _ in range(num_convs):
    k0, k1, key = jax.random.split(key, 3)
    seg0 = jax.random.randint(k0, (seg_len,), 0, VOCAB, dtype=jnp.int32)
    seg1 = jax.random.randint(k1, (seg_len,), 0, VOCAB, dtype=jnp.int32)
    img_tok = jnp.full((N_IMG_TOKENS,), IGNORE_INDEX, dtype=jnp.int32)
    inputs_tokens = jnp.concatenate([seg0, img_tok, seg1])                      # [T]
    shift_labels_padded = jnp.concatenate(
        [inputs_tokens[1:], jnp.full((1,), IGNORE_INDEX, jnp.int32)])           # [T]
    seg0s.append(seg0); seg1s.append(seg1); labels.append(shift_labels_padded)
  return {"seg0_ids": jnp.stack(seg0s),        # [num_convs, SEG_LEN] int32
          "seg1_ids": jnp.stack(seg1s),        # [num_convs, SEG_LEN] int32
          "labels": jnp.stack(labels)}         # [num_convs, T] int32


@jax.jit
def minigpt_forward(images, k, params, conv_bank):
  """MiniGPT.forward(inp) with inp = (images, k). Returns -loss (scalar).

  k is a traced int32: switching conversations does NOT recompile."""
  xp = patchify_pad(images).astype(jnp.bfloat16)                               # [64, 128]
  seg0 = lax.dynamic_index_in_dim(conv_bank["seg0_ids"], k, axis=0, keepdims=True)
  seg1 = lax.dynamic_index_in_dim(conv_bank["seg1_ids"], k, axis=0, keepdims=True)
  labels = lax.dynamic_index_in_dim(conv_bank["labels"], k, axis=0, keepdims=True)
  # max_length truncation: current_max_len = T + 300 < 2000 -> begin_idx = 0 (no-op).
  # lm_logits = logits[:, :target_len, :] is a no-op here (target_len == T); the [:-1]
  # shift is handled by the pre-shifted/padded labels inside the kernel.
  out = minigpt_fused(xp[None], labels[..., None], seg0, seg1, params)
  return out[0, 0, 0]


@jax.jit
def minigpt_forward_batched(images, ks, params, conv_bank):
  """Per-conversation -loss for a batch of conversation indices (parallel grid axis)."""
  xp = patchify_pad(images).astype(jnp.bfloat16)
  B = ks.shape[0]
  xp_b = jnp.tile(xp[None], (B, 1, 1))
  seg0 = jnp.take(conv_bank["seg0_ids"], ks, axis=0)
  seg1 = jnp.take(conv_bank["seg1_ids"], ks, axis=0)
  labels = jnp.take(conv_bank["labels"], ks, axis=0)
  out = minigpt_fused(xp_b, labels[..., None], seg0, seg1, params)
  return out[:, 0, 0]


if __name__ == "__main__":
  key = jax.random.PRNGKey(0)
  k_img, k_par, k_conv = jax.random.split(key, 3)

  # image in NCHW, like the PyTorch vis_processor output (small spatial size)
  images = jax.random.normal(k_img, (1, 3, 32, 32), dtype=jnp.float32)
  params = make_params(k_par)
  conv_bank = make_conv_bank(k_conv, num_convs=2)

  # inp = (images, k) -> -loss
  neg_loss0 = jax.block_until_ready(
      minigpt_forward(images, jnp.asarray(0, jnp.int32), params, conv_bank))
  assert neg_loss0.shape == () and bool(jnp.isfinite(neg_loss0))

  # different k: same compiled function (k is traced, convs are stacked arrays)
  neg_loss1 = jax.block_until_ready(
      minigpt_forward(images, jnp.asarray(1, jnp.int32), params, conv_bank))
  assert bool(jnp.isfinite(neg_loss1))

  # batched path: grid over conversations, 'parallel' axis (uses both TCs on v7x)
  neg_batch = jax.block_until_ready(
      minigpt_forward_batched(images, jnp.arange(2, dtype=jnp.int32), params, conv_bank))
  assert neg_batch.shape == (2,) and bool(jnp.all(jnp.isfinite(neg_batch)))
  assert bool(jnp.allclose(neg_batch[0], neg_loss0, rtol=1e-4, atol=1e-4))
  assert bool(jnp.allclose(neg_batch[1], neg_loss1, rtol=1e-4, atol=1e-4))

  print("KERNEL_OK")
</pallas_src>

<mosaic_0001>
module attributes {stable_mosaic.version = 11 : i64} {
  func.func @_minigpt_fused_kernel(%arg0: i32, %arg1: memref<1x8xi32, #tpu.memory_space<smem>>, %arg2: memref<1x8xi32, #tpu.memory_space<smem>>, %arg3: memref<1x64x128xbf16, #tpu.memory_space<vmem>>, %arg4: memref<1x80x1xi32, #tpu.memory_space<vmem>>, %arg5: memref<128x128xf32, #tpu.memory_space<vmem>>, %arg6: memref<128x128xbf16, #tpu.memory_space<vmem>>, %arg7: memref<1x128xf32, #tpu.memory_space<vmem>>, %arg8: memref<128x384xbf16, #tpu.memory_space<vmem>>, %arg9: memref<128x128xbf16, #tpu.memory_space<vmem>>, %arg10: memref<128x512xbf16, #tpu.memory_space<vmem>>, %arg11: memref<256x128xbf16, #tpu.memory_space<vmem>>, %arg12: memref<1x128xf32, #tpu.memory_space<vmem>>, %arg13: memref<1x128xf32, #tpu.memory_space<vmem>>, %arg14: memref<1x128xf32, #tpu.memory_space<vmem>>, %arg15: memref<128x128xbf16, #tpu.memory_space<vmem>>, %arg16: memref<1x1x1xf32, #tpu.memory_space<vmem>>, %arg17: memref<80x128xf32, #tpu.memory_space<vmem>>) attributes {dimension_semantics = [#tpu.dimension_semantics<parallel>], iteration_bounds = array<i64: 1>, scalar_prefetch = 2 : i64, scratch_operands = 1 : i64, tpu.core_type = #tpu.core_type<tc>, window_params = [{transform_indices = @transform_0, window_bounds = array<i64: 1, 64, 128>}, {transform_indices = @transform_1, window_bounds = array<i64: 1, 80, 1>}, {pipeline_mode = #tpu.pipeline_mode<synchronous>, transform_indices = @transform_2, window_bounds = array<i64: 128, 128>}, {pipeline_mode = #tpu.pipeline_mode<synchronous>, transform_indices = @transform_3, window_bounds = array<i64: 128, 128>}, {pipeline_mode = #tpu.pipeline_mode<synchronous>, transform_indices = @transform_4, window_bounds = array<i64: 1, 128>}, {pipeline_mode = #tpu.pipeline_mode<synchronous>, transform_indices = @transform_5, window_bounds = array<i64: 128, 384>}, {pipeline_mode = #tpu.pipeline_mode<synchronous>, transform_indices = @transform_6, window_bounds = array<i64: 128, 128>}, {pipeline_mode = #tpu.pipeline_mode<synchronous>, transform_indices = @transform_7, window_bounds = array<i64: 128, 512>}, {pipeline_mode = #tpu.pipeline_mode<synchronous>, transform_indices = @transform_8, window_bounds = array<i64: 256, 128>}, {pipeline_mode = #tpu.pipeline_mode<synchronous>, transform_indices = @transform_9, window_bounds = array<i64: 1, 128>}, {pipeline_mode = #tpu.pipeline_mode<synchronous>, transform_indices = @transform_10, window_bounds = array<i64: 1, 128>}, {pipeline_mode = #tpu.pipeline_mode<synchronous>, transform_indices = @transform_11, window_bounds = array<i64: 1, 128>}, {pipeline_mode = #tpu.pipeline_mode<synchronous>, transform_indices = @transform_12, window_bounds = array<i64: 128, 128>}, {transform_indices = @transform_13, window_bounds = array<i64: 1, 1, 1>}]} {
    %c0 = arith.constant 0 : index
    %c0_0 = arith.constant 0 : index
    %c0_1 = arith.constant 0 : index
    %0 = vector.load %arg3[%c0, %c0_0, %c0_1] : memref<1x64x128xbf16, #tpu.memory_space<vmem>>, vector<1x64x128xbf16>
    %1 = vector.shape_cast %0 : vector<1x64x128xbf16> to vector<64x128xbf16>
    %c0_2 = arith.constant 0 : index
    %c0_3 = arith.constant 0 : index
    %2 = vector.load %arg6[%c0_2, %c0_3] : memref<128x128xbf16, #tpu.memory_space<vmem>>, vector<128x128xbf16>
    %cst = arith.constant dense<0.000000e+00> : vector<64x128xf32>
    %3 = tpu.matmul %1, %2, %cst {dimension_numbers = #tpu.dot_dimension_numbers<[1], [0], [0], [1], [0, 0, 1, 1], [], []>} : vector<64x128xbf16>, vector<128x128xbf16>, vector<64x128xf32> -> vector<64x128xf32>
    %c0_4 = arith.constant 0 : index
    %c0_5 = arith.constant 0 : index
    %4 = vector.load %arg7[%c0_4, %c0_5] : memref<1x128xf32, #tpu.memory_space<vmem>>, vector<1x128xf32>
    %5 = vector.broadcast %4 : vector<1x128xf32> to vector<64x128xf32>
    %6 = arith.addf %3, %5 : vector<64x128xf32>
    %7 = arith.index_cast %arg0 : i32 to index
    %c0_6 = arith.constant 0 : index
    %8 = memref.load %arg1[%7, %c0_6] : memref<1x8xi32, #tpu.memory_space<smem>>
    %9 = arith.index_cast %8 : i32 to index
    %c0_7 = arith.constant 0 : index
    %10 = vector.load %arg5[%9, %c0_7] : memref<128x128xf32, #tpu.memory_space<vmem>>, vector<1x128xf32>
    %c0_8 = arith.constant 0 : index
    %c0_9 = arith.constant 0 : index
    %11 = vector.load %arg17[%c0_8, %c0_9] : memref<80x128xf32, #tpu.memory_space<vmem>>, vector<1x128xf32>
    tpu.vector_store %arg17[%c0_8, %c0_9], %10 {strides = array<i32>} : memref<80x128xf32, #tpu.memory_space<vmem>>, vector<1x128xf32>,
    %12 = arith.index_cast %arg0 : i32 to index
    %c1 = arith.constant 1 : index
    %13 = memref.load %arg1[%12, %c1] : memref<1x8xi32, #tpu.memory_space<smem>>
    %14 = arith.index_cast %13 : i32 to index
    %c0_10 = arith.constant 0 : index
    %15 = vector.load %arg5[%14, %c0_10] : memref<128x128xf32, #tpu.memory_space<vmem>>, vector<1x128xf32>
    %c1_11 = arith.constant 1 : index
    %c0_12 = arith.constant 0 : index
    %16 = vector.load %arg17[%c1_11, %c0_12] : memref<80x128xf32, #tpu.memory_space<vmem>>, vector<1x128xf32>
    tpu.vector_store %arg17[%c1_11, %c0_12], %15 {strides = array<i32>} : memref<80x128xf32, #tpu.memory_space<vmem>>, vector<1x128xf32>,
    %17 = arith.index_cast %arg0 : i32 to index
    %c2 = arith.constant 2 : index
    %18 = memref.load %arg1[%17, %c2] : memref<1x8xi32, #tpu.memory_space<smem>>
    %19 = arith.index_cast %18 : i32 to index
    %c0_13 = arith.constant 0 : index
    %20 = vector.load %arg5[%19, %c0_13] : memref<128x128xf32, #tpu.memory_space<vmem>>, vector<1x128xf32>
    %c2_14 = arith.constant 2 : index
    %c0_15 = arith.constant 0 : index
    %21 = vector.load %arg17[%c2_14, %c0_15] : memref<80x128xf32, #tpu.memory_space<vmem>>, vector<1x128xf32>
    tpu.vector_store %arg17[%c2_14, %c0_15], %20 {strides = array<i32>} : memref<80x128xf32, #tpu.memory_space<vmem>>, vector<1x128xf32>,
    %22 = arith.index_cast %arg0 : i32 to index
    %c3 = arith.constant 3 : index
    %23 = memref.load %arg1[%22, %c3] : memref<1x8xi32, #tpu.memory_space<smem>>
    %24 = arith.index_cast %23 : i32 to index
    %c0_16 = arith.constant 0 : index
    %25 = vector.load %arg5[%24, %c0_16] : memref<128x128xf32, #tpu.memory_space<vmem>>, vector<1x128xf32>
    %c3_17 = arith.constant 3 : index
    %c0_18 = arith.constant 0 : index
    %26 = vector.load %arg17[%c3_17, %c0_18] : memref<80x128xf32, #tpu.memory_space<vmem>>, vector<1x128xf32>
    tpu.vector_store %arg17[%c3_17, %c0_18], %25 {strides = array<i32>} : memref<80x128xf32, #tpu.memory_space<vmem>>, vector<1x128xf32>,
    %27 = arith.index_cast %arg0 : i32 to index
    %c4 = arith.constant 4 : index
    %28 = memref.load %arg1[%27, %c4] : memref<1x8xi32, #tpu.memory_space<smem>>
    %29 = arith.index_cast %28 : i32 to index
    %c0_19 = arith.constant 0 : index
    %30 = vector.load %arg5[%29, %c0_19] : memref<128x128xf32, #tpu.memory_space<vmem>>, vector<1x128xf32>
    %c4_20 = arith.constant 4 : index
    %c0_21 = arith.constant 0 : index
    %31 = vector.load %arg17[%c4_20, %c0_21] : memref<80x128xf32, #tpu.memory_space<vmem>>, vector<1x128xf32>
    tpu.vector_store %arg17[%c4_20, %c0_21], %30 {strides = array<i32>} : memref<80x128xf32, #tpu.memory_space<vmem>>, vector<1x128xf32>,
    %32 = arith.index_cast %arg0 : i32 to index
    %c5 = arith.constant 5 : index
    %33 = memref.load %arg1[%32, %c5] : memref<1x8xi32, #tpu.memory_space<smem>>
    %34 = arith.index_cast %33 : i32 to index
    %c0_22 = arith.constant 0 : index
    %35 = vector.load %arg5[%34, %c0_22] : memref<128x128xf32, #tpu.memory_space<vmem>>, vector<1x128xf32>
    %c5_23 = arith.constant 5 : index
    %c0_24 = arith.constant 0 : index
    %36 = vector.load %arg17[%c5_23, %c0_24] : memref<80x128xf32, #tpu.memory_space<vmem>>, vector<1x128xf32>
    tpu.vector_store %arg17[%c5_23, %c0_24], %35 {strides = array<i32>} : memref<80x128xf32, #tpu.memory_space<vmem>>, vector<1x128xf32>,
    %37 = arith.index_cast %arg0 : i32 to index
    %c6 = arith.constant 6 : index
    %38 = memref.load %arg1[%37, %c6] : memref<1x8xi32, #tpu.memory_space<smem>>
    %39 = arith.index_cast %38 : i32 to index
    %c0_25 = arith.constant 0 : index
    %40 = vector.load %arg5[%39, %c0_25] : memref<128x128xf32, #tpu.memory_space<vmem>>, vector<1x128xf32>
    %c6_26 = arith.constant 6 : index
    %c0_27 = arith.constant 0 : index
    %41 = vector.load %arg17[%c6_26, %c0_27] : memref<80x128xf32, #tpu.memory_space<vmem>>, vector<1x128xf32>
    tpu.vector_store %arg17[%c6_26, %c0_27], %40 {strides = array<i32>} : memref<80x128xf32, #tpu.memory_space<vmem>>, vector<1x128xf32>,
    %42 = arith.index_cast %arg0 : i32 to index
    %c7 = arith.constant 7 : index
    %43 = memref.load %arg1[%42, %c7] : memref<1x8xi32, #tpu.memory_space<smem>>
    %44 = arith.index_cast %43 : i32 to index
    %c0_28 = arith.constant 0 : index
    %45 = vector.load %arg5[%44, %c0_28] : memref<128x128xf32, #tpu.memory_space<vmem>>, vector<1x128xf32>
    %c7_29 = arith.constant 7 : index
    %c0_30 = arith.constant 0 : index
    %46 = vector.load %arg17[%c7_29, %c0_30] : memref<80x128xf32, #tpu.memory_space<vmem>>, vector<1x128xf32>
    tpu.vector_store %arg17[%c7_29, %c0_30], %45 {strides = array<i32>} : memref<80x128xf32, #tpu.memory_space<vmem>>, vector<1x128xf32>,
    %c8 = arith.constant 8 : index
    %c0_31 = arith.constant 0 : index
    %47 = vector.load %arg17[%c8, %c0_31] : memref<80x128xf32, #tpu.memory_space<vmem>>, vector<64x128xf32>
    tpu.vector_store %arg17[%c8, %c0_31], %6 {strides = array<i32>} : memref<80x128xf32, #tpu.memory_space<vmem>>, vector<64x128xf32>,
    %48 = arith.index_cast %arg0 : i32 to index
    %c0_32 = arith.constant 0 : index
    %49 = memref.load %arg2[%48, %c0_32] : memref<1x8xi32, #tpu.memory_space<smem>>
    %50 = arith.index_cast %49 : i32 to index
    %c0_33 = arith.constant 0 : index
    %51 = vector.load %arg5[%50, %c0_33] : memref<128x128xf32, #tpu.memory_space<vmem>>, vector<1x128xf32>
    %c72 = arith.constant 72 : index
    %c0_34 = arith.constant 0 : index
    %52 = vector.load %arg17[%c72, %c0_34] : memref<80x128xf32, #tpu.memory_space<vmem>>, vector<1x128xf32>
    tpu.vector_store %arg17[%c72, %c0_34], %51 {strides = array<i32>} : memref<80x128xf32, #tpu.memory_space<vmem>>, vector<1x128xf32>,
    %53 = arith.index_cast %arg0 : i32 to index
    %c1_35 = arith.constant 1 : index
    %54 = memref.load %arg2[%53, %c1_35] : memref<1x8xi32, #tpu.memory_space<smem>>
    %55 = arith.index_cast %54 : i32 to index
    %c0_36 = arith.constant 0 : index
    %56 = vector.load %arg5[%55, %c0_36] : memref<128x128xf32, #tpu.memory_space<vmem>>, vector<1x128xf32>
    %c73 = arith.constant 73 : index
    %c0_37 = arith.constant 0 : index
    %57 = vector.load %arg17[%c73, %c0_37] : memref<80x128xf32, #tpu.memory_space<vmem>>, vector<1x128xf32>
    tpu.vector_store %arg17[%c73, %c0_37], %56 {strides = array<i32>} : memref<80x128xf32, #tpu.memory_space<vmem>>, vector<1x128xf32>,
    %58 = arith.index_cast %arg0 : i32 to index
    %c2_38 = arith.constant 2 : index
    %59 = memref.load %arg2[%58, %c2_38] : memref<1x8xi32, #tpu.memory_space<smem>>
    %60 = arith.index_cast %59 : i32 to index
    %c0_39 = arith.constant 0 : index
    %61 = vector.load %arg5[%60, %c0_39] : memref<128x128xf32, #tpu.memory_space<vmem>>, vector<1x128xf32>
    %c74 = arith.constant 74 : index
    %c0_40 = arith.constant 0 : index
    %62 = vector.load %arg17[%c74, %c0_40] : memref<80x128xf32, #tpu.memory_space<vmem>>, vector<1x128xf32>
    tpu.vector_store %arg17[%c74, %c0_40], %61 {strides = array<i32>} : memref<80x128xf32, #tpu.memory_space<vmem>>, vector<1x128xf32>,
    %63 = arith.index_cast %arg0 : i32 to index
    %c3_41 = arith.constant 3 : index
    %64 = memref.load %arg2[%63, %c3_41] : memref<1x8xi32, #tpu.memory_space<smem>>
    %65 = arith.index_cast %64 : i32 to index
    %c0_42 = arith.constant 0 : index
    %66 = vector.load %arg5[%65, %c0_42] : memref<128x128xf32, #tpu.memory_space<vmem>>, vector<1x128xf32>
    %c75 = arith.constant 75 : index
    %c0_43 = arith.constant 0 : index
    %67 = vector.load %arg17[%c75, %c0_43] : memref<80x128xf32, #tpu.memory_space<vmem>>, vector<1x128xf32>
    tpu.vector_store %arg17[%c75, %c0_43], %66 {strides = array<i32>} : memref<80x128xf32, #tpu.memory_space<vmem>>, vector<1x128xf32>,
    %68 = arith.index_cast %arg0 : i32 to index
    %c4_44 = arith.constant 4 : index
    %69 = memref.load %arg2[%68, %c4_44] : memref<1x8xi32, #tpu.memory_space<smem>>
    %70 = arith.index_cast %69 : i32 to index
    %c0_45 = arith.constant 0 : index
    %71 = vector.load %arg5[%70, %c0_45] : memref<128x128xf32, #tpu.memory_space<vmem>>, vector<1x128xf32>
    %c76 = arith.constant 76 : index
    %c0_46 = arith.constant 0 : index
    %72 = vector.load %arg17[%c76, %c0_46] : memref<80x128xf32, #tpu.memory_space<vmem>>, vector<1x128xf32>
    tpu.vector_store %arg17[%c76, %c0_46], %71 {strides = array<i32>} : memref<80x128xf32, #tpu.memory_space<vmem>>, vector<1x128xf32>,
    %73 = arith.index_cast %arg0 : i32 to index
    %c5_47 = arith.constant 5 : index
    %74 = memref.load %arg2[%73, %c5_47] : memref<1x8xi32, #tpu.memory_space<smem>>
    %75 = arith.index_cast %74 : i32 to index
    %c0_48 = arith.constant 0 : index
    %76 = vector.load %arg5[%75, %c0_48] : memref<128x128xf32, #tpu.memory_space<vmem>>, vector<1x128xf32>
    %c77 = arith.constant 77 : index
    %c0_49 = arith.constant 0 : index
    %77 = vector.load %arg17[%c77, %c0_49] : memref<80x128xf32, #tpu.memory_space<vmem>>, vector<1x128xf32>
    tpu.vector_store %arg17[%c77, %c0_49], %76 {strides = array<i32>} : memref<80x128xf32, #tpu.memory_space<vmem>>, vector<1x128xf32>,
    %78 = arith.index_cast %arg0 : i32 to index
    %c6_50 = arith.constant 6 : index
    %79 = memref.load %arg2[%78, %c6_50] : memref<1x8xi32, #tpu.memory_space<smem>>
    %80 = arith.index_cast %79 : i32 to index
    %c0_51 = arith.constant 0 : index
    %81 = vector.load %arg5[%80, %c0_51] : memref<128x128xf32, #tpu.memory_space<vmem>>, vector<1x128xf32>
    %c78 = arith.constant 78 : index
    %c0_52 = arith.constant 0 : index
    %82 = vector.load %arg17[%c78, %c0_52] : memref<80x128xf32, #tpu.memory_space<vmem>>, vector<1x128xf32>
    tpu.vector_store %arg17[%c78, %c0_52], %81 {strides = array<i32>} : memref<80x128xf32, #tpu.memory_space<vmem>>, vector<1x128xf32>,
    %83 = arith.index_cast %arg0 : i32 to index
    %c7_53 = arith.constant 7 : index
    %84 = memref.load %arg2[%83, %c7_53] : memref<1x8xi32, #tpu.memory_space<smem>>
    %85 = arith.index_cast %84 : i32 to index
    %c0_54 = arith.constant 0 : index
    %86 = vector.load %arg5[%85, %c0_54] : memref<128x128xf32, #tpu.memory_space<vmem>>, vector<1x128xf32>
    %c79 = arith.constant 79 : index
    %c0_55 = arith.constant 0 : index
    %87 = vector.load %arg17[%c79, %c0_55] : memref<80x128xf32, #tpu.memory_space<vmem>>, vector<1x128xf32>
    tpu.vector_store %arg17[%c79, %c0_55], %86 {strides = array<i32>} : memref<80x128xf32, #tpu.memory_space<vmem>>, vector<1x128xf32>,
    %c0_56 = arith.constant 0 : index
    %c0_57 = arith.constant 0 : index
    %88 = vector.load %arg17[%c0_56, %c0_57] : memref<80x128xf32, #tpu.memory_space<vmem>>, vector<80x128xf32>
    %c0_58 = arith.constant 0 : index
    %c0_59 = arith.constant 0 : index
    %89 = vector.load %arg12[%c0_58, %c0_59] : memref<1x128xf32, #tpu.memory_space<vmem>>, vector<1x128xf32>
    %90 = arith.mulf %88, %88 : vector<80x128xf32>
    %cst_60 = arith.constant dense<0.000000e+00> : vector<80xf32>
    %91 = vector.multi_reduction <add>, %90, %cst_60 [1] : vector<80x128xf32> to vector<80xf32>
    %92 = vector.shape_cast %91 : vector<80xf32> to vector<80x1xf32>
    %cst_61 = arith.constant 1.280000e+02 : f32
    %93 = vector.broadcast %cst_61 : f32 to vector<80x1xf32>
    %94 = arith.divf %92, %93 : vector<80x1xf32>
    %cst_62 = arith.constant 9.99999997E-7 : f32
    %95 = vector.broadcast %cst_62 : f32 to vector<80x1xf32>
    %96 = arith.addf %94, %95 : vector<80x1xf32>
    %97 = math.rsqrt %96 : vector<80x1xf32>
    %98 = vector.broadcast %97 : vector<80x1xf32> to vector<80x128xf32>
    %99 = arith.mulf %88, %98 : vector<80x128xf32>
    %100 = vector.broadcast %89 : vector<1x128xf32> to vector<80x128xf32>
    %101 = arith.mulf %99, %100 : vector<80x128xf32>
    %102 = arith.truncf %101 : vector<80x128xf32> to vector<80x128xbf16>
    %c0_63 = arith.constant 0 : index
    %c0_64 = arith.constant 0 : index
    %103 = vector.load %arg8[%c0_63, %c0_64] : memref<128x384xbf16, #tpu.memory_space<vmem>>, vector<128x384xbf16>
    %cst_65 = arith.constant dense<0.000000e+00> : vector<80x384xf32>
    %104 = tpu.matmul %102, %103, %cst_65 {dimension_numbers = #tpu.dot_dimension_numbers<[1], [0], [0], [1], [0, 0, 1, 1], [], []>} : vector<80x128xbf16>, vector<128x384xbf16>, vector<80x384xf32> -> vector<80x384xf32>
    %105 = arith.truncf %104 : vector<80x384xf32> to vector<80x384xbf16>
    %106 = vector.extract_strided_slice %105 {offsets = [0, 0], sizes = [80, 128], strides = [1, 1]} : vector<80x384xbf16> to vector<80x128xbf16>
    %107 = vector.extract_strided_slice %105 {offsets = [0, 128], sizes = [80, 128], strides = [1, 1]} : vector<80x384xbf16> to vector<80x128xbf16>
    %108 = vector.extract_strided_slice %105 {offsets = [0, 256], sizes = [80, 128], strides = [1, 1]} : vector<80x384xbf16> to vector<80x128xbf16>
    %cst_66 = arith.constant dense<0.000000e+00> : vector<80x80xf32>
    %109 = tpu.matmul %106, %107, %cst_66 {dimension_numbers = #tpu.dot_dimension_numbers<[1], [1], [0], [0], [0, 0, 1, 0], [], []>} : vector<80x128xbf16>, vector<80x128xbf16>, vector<80x80xf32> -> vector<80x80xf32>
    %110 = tpu.iota {dimensions = array<i32: 0>} : vector<80x80xi32>
    %111 = tpu.iota {dimensions = array<i32: 1>} : vector<80x80xi32>
    %112 = arith.cmpi sle, %111, %110 : vector<80x80xi32>
    %cst_67 = arith.constant -1.000000e+30 : f32
    %113 = vector.broadcast %cst_67 : f32 to vector<80x80xf32>
    %114 = arith.select %112, %109, %113 : vector<80x80xi1>, vector<80x80xf32>
    %cst_68 = arith.constant dense<0xFF800000> : vector<80xf32>
    %115 = vector.multi_reduction <maximumf>, %114, %cst_68 [1] : vector<80x80xf32> to vector<80xf32>
    %116 = vector.shape_cast %115 : vector<80xf32> to vector<80x1xf32>
    %117 = vector.broadcast %116 : vector<80x1xf32> to vector<80x80xf32>
    %118 = arith.subf %114, %117 : vector<80x80xf32>
    %119 = math.exp %118 : vector<80x80xf32>
    %cst_69 = arith.constant dense<0.000000e+00> : vector<80xf32>
    %120 = vector.multi_reduction <add>, %119, %cst_69 [1] : vector<80x80xf32> to vector<80xf32>
    %121 = vector.shape_cast %120 : vector<80xf32> to vector<80x1xf32>
    %122 = tpu.reciprocal %121 {approx = true} : vector<80x1xf32> -> vector<80x1xf32>
    %123 = vector.broadcast %122 : vector<80x1xf32> to vector<80x80xf32>
    %124 = arith.mulf %119, %123 : vector<80x80xf32>
    %125 = arith.truncf %124 : vector<80x80xf32> to vector<80x80xbf16>
    %cst_70 = arith.constant dense<0.000000e+00> : vector<80x128xf32>
    %126 = tpu.matmul %125, %108, %cst_70 {dimension_numbers = #tpu.dot_dimension_numbers<[1], [0], [0], [1], [0, 0, 1, 1], [], []>} : vector<80x80xbf16>, vector<80x128xbf16>, vector<80x128xf32> -> vector<80x128xf32>
    %127 = arith.truncf %126 : vector<80x128xf32> to vector<80x128xbf16>
    %c0_71 = arith.constant 0 : index
    %c0_72 = arith.constant 0 : index
    %128 = vector.load %arg9[%c0_71, %c0_72] : memref<128x128xbf16, #tpu.memory_space<vmem>>, vector<128x128xbf16>
    %cst_73 = arith.constant dense<0.000000e+00> : vector<80x128xf32>
    %129 = tpu.matmul %127, %128, %cst_73 {dimension_numbers = #tpu.dot_dimension_numbers<[1], [0], [0], [1], [0, 0, 1, 1], [], []>} : vector<80x128xbf16>, vector<128x128xbf16>, vector<80x128xf32> -> vector<80x128xf32>
    %130 = arith.addf %88, %129 : vector<80x128xf32>
    %c0_74 = arith.constant 0 : index
    %c0_75 = arith.constant 0 : index
    %131 = vector.load %arg13[%c0_74, %c0_75] : memref<1x128xf32, #tpu.memory_space<vmem>>, vector<1x128xf32>
    %132 = arith.mulf %130, %130 : vector<80x128xf32>
    %cst_76 = arith.constant dense<0.000000e+00> : vector<80xf32>
    %133 = vector.multi_reduction <add>, %132, %cst_76 [1] : vector<80x128xf32> to vector<80xf32>
    %134 = vector.shape_cast %133 : vector<80xf32> to vector<80x1xf32>
    %cst_77 = arith.constant 1.280000e+02 : f32
    %135 = vector.broadcast %cst_77 : f32 to vector<80x1xf32>
    %136 = arith.divf %134, %135 : vector<80x1xf32>
    %cst_78 = arith.constant 9.99999997E-7 : f32
    %137 = vector.broadcast %cst_78 : f32 to vector<80x1xf32>
    %138 = arith.addf %136, %137 : vector<80x1xf32>
    %139 = math.rsqrt %138 : vector<80x1xf32>
    %140 = vector.broadcast %139 : vector<80x1xf32> to vector<80x128xf32>
    %141 = arith.mulf %130, %140 : vector<80x128xf32>
    %142 = vector.broadcast %131 : vector<1x128xf32> to vector<80x128xf32>
    %143 = arith.mulf %141, %142 : vector<80x128xf32>
    %144 = arith.truncf %143 : vector<80x128xf32> to vector<80x128xbf16>
    %c0_79 = arith.constant 0 : index
    %c0_80 = arith.constant 0 : index
    %145 = vector.load %arg10[%c0_79, %c0_80] : memref<128x512xbf16, #tpu.memory_space<vmem>>, vector<128x512xbf16>
    %cst_81 = arith.constant dense<0.000000e+00> : vector<80x512xf32>
    %146 = tpu.matmul %144, %145, %cst_81 {dimension_numbers = #tpu.dot_dimension_numbers<[1], [0], [0], [1], [0, 0, 1, 1], [], []>} : vector<80x128xbf16>, vector<128x512xbf16>, vector<80x512xf32> -> vector<80x512xf32>
    %147 = vector.extract_strided_slice %146 {offsets = [0, 0], sizes = [80, 256], strides = [1, 1]} : vector<80x512xf32> to vector<80x256xf32>
    %148 = vector.extract_strided_slice %146 {offsets = [0, 256], sizes = [80, 256], strides = [1, 1]} : vector<80x512xf32> to vector<80x256xf32>
    %149 = arith.negf %147 : vector<80x256xf32>
    %150 = math.exp %149 : vector<80x256xf32>
    %cst_82 = arith.constant 1.000000e+00 : f32
    %151 = vector.broadcast %cst_82 : f32 to vector<80x256xf32>
    %152 = arith.addf %151, %150 : vector<80x256xf32>
    %153 = arith.divf %151, %152 : vector<80x256xf32>
    %154 = arith.mulf %147, %153 : vector<80x256xf32>
    %155 = arith.mulf %154, %148 : vector<80x256xf32>
    %156 = arith.truncf %155 : vector<80x256xf32> to vector<80x256xbf16>
    %c0_83 = arith.constant 0 : index
    %c0_84 = arith.constant 0 : index
    %157 = vector.load %arg11[%c0_83, %c0_84] : memref<256x128xbf16, #tpu.memory_space<vmem>>, vector<256x128xbf16>
    %cst_85 = arith.constant dense<0.000000e+00> : vector<80x128xf32>
    %158 = tpu.matmul %156, %157, %cst_85 {dimension_numbers = #tpu.dot_dimension_numbers<[1], [0], [0], [1], [0, 0, 1, 1], [], []>} : vector<80x256xbf16>, vector<256x128xbf16>, vector<80x128xf32> -> vector<80x128xf32>
    %159 = arith.addf %130, %158 : vector<80x128xf32>
    %c0_86 = arith.constant 0 : index
    %c0_87 = arith.constant 0 : index
    %160 = vector.load %arg14[%c0_86, %c0_87] : memref<1x128xf32, #tpu.memory_space<vmem>>, vector<1x128xf32>
    %161 = arith.mulf %159, %159 : vector<80x128xf32>
    %cst_88 = arith.constant dense<0.000000e+00> : vector<80xf32>
    %162 = vector.multi_reduction <add>, %161, %cst_88 [1] : vector<80x128xf32> to vector<80xf32>
    %163 = vector.shape_cast %162 : vector<80xf32> to vector<80x1xf32>
    %cst_89 = arith.constant 1.280000e+02 : f32
    %164 = vector.broadcast %cst_89 : f32 to vector<80x1xf32>
    %165 = arith.divf %163, %164 : vector<80x1xf32>
    %cst_90 = arith.constant 9.99999997E-7 : f32
    %166 = vector.broadcast %cst_90 : f32 to vector<80x1xf32>
    %167 = arith.addf %165, %166 : vector<80x1xf32>
    %168 = math.rsqrt %167 : vector<80x1xf32>
    %169 = vector.broadcast %168 : vector<80x1xf32> to vector<80x128xf32>
    %170 = arith.mulf %159, %169 : vector<80x128xf32>
    %171 = vector.broadcast %160 : vector<1x128xf32> to vector<80x128xf32>
    %172 = arith.mulf %170, %171 : vector<80x128xf32>
    %173 = arith.truncf %172 : vector<80x128xf32> to vector<80x128xbf16>
    %c0_91 = arith.constant 0 : index
    %c0_92 = arith.constant 0 : index
    %174 = vector.load %arg15[%c0_91, %c0_92] : memref<128x128xbf16, #tpu.memory_space<vmem>>, vector<128x128xbf16>
    %cst_93 = arith.constant dense<0.000000e+00> : vector<80x128xf32>
    %175 = tpu.matmul %173, %174, %cst_93 {dimension_numbers = #tpu.dot_dimension_numbers<[1], [0], [0], [1], [0, 0, 1, 1], [], []>} : vector<80x128xbf16>, vector<128x128xbf16>, vector<80x128xf32> -> vector<80x128xf32>
    %c0_94 = arith.constant 0 : index
    %c0_95 = arith.constant 0 : index
    %c0_96 = arith.constant 0 : index
    %176 = vector.load %arg4[%c0_94, %c0_95, %c0_96] : memref<1x80x1xi32, #tpu.memory_space<vmem>>, vector<1x80x1xi32>
    %177 = vector.shape_cast %176 : vector<1x80x1xi32> to vector<80x1xi32>
    %cst_97 = arith.constant dense<0xFF800000> : vector<80xf32>
    %178 = vector.multi_reduction <maximumf>, %175, %cst_97 [1] : vector<80x128xf32> to vector<80xf32>
    %179 = vector.shape_cast %178 : vector<80xf32> to vector<80x1xf32>
    %180 = vector.broadcast %179 : vector<80x1xf32> to vector<80x128xf32>
    %181 = arith.subf %175, %180 : vector<80x128xf32>
    %182 = math.exp %181 : vector<80x128xf32>
    %cst_98 = arith.constant dense<0.000000e+00> : vector<80xf32>
    %183 = vector.multi_reduction <add>, %182, %cst_98 [1] : vector<80x128xf32> to vector<80xf32>
    %184 = vector.shape_cast %183 : vector<80xf32> to vector<80x1xf32>
    %185 = math.log %184 : vector<80x1xf32>
    %186 = arith.addf %185, %179 : vector<80x1xf32>
    %187 = tpu.iota {dimensions = array<i32: 1>} : vector<80x128xi32>
    %188 = vector.broadcast %177 : vector<80x1xi32> to vector<80x128xi32>
    %189 = arith.cmpi eq, %187, %188 : vector<80x128xi32>
    %cst_99 = arith.constant 0.000000e+00 : f32
    %190 = vector.broadcast %cst_99 : f32 to vector<80x128xf32>
    %191 = arith.select %189, %175, %190 : vector<80x128xi1>, vector<80x128xf32>
    %cst_100 = arith.constant dense<0.000000e+00> : vector<80xf32>
    %192 = vector.multi_reduction <add>, %191, %cst_100 [1] : vector<80x128xf32> to vector<80xf32>
    %193 = vector.shape_cast %192 : vector<80xf32> to vector<80x1xf32>
    %c-200_i32 = arith.constant -200 : i32
    %194 = vector.broadcast %c-200_i32 : i32 to vector<80x1xi32>
    %195 = arith.cmpi ne, %177, %194 : vector<80x1xi32>
    %196 = arith.extui %195 : vector<80x1xi1> to vector<80x1xi32>
    %197 = arith.sitofp %196 : vector<80x1xi32> to vector<80x1xf32>
    %198 = arith.subf %186, %193 : vector<80x1xf32>
    %199 = arith.mulf %197, %198 : vector<80x1xf32>
    %cst_101 = arith.constant dense<0.000000e+00> : vector<1xf32>
    %200 = vector.multi_reduction <add>, %199, %cst_101 [0] : vector<80x1xf32> to vector<1xf32>
    %201 = vector.shape_cast %200 : vector<1xf32> to vector<1x1xf32>
    %cst_102 = arith.constant dense<0.000000e+00> : vector<1xf32>
    %202 = vector.multi_reduction <add>, %197, %cst_102 [0] : vector<80x1xf32> to vector<1xf32>
    %203 = vector.shape_cast %202 : vector<1xf32> to vector<1x1xf32>
    %cst_103 = arith.constant 1.000000e+00 : f32
    %204 = vector.broadcast %cst_103 : f32 to vector<1x1xf32>
    %205 = arith.maximumf %203, %204 : vector<1x1xf32>
    %206 = arith.divf %201, %205 : vector<1x1xf32>
    %cst_104 = arith.constant 0.000000e+00 : f32
    %207 = vector.broadcast %cst_104 : f32 to vector<1x1xf32>
    %208 = arith.subf %207, %206 : vector<1x1xf32>
    %c0_105 = arith.constant 0 : index
    %c0_106 = arith.constant 0 : index
    %c0_107 = arith.constant 0 : index
    %209 = vector.load %arg16[%c0_105, %c0_106, %c0_107] : memref<1x1x1xf32, #tpu.memory_space<vmem>>, vector<1x1x1xf32>
    %210 = vector.shape_cast %209 : vector<1x1x1xf32> to vector<1x1xf32>
    %211 = vector.shape_cast %208 : vector<1x1xf32> to vector<1x1x1xf32>
    tpu.vector_store %arg16[%c0_105, %c0_106, %c0_107], %211 {strides = array<i32>} : memref<1x1x1xf32, #tpu.memory_space<vmem>>, vector<1x1x1xf32>,
    return
  }
  func.func @transform_0(%arg0: i32, %arg1: memref<1x8xi32, #tpu.memory_space<smem>>, %arg2: memref<1x8xi32, #tpu.memory_space<smem>>) -> (i32, i32, i32) {
    %c0_i32 = arith.constant 0 : i32
    %c0_i32_0 = arith.constant 0 : i32
    %c0_i32_1 = arith.constant 0 : i32
    return %arg0, %c0_i32, %c0_i32_0 : i32, i32, i32
  }
  func.func @transform_1(%arg0: i32, %arg1: memref<1x8xi32, #tpu.memory_space<smem>>, %arg2: memref<1x8xi32, #tpu.memory_space<smem>>) -> (i32, i32, i32) {
    %c0_i32 = arith.constant 0 : i32
    %c0_i32_0 = arith.constant 0 : i32
    %c0_i32_1 = arith.constant 0 : i32
    return %arg0, %c0_i32, %c0_i32_0 : i32, i32, i32
  }
  func.func @transform_2(%arg0: i32, %arg1: memref<1x8xi32, #tpu.memory_space<smem>>, %arg2: memref<1x8xi32, #tpu.memory_space<smem>>) -> (i32, i32) {
    %c0_i32 = arith.constant 0 : i32
    %c0_i32_0 = arith.constant 0 : i32
    %c0_i32_1 = arith.constant 0 : i32
    return %c0_i32, %c0_i32_0 : i32, i32
  }
  func.func @transform_3(%arg0: i32, %arg1: memref<1x8xi32, #tpu.memory_space<smem>>, %arg2: memref<1x8xi32, #tpu.memory_space<smem>>) -> (i32, i32) {
    %c0_i32 = arith.constant 0 : i32
    %c0_i32_0 = arith.constant 0 : i32
    %c0_i32_1 = arith.constant 0 : i32
    return %c0_i32, %c0_i32_0 : i32, i32
  }
  func.func @transform_4(%arg0: i32, %arg1: memref<1x8xi32, #tpu.memory_space<smem>>, %arg2: memref<1x8xi32, #tpu.memory_space<smem>>) -> (i32, i32) {
    %c0_i32 = arith.constant 0 : i32
    %c0_i32_0 = arith.constant 0 : i32
    %c0_i32_1 = arith.constant 0 : i32
    return %c0_i32, %c0_i32_0 : i32, i32
  }
  func.func @transform_5(%arg0: i32, %arg1: memref<1x8xi32, #tpu.memory_space<smem>>, %arg2: memref<1x8xi32, #tpu.memory_space<smem>>) -> (i32, i32) {
    %c0_i32 = arith.constant 0 : i32
    %c0_i32_0 = arith.constant 0 : i32
    %c0_i32_1 = arith.constant 0 : i32
    return %c0_i32, %c0_i32_0 : i32, i32
  }
  func.func @transform_6(%arg0: i32, %arg1: memref<1x8xi32, #tpu.memory_space<smem>>, %arg2: memref<1x8xi32, #tpu.memory_space<smem>>) -> (i32, i32) {
    %c0_i32 = arith.constant 0 : i32
    %c0_i32_0 = arith.constant 0 : i32
    %c0_i32_1 = arith.constant 0 : i32
    return %c0_i32, %c0_i32_0 : i32, i32
  }
  func.func @transform_7(%arg0: i32, %arg1: memref<1x8xi32, #tpu.memory_space<smem>>, %arg2: memref<1x8xi32, #tpu.memory_space<smem>>) -> (i32, i32) {
    %c0_i32 = arith.constant 0 : i32
    %c0_i32_0 = arith.constant 0 : i32
    %c0_i32_1 = arith.constant 0 : i32
    return %c0_i32, %c0_i32_0 : i32, i32
  }
  func.func @transform_8(%arg0: i32, %arg1: memref<1x8xi32, #tpu.memory_space<smem>>, %arg2: memref<1x8xi32, #tpu.memory_space<smem>>) -> (i32, i32) {
    %c0_i32 = arith.constant 0 : i32
    %c0_i32_0 = arith.constant 0 : i32
    %c0_i32_1 = arith.constant 0 : i32
    return %c0_i32, %c0_i32_0 : i32, i32
  }
  func.func @transform_9(%arg0: i32, %arg1: memref<1x8xi32, #tpu.memory_space<smem>>, %arg2: memref<1x8xi32, #tpu.memory_space<smem>>) -> (i32, i32) {
    %c0_i32 = arith.constant 0 : i32
    %c0_i32_0 = arith.constant 0 : i32
    %c0_i32_1 = arith.constant 0 : i32
    return %c0_i32, %c0_i32_0 : i32, i32
  }
  func.func @transform_10(%arg0: i32, %arg1: memref<1x8xi32, #tpu.memory_space<smem>>, %arg2: memref<1x8xi32, #tpu.memory_space<smem>>) -> (i32, i32) {
    %c0_i32 = arith.constant 0 : i32
    %c0_i32_0 = arith.constant 0 : i32
    %c0_i32_1 = arith.constant 0 : i32
    return %c0_i32, %c0_i32_0 : i32, i32
  }
  func.func @transform_11(%arg0: i32, %arg1: memref<1x8xi32, #tpu.memory_space<smem>>, %arg2: memref<1x8xi32, #tpu.memory_space<smem>>) -> (i32, i32) {
    %c0_i32 = arith.constant 0 : i32
    %c0_i32_0 = arith.constant 0 : i32
    %c0_i32_1 = arith.constant 0 : i32
    return %c0_i32, %c0_i32_0 : i32, i32
  }
  func.func @transform_12(%arg0: i32, %arg1: memref<1x8xi32, #tpu.memory_space<smem>>, %arg2: memref<1x8xi32, #tpu.memory_space<smem>>) -> (i32, i32) {
    %c0_i32 = arith.constant 0 : i32
    %c0_i32_0 = arith.constant 0 : i32
    %c0_i32_1 = arith.constant 0 : i32
    return %c0_i32, %c0_i32_0 : i32, i32
  }
  func.func @transform_13(%arg0: i32, %arg1: memref<1x8xi32, #tpu.memory_space<smem>>, %arg2: memref<1x8xi32, #tpu.memory_space<smem>>) -> (i32, i32, i32) {
    %c0_i32 = arith.constant 0 : i32
    %c0_i32_0 = arith.constant 0 : i32
    %c0_i32_1 = arith.constant 0 : i32
    return %arg0, %c0_i32, %c0_i32_0 : i32, i32, i32
  }
}

</mosaic_0001>

<llo_original>
// kernel: minigpt_forward.1
$region0: #{minigpt_forward.1}
  #allocation0 [shape = 'u32[]', space=smem, size = 0x4, offset = 0x4, fixed_abs, tag = 'smem constant byte address 0x4 - core index']
  #allocation1 [shape = 'u32[144,128]{1,0:T(1,128)}', space=vmem, size = 0x12000, scoped, tag = 'internal scratch']
  #allocation2 [shape = 'f32[80,128]{1,0:T(8,128)}', space=vmem, size = 0xa000, scoped, tag = 'scratch operand']
  #allocation3 [shape = 's32[1]{0}', space=sflag, size = 0x4, scoped, tag = 'scoped memory for minigpt_forward.1']
  #allocation4 [shape = 'u8[512]{0}', space=smem, size = 0x200, scoped, tag = 'prefetched SMEM operand 0']
  #allocation5 [shape = 'u8[512]{0}', space=smem, size = 0x200, scoped, tag = 'prefetched SMEM operand 1']
  %s0 = inlined_call_operand.vmem [shape: s32[1,8], index: 0, kind: input, shape index: {}]
  %s1 = inlined_call_operand.vmem [shape: s32[1,8], index: 1, kind: input, shape index: {}]
  %s2 = inlined_call_operand.vmem [shape: bf16[1,64,128], index: 2, kind: input, shape index: {}]
  %s3 = inlined_call_operand.vmem [shape: s32[1,80,1], index: 3, kind: input, shape index: {}]
  %s4 = inlined_call_operand.vmem [shape: f32[128,128], index: 4, kind: input, shape index: {}]
  %s5 = inlined_call_operand.vmem [shape: bf16[128,128], index: 5, kind: input, shape index: {}]
  %s6 = inlined_call_operand.vmem [shape: f32[1,128], index: 6, kind: input, shape index: {}]
  %s7 = inlined_call_operand.vmem [shape: bf16[128,384], index: 7, kind: input, shape index: {}]
  %s8 = inlined_call_operand.vmem [shape: bf16[128,128], index: 8, kind: input, shape index: {}]
  %s9 = inlined_call_operand.vmem [shape: bf16[128,512], index: 9, kind: input, shape index: {}]
  %s10 = inlined_call_operand.vmem [shape: bf16[256,128], index: 10, kind: input, shape index: {}]
  %s11 = inlined_call_operand.vmem [shape: f32[1,128], index: 11, kind: input, shape index: {}]
  %s12 = inlined_call_operand.vmem [shape: f32[1,128], index: 12, kind: input, shape index: {}]
  %s13 = inlined_call_operand.vmem [shape: f32[1,128], index: 13, kind: input, shape index: {}]
  %s14 = inlined_call_operand.vmem [shape: bf16[128,128], index: 14, kind: input, shape index: {}]
  %s15 = inlined_call_operand.hbm [shape: f32[1,1,1], index: 15, kind: output, shape index: {}]
  %s16 = sld [smem:[#allocation0]]
  $region62: #{minigpt_forward.1} parent=0
    _
  %s18 = ssub.s32 1, %s16
  %s19 = scalar_select 0, %s18, %s16
  %s20 = sshll.u32 %s0, 4
  %s21 = int_to_ptr.vmem [resolvable:$true] %s20
  %23 = dma.vmem_to_smem %s21, 16, [#allocation4], [#allocation3]
  %s24 = sshll.u32 %s1, 4
  %s25 = int_to_ptr.vmem [resolvable:$true] %s24
  %27 = dma.vmem_to_smem %s25, 16, [#allocation5], [#allocation3]
  %28 = dma.done [#allocation3], 32
  %29 = sfence
  $region1: #{minigpt_forward.1} parent=0
    #allocation6 [shape = 'u8[512]{0}', space=vmem, size = 0x400, scoped, tag = 'output window, operand 0, single buffered']
    #allocation7 [shape = 's32[1]{0}', space=sflag, size = 0x4, scoped, tag = 'scoped memory for minigpt_forward.1']
    %30 = vsyncpa [#allocation7], 0
    // Predicated region
    $region2: #{minigpt_forward.1} parent=1 // pred_check
      _
    $region3: #{minigpt_forward.1} parent=1 // pred_check_branch
      %32 = sbr.rel (0) target = $region5
    $region4: #{minigpt_forward.1} parent=1 // pred_region
      _
    $region5: #{minigpt_forward.1} parent=1 // pred_fallthru
      _
    // Predicated region
    $region6: #{minigpt_forward.1} parent=1 // pred_check
      _
    $region7: #{minigpt_forward.1} parent=1 // pred_check_branch
      %34 = sbr.rel (0) target = $region9
    $region8: #{minigpt_forward.1} parent=1 // pred_region
      _
    $region9: #{minigpt_forward.1} parent=1 // pred_fallthru
      _
    // Predicated region
    $region10: #{minigpt_forward.1} parent=1 // pred_check
      _
    $region11: #{minigpt_forward.1} parent=1 // pred_check_branch
      %36 = sbr.rel (0) target = $region13
    $region12: #{minigpt_forward.1} parent=1 // pred_region
      _
    $region13: #{minigpt_forward.1} parent=1 // pred_fallthru
      _
    // Predicated region
    $region14: #{minigpt_forward.1} parent=1 // pred_check
      _
    $region15: #{minigpt_forward.1} parent=1 // pred_check_branch
      %38 = sbr.rel (0) target = $region17
    $region16: #{minigpt_forward.1} parent=1 // pred_region
      _
    $region17: #{minigpt_forward.1} parent=1 // pred_fallthru
      _
    // Predicated region
    $region18: #{minigpt_forward.1} parent=1 // pred_check
      _
    $region19: #{minigpt_forward.1} parent=1 // pred_check_branch
      %40 = sbr.rel (0) target = $region21
    $region20: #{minigpt_forward.1} parent=1 // pred_region
      _
    $region21: #{minigpt_forward.1} parent=1 // pred_fallthru
      _
    // Predicated region
    $region22: #{minigpt_forward.1} parent=1 // pred_check
      _
    $region23: #{minigpt_forward.1} parent=1 // pred_check_branch
      %42 = sbr.rel (0) target = $region25
    $region24: #{minigpt_forward.1} parent=1 // pred_region
      _
    $region25: #{minigpt_forward.1} parent=1 // pred_fallthru
      _
    // Predicated region
    $region26: #{minigpt_forward.1} parent=1 // pred_check
      _
    $region27: #{minigpt_forward.1} parent=1 // pred_check_branch
      %44 = sbr.rel (0) target = $region29
    $region28: #{minigpt_forward.1} parent=1 // pred_region
      _
    $region29: #{minigpt_forward.1} parent=1 // pred_fallthru
      _
    // Predicated region
    $region30: #{minigpt_forward.1} parent=1 // pred_check
      _
    $region31: #{minigpt_forward.1} parent=1 // pred_check_branch
      %46 = sbr.rel (0) target = $region33
    $region32: #{minigpt_forward.1} parent=1 // pred_region
      _
    $region33: #{minigpt_forward.1} parent=1 // pred_fallthru
      _
    // Predicated region
    $region34: #{minigpt_forward.1} parent=1 // pred_check
      _
    $region35: #{minigpt_forward.1} parent=1 // pred_check_branch
      %48 = sbr.rel (0) target = $region37
    $region36: #{minigpt_forward.1} parent=1 // pred_region
      _
    $region37: #{minigpt_forward.1} parent=1 // pred_fallthru
      _
    // Predicated region
    $region38: #{minigpt_forward.1} parent=1 // pred_check
      _
    $region39: #{minigpt_forward.1} parent=1 // pred_check_branch
      %50 = sbr.rel (0) target = $region41
    $region40: #{minigpt_forward.1} parent=1 // pred_region
      _
    $region41: #{minigpt_forward.1} parent=1 // pred_fallthru
      _
    // Predicated region
    $region42: #{minigpt_forward.1} parent=1 // pred_check
      _
    $region43: #{minigpt_forward.1} parent=1 // pred_check_branch
      %52 = sbr.rel (0) target = $region45
    $region44: #{minigpt_forward.1} parent=1 // pred_region
      _
    $region45: #{minigpt_forward.1} parent=1 // pred_fallthru
      _
    // Predicated region
    $region46: #{minigpt_forward.1} parent=1 // pred_check
      _
    $region47: #{minigpt_forward.1} parent=1 // pred_check_branch
      %54 = sbr.rel (0) target = $region49
    $region48: #{minigpt_forward.1} parent=1 // pred_region
      _
    $region49: #{minigpt_forward.1} parent=1 // pred_fallthru
      _
    // Predicated region
    $region50: #{minigpt_forward.1} parent=1 // pred_check
      _
    $region51: #{minigpt_forward.1} parent=1 // pred_check_branch
      %56 = sbr.rel (0) target = $region53
    $region52: #{minigpt_forward.1} parent=1 // pred_region
      _
    $region53: #{minigpt_forward.1} parent=1 // pred_fallthru
      _
    %v58 = vld [vmem:[%s2] sm:$0xf]
    %v59 = vld [vmem:[%s2 + $0x4] sm:$0xf]
    %v60 = vld [vmem:[%s2 + $0x8] sm:$0xf]
    %v61 = vld [vmem:[%s2 + $0xc] sm:$0xf]
    %v62 = vld [vmem:[%s2 + $0x10] sm:$0xf]
    %v63 = vld [vmem:[%s2 + $0x14] sm:$0xf]
    %v64 = vld [vmem:[%s2 + $0x18] sm:$0xf]
    %v65 = vld [vmem:[%s2 + $0x1c] sm:$0xf]
    %v66 = vld [vmem:[%s5] sm:$0xf]
    %v67 = vld [vmem:[%s5 + $0x4] sm:$0xf]
    %v68 = vld [vmem:[%s5 + $0x8] sm:$0xf]
    %v69 = vld [vmem:[%s5 + $0xc] sm:$0xf]
    %v70 = vld [vmem:[%s5 + $0x10] sm:$0xf]
    %v71 = vld [vmem:[%s5 + $0x14] sm:$0xf]
    %v72 = vld [vmem:[%s5 + $0x18] sm:$0xf]
    %v73 = vld [vmem:[%s5 + $0x1c] sm:$0xf]
    %v74 = vld [vmem:[%s5 + $0x20] sm:$0xf]
    %v75 = vld [vmem:[%s5 + $0x24] sm:$0xf]
    %v76 = vld [vmem:[%s5 + $0x28] sm:$0xf]
    %v77 = vld [vmem:[%s5 + $0x2c] sm:$0xf]
    %v78 = vld [vmem:[%s5 + $0x30] sm:$0xf]
    %v79 = vld [vmem:[%s5 + $0x34] sm:$0xf]
    %v80 = vld [vmem:[%s5 + $0x38] sm:$0xf]
    %v81 = vld [vmem:[%s5 + $0x3c] sm:$0xf]
    %v82 = vld [vmem:[%s6] sm:$0x1]
    %v84 = vlaneseq
    %v85 = vshrl.u32 %v84, 7
    %v86 = vsub.s32 0, %v85
    %v87 = vrot.slane %v82, %v86
    %v97 = vunpack.c.l.b16 %v58
    %v98 = vunpack.c.l.b16 %v59
    %v99 = vunpack.c.l.b16 %v60
    %v100 = vunpack.c.l.b16 %v61
    %v101 = vunpack.c.l.b16 %v62
    %v102 = vunpack.c.l.b16 %v63
    %v103 = vunpack.c.l.b16 %v64
    %v104 = vunpack.c.l.b16 %v65
    %v105 = vpack.c.b16 %v98, %v97
    %v106 = vpack.c.b16 %v100, %v99
    %v107 = vpack.c.b16 %v102, %v101
    %v108 = vpack.c.b16 %v104, %v103
    %v129 = vunpack.c.l.b16 %v66
    %v130 = vunpack.c.l.b16 %v67
    %v131 = vunpack.c.l.b16 %v68
    %v132 = vunpack.c.l.b16 %v69
    %v133 = vunpack.c.l.b16 %v70
    %v134 = vunpack.c.l.b16 %v71
    %v135 = vunpack.c.l.b16 %v72
    %v136 = vunpack.c.l.b16 %v73
    %v137 = vunpack.c.l.b16 %v74
    %v138 = vunpack.c.l.b16 %v75
    %v139 = vunpack.c.l.b16 %v76
    %v140 = vunpack.c.l.b16 %v77
    %v141 = vunpack.c.l.b16 %v78
    %v142 = vunpack.c.l.b16 %v79
    %v143 = vunpack.c.l.b16 %v80
    %v144 = vunpack.c.l.b16 %v81
    %v145 = vpack.c.b16 %v130, %v129
    %v146 = vpack.c.b16 %v132, %v131
    %v147 = vpack.c.b16 %v134, %v133
    %v148 = vpack.c.b16 %v136, %v135
    %v149 = vpack.c.b16 %v138, %v137
    %v150 = vpack.c.b16 %v140, %v139
    %v151 = vpack.c.b16 %v142, %v141
    %v152 = vpack.c.b16 %v144, %v143
    %161 = vmatprep.subr.bf16.mxu0 0
    %162 = vmatpush1.bf16.msra.mxu0 %v145
    %163 = vmatprep.subr.bf16.mxu0 0
    %164 = vmatpush1.bf16.msra.mxu0 %v146
    %165 = vmatprep.subr.bf16.mxu0 0
    %166 = vmatpush1.bf16.msra.mxu0 %v147
    %167 = vmatprep.subr.bf16.mxu0 0
    %168 = vmatpush1.bf16.msra.mxu0 %v148
    %169 = vmatprep.subr.bf16.mxu0 0
    %170 = vmatpush1.bf16.msra.mxu0 %v149
    %171 = vmatprep.subr.bf16.mxu0 0
    %172 = vmatpush1.bf16.msra.mxu0 %v150
    %173 = vmatprep.subr.bf16.mxu0 0
    %174 = vmatpush1.bf16.msra.mxu0 %v151
    %175 = vmatprep.subr.bf16.mxu0 0
    %176 = vmatpush1.bf16.msra.mxu0 %v152
    %177 = vmatprep.subr.bf16.mxu0 0
    %178 = vmatpush1.bf16.msra.mxu0 0
    %179 = vmatprep.subr.bf16.mxu0 0
    %180 = vmatpush1.bf16.msra.mxu0 0
    %181 = vmatprep.subr.bf16.mxu0 0
    %182 = vmatpush1.bf16.msra.mxu0 0
    %183 = vmatprep.subr.bf16.mxu0 0
    %184 = vmatpush1.bf16.msra.mxu0 0
    %185 = vmatprep.subr.bf16.mxu0 0
    %186 = vmatpush1.bf16.msra.mxu0 0
    %187 = vmatprep.subr.bf16.mxu0 0
    %188 = vmatpush1.bf16.msra.mxu0 0
    %189 = vmatprep.subr.bf16.mxu0 0
    %190 = vmatpush1.bf16.msra.mxu0 0
    %191 = vmatprep.subr.bf16.mxu0 0
    %192 = vmatpush1.bf16.msra.mxu0 0
    %193 = vmatprep.mubr.bf16.mxu0 0
    %194 = vmatmul.mubr.bf16.gmra.mrb[0].mxu0 %v105
    %v195 = vpop.f32.mrb[0].mxu0
    %v196 = vadd.f32 %v87, %v195
    %v197 = vpop.f32.mrb[0].mxu0
    %v198 = vpop.f32.mrb[0].mxu0
    %v199 = vadd.f32 %v87, %v198
    %v200 = vpop.f32.mrb[0].mxu0
    %201 = vmatprep.mubr.bf16.mxu0 0
    %202 = vmatmul.mubr.bf16.gmra.mrb[0].mxu0 %v106
    %v203 = vpop.f32.mrb[0].mxu0
    %v204 = vadd.f32 %v87, %v203
    %v205 = vpop.f32.mrb[0].mxu0
    %v206 = vpop.f32.mrb[0].mxu0
    %v207 = vadd.f32 %v87, %v206
    %v208 = vpop.f32.mrb[0].mxu0
    %209 = vmatprep.mubr.bf16.mxu0 0
    %210 = vmatmul.mubr.bf16.gmra.mrb[0].mxu0 %v107
    %v211 = vpop.f32.mrb[0].mxu0
    %v212 = vadd.f32 %v87, %v211
    %v213 = vpop.f32.mrb[0].mxu0
    %v214 = vpop.f32.mrb[0].mxu0
    %v215 = vadd.f32 %v87, %v214
    %v216 = vpop.f32.mrb[0].mxu0
    %217 = vmatprep.mubr.bf16.mxu0 0
    %218 = vmatmul.mubr.bf16.gmra.mrb[0].mxu0 %v108
    %v219 = vpop.f32.mrb[0].mxu0
    %v220 = vadd.f32 %v87, %v219
    %v221 = vpop.f32.mrb[0].mxu0
    %v222 = vpop.f32.mrb[0].mxu0
    %v223 = vadd.f32 %v87, %v222
    %v224 = vpop.f32.mrb[0].mxu0
    %225 = vdwg.mxu0
    %s226 = smul.u32 0, 128
    %s227 = sld [smem:[#allocation4 + %s226]]
    %s228 = scalar_lea.vmem %s4, %s227
    %v229 = vld [vmem:[%s228] sm:$0x1]
    %230 = vst [vmem:[#allocation2] sm:$0x1] %v229
    %s231 = sadd.s32 %s226, 1
    %s232 = sld [smem:[#allocation4 + %s231]]
    %s233 = scalar_lea.vmem %s4, %s232
    %v234 = vld [vmem:[%s233] sm:$0x1]
    %235 = vst [vmem:[#allocation2 + $0x1] sm:$0x1] %v234
    %s236 = sadd.s32 %s226, 2
    %s237 = sld [smem:[#allocation4 + %s236]]
    %s238 = scalar_lea.vmem %s4, %s237
    %v239 = vld [vmem:[%s238] sm:$0x1]
    %240 = vst [vmem:[#allocation2 + $0x2] sm:$0x1] %v239
    %s241 = sadd.s32 %s226, 3
    %s242 = sld [smem:[#allocation4 + %s241]]
    %s243 = scalar_lea.vmem %s4, %s242
    %v244 = vld [vmem:[%s243] sm:$0x1]
    %245 = vst [vmem:[#allocation2 + $0x3] sm:$0x1] %v244
    %s246 = sadd.s32 %s226, 4
    %s247 = sld [smem:[#allocation4 + %s246]]
    %s248 = scalar_lea.vmem %s4, %s247
    %v249 = vld [vmem:[%s248] sm:$0x1]
    %250 = vst [vmem:[#allocation2 + $0x4] sm:$0x1] %v249
    %s251 = sadd.s32 %s226, 5
    %s252 = sld [smem:[#allocation4 + %s251]]
    %s253 = scalar_lea.vmem %s4, %s252
    %v254 = vld [vmem:[%s253] sm:$0x1]
    %255 = vst [vmem:[#allocation2 + $0x5] sm:$0x1] %v254
    %s256 = sadd.s32 %s226, 6
    %s257 = sld [smem:[#allocation4 + %s256]]
    %s258 = scalar_lea.vmem %s4, %s257
    %v259 = vld [vmem:[%s258] sm:$0x1]
    %260 = vst [vmem:[#allocation2 + $0x6] sm:$0x1] %v259
    %s261 = sadd.s32 %s226, 7
    %s262 = sld [smem:[#allocation4 + %s261]]
    %s263 = scalar_lea.vmem %s4, %s262
    %v264 = vld [vmem:[%s263] sm:$0x1]
    %265 = vst [vmem:[#allocation2 + $0x7] sm:$0x1] %v264
    %266 = vst [vmem:[#allocation2 + $0x8] sm:$0xff] %v196
    %267 = vst [vmem:[#allocation2 + $0x10] sm:$0xff] %v199
    %268 = vst [vmem:[#allocation2 + $0x18] sm:$0xff] %v204
    %269 = vst [vmem:[#allocation2 + $0x20] sm:$0xff] %v207
    %270 = vst [vmem:[#allocation2 + $0x28] sm:$0xff] %v212
    %271 = vst [vmem:[#allocation2 + $0x30] sm:$0xff] %v215
    %272 = vst [vmem:[#allocation2 + $0x38] sm:$0xff] %v220
    %273 = vst [vmem:[#allocation2 + $0x40] sm:$0xff] %v223
    %s274 = sld [smem:[#allocation5 + %s226]]
    %s275 = scalar_lea.vmem %s4, %s274
    %v276 = vld [vmem:[%s275] sm:$0x1]
    %277 = vst [vmem:[#allocation2 + $0x48] sm:$0x1] %v276
    %s278 = sld [smem:[#allocation5 + %s231]]
    %s279 = scalar_lea.vmem %s4, %s278
    %v280 = vld [vmem:[%s279] sm:$0x1]
    %281 = vst [vmem:[#allocation2 + $0x49] sm:$0x1] %v280
    %s282 = sld [smem:[#allocation5 + %s236]]
    %s283 = scalar_lea.vmem %s4, %s282
    %v284 = vld [vmem:[%s283] sm:$0x1]
    %285 = vst [vmem:[#allocation2 + $0x4a] sm:$0x1] %v284
    %s286 = sld [smem:[#allocation5 + %s241]]
    %s287 = scalar_lea.vmem %s4, %s286
    %v288 = vld [vmem:[%s287] sm:$0x1]
    %289 = vst [vmem:[#allocation2 + $0x4b] sm:$0x1] %v288
    %s290 = sld [smem:[#allocation5 + %s246]]
    %s291 = scalar_lea.vmem %s4, %s290
    %v292 = vld [vmem:[%s291] sm:$0x1]
    %293 = vst [vmem:[#allocation2 + $0x4c] sm:$0x1] %v292
    %s294 = sld [smem:[#allocation5 + %s251]]
    %s295 = scalar_lea.vmem %s4, %s294
    %v296 = vld [vmem:[%s295] sm:$0x1]
    %297 = vst [vmem:[#allocation2 + $0x4d] sm:$0x1] %v296
    %s298 = sld [smem:[#allocation5 + %s256]]
    %s299 = scalar_lea.vmem %s4, %s298
    %v300 = vld [vmem:[%s299] sm:$0x1]
    %301 = vst [vmem:[#allocation2 + $0x4e] sm:$0x1] %v300
    %s302 = sld [smem:[#allocation5 + %s261]]
    %s303 = scalar_lea.vmem %s4, %s302
    %v304 = vld [vmem:[%s303] sm:$0x1]
    %305 = vst [vmem:[#allocation2 + $0x4f] sm:$0x1] %v304
    %v306 = vld [vmem:[#allocation2] sm:$0xff]
    %v307 = vld [vmem:[#allocation2 + $0x8] sm:$0xff]
    %v308 = vld [vmem:[#allocation2 + $0x10] sm:$0xff]
    %v309 = vld [vmem:[#allocation2 + $0x18] sm:$0xff]
    %v310 = vld [vmem:[#allocation2 + $0x20] sm:$0xff]
    %v311 = vld [vmem:[#allocation2 + $0x28] sm:$0xff]
    %v312 = vld [vmem:[#allocation2 + $0x30] sm:$0xff]
    %v313 = vld [vmem:[#allocation2 + $0x38] sm:$0xff]
    %v314 = vld [vmem:[#allocation2 + $0x40] sm:$0xff]
    %v315 = vld [vmem:[#allocation2 + $0x48] sm:$0xff]
    %v316 = vld [vmem:[%s11] sm:$0x1]
    %v317 = vmul.f32 %v306, %v306
    %v318 = vmul.f32 %v307, %v307
    %v319 = vmul.f32 %v308, %v308
    %v320 = vmul.f32 %v309, %v309
    %v321 = vmul.f32 %v310, %v310
    %v322 = vmul.f32 %v311, %v311
    %v323 = vmul.f32 %v312, %v312
    %v324 = vmul.f32 %v313, %v313
    %v325 = vmul.f32 %v314, %v314
    %v326 = vmul.f32 %v315, %v315
    %327 = vadd.xlane.f32.xlu0 %v317
    %v328 = vpop.xlane.xlu0 %327
    %329 = vadd.xlane.f32.xlu0 %v318
    %v330 = vpop.xlane.xlu0 %329
    %331 = vadd.xlane.f32.xlu0 %v319
    %v332 = vpop.xlane.xlu0 %331
    %333 = vadd.xlane.f32.xlu0 %v320
    %v334 = vpop.xlane.xlu0 %333
    %335 = vadd.xlane.f32.xlu0 %v321
    %v336 = vpop.xlane.xlu0 %335
    %337 = vadd.xlane.f32.xlu0 %v322
    %v338 = vpop.xlane.xlu0 %337
    %339 = vadd.xlane.f32.xlu0 %v323
    %v340 = vpop.xlane.xlu0 %339
    %341 = vadd.xlane.f32.xlu0 %v324
    %v342 = vpop.xlane.xlu0 %341
    %343 = vadd.xlane.f32.xlu0 %v325
    %v344 = vpop.xlane.xlu0 %343
    %345 = vadd.xlane.f32.xlu0 %v326
    %v346 = vpop.xlane.xlu0 %345
    %v347 = vrcp.pop 128.0
    %v348 = vmul.f32 %v328, %v347
    %v349 = vmul.f32 %v330, %v347
    %v350 = vmul.f32 %v332, %v347
    %v351 = vmul.f32 %v334, %v347
    %v352 = vmul.f32 %v336, %v347
    %v353 = vmul.f32 %v338, %v347
    %v354 = vmul.f32 %v340, %v347
    %v355 = vmul.f32 %v342, %v347
    %v356 = vmul.f32 %v344, %v347
    %v357 = vmul.f32 %v346, %v347
    %v358 = vadd.f32 %v348, 1e-06
    %v359 = vadd.f32 %v349, 1e-06
    %v360 = vadd.f32 %v350, 1e-06
    %v361 = vadd.f32 %v351, 1e-06
    %v362 = vadd.f32 %v352, 1e-06
    %v363 = vadd.f32 %v353, 1e-06
    %v364 = vadd.f32 %v354, 1e-06
    %v365 = vadd.f32 %v355, 1e-06
    %v366 = vadd.f32 %v356, 1e-06
    %v367 = vadd.f32 %v357, 1e-06
    %v368 = vrsqrt.pop %v358
    %v369 = vrsqrt.pop %v359
    %v370 = vrsqrt.pop %v360
    %v371 = vrsqrt.pop %v361
    %v372 = vrsqrt.pop %v362
    %v373 = vrsqrt.pop %v363
    %v374 = vrsqrt.pop %v364
    %v375 = vrsqrt.pop %v365
    %v376 = vrsqrt.pop %v366
    %v377 = vrsqrt.pop %v367
    %v378 = vmul.f32 %v306, %v368
    %v379 = vmul.f32 %v307, %v369
    %v380 = vmul.f32 %v308, %v370
    %v381 = vmul.f32 %v309, %v371
    %v382 = vmul.f32 %v310, %v372
    %v383 = vmul.f32 %v311, %v373
    %v384 = vmul.f32 %v312, %v374
    %v385 = vmul.f32 %v313, %v375
    %v386 = vmul.f32 %v314, %v376
    %v387 = vmul.f32 %v315, %v377
    %v389 = vlaneseq
    %v390 = vshrl.u32 %v389, 7
    %v391 = vsub.s32 0, %v390
    %v392 = vrot.slane %v316, %v391
    %v394 = vmul.f32 %v378, %v392
    %v395 = vmul.f32 %v379, %v392
    %v396 = vmul.f32 %v380, %v392
    %v397 = vmul.f32 %v381, %v392
    %v398 = vmul.f32 %v382, %v392
    %v399 = vmul.f32 %v383, %v392
    %v400 = vmul.f32 %v384, %v392
    %v401 = vmul.f32 %v385, %v392
    %v402 = vmul.f32 %v386, %v392
    %v403 = vmul.f32 %v387, %v392
    %v404 = vpack.c.bf16 %v395, %v394
    %v405 = vpack.c.bf16 %v397, %v396
    %v406 = vpack.c.bf16 %v399, %v398
    %v407 = vpack.c.bf16 %v401, %v400
    %v408 = vpack.c.bf16 %v403, %v402
    %v409 = vld [vmem:[%s7] sm:$0xff]
    %v410 = vld [vmem:[%s7 + $0x8] sm:$0xf]
    %v411 = vld [vmem:[%s7 + $0xc] sm:$0xff]
    %v412 = vld [vmem:[%s7 + $0x14] sm:$0xf]
    %v413 = vld [vmem:[%s7 + $0x18] sm:$0xff]
    %v414 = vld [vmem:[%s7 + $0x20] sm:$0xf]
    %v415 = vld [vmem:[%s7 + $0x24] sm:$0xff]
    %v416 = vld [vmem:[%s7 + $0x2c] sm:$0xf]
    %v417 = vld [vmem:[%s7 + $0x30] sm:$0xff]
    %v418 = vld [vmem:[%s7 + $0x38] sm:$0xf]
    %v419 = vld [vmem:[%s7 + $0x3c] sm:$0xff]
    %v420 = vld [vmem:[%s7 + $0x44] sm:$0xf]
    %v421 = vld [vmem:[%s7 + $0x48] sm:$0xff]
    %v422 = vld [vmem:[%s7 + $0x50] sm:$0xf]
    %v423 = vld [vmem:[%s7 + $0x54] sm:$0xff]
    %v424 = vld [vmem:[%s7 + $0x5c] sm:$0xf]
    %v425 = vld [vmem:[%s7 + $0x60] sm:$0xff]
    %v426 = vld [vmem:[%s7 + $0x68] sm:$0xf]
    %v427 = vld [vmem:[%s7 + $0x6c] sm:$0xff]
    %v428 = vld [vmem:[%s7 + $0x74] sm:$0xf]
    %v429 = vld [vmem:[%s7 + $0x78] sm:$0xff]
    %v430 = vld [vmem:[%s7 + $0x80] sm:$0xf]
    %v431 = vld [vmem:[%s7 + $0x84] sm:$0xff]
    %v432 = vld [vmem:[%s7 + $0x8c] sm:$0xf]
    %v433 = vld [vmem:[%s7 + $0x90] sm:$0xff]
    %v434 = vld [vmem:[%s7 + $0x98] sm:$0xf]
    %v435 = vld [vmem:[%s7 + $0x9c] sm:$0xff]
    %v436 = vld [vmem:[%s7 + $0xa4] sm:$0xf]
    %v437 = vld [vmem:[%s7 + $0xa8] sm:$0xff]
    %v438 = vld [vmem:[%s7 + $0xb0] sm:$0xf]
    %v439 = vld [vmem:[%s7 + $0xb4] sm:$0xff]
    %v440 = vld [vmem:[%s7 + $0xbc] sm:$0xf]
    %v473 = vunpack.c.l.b16 %v409
    %v474 = vunpack.c.h.b16 %v409
    %v475 = vunpack.c.l.b16 %v410
    %v476 = vunpack.c.l.b16 %v411
    %v477 = vunpack.c.h.b16 %v411
    %v478 = vunpack.c.l.b16 %v412
    %v479 = vunpack.c.l.b16 %v413
    %v480 = vunpack.c.h.b16 %v413
    %v481 = vunpack.c.l.b16 %v414
    %v482 = vunpack.c.l.b16 %v415
    %v483 = vunpack.c.h.b16 %v415
    %v484 = vunpack.c.l.b16 %v416
    %v485 = vunpack.c.l.b16 %v417
    %v486 = vunpack.c.h.b16 %v417
    %v487 = vunpack.c.l.b16 %v418
    %v488 = vunpack.c.l.b16 %v419
    %v489 = vunpack.c.h.b16 %v419
    %v490 = vunpack.c.l.b16 %v420
    %v491 = vunpack.c.l.b16 %v421
    %v492 = vunpack.c.h.b16 %v421
    %v493 = vunpack.c.l.b16 %v422
    %v494 = vunpack.c.l.b16 %v423
    %v495 = vunpack.c.h.b16 %v423
    %v496 = vunpack.c.l.b16 %v424
    %v497 = vunpack.c.l.b16 %v425
    %v498 = vunpack.c.h.b16 %v425
    %v499 = vunpack.c.l.b16 %v426
    %v500 = vunpack.c.l.b16 %v427
    %v501 = vunpack.c.h.b16 %v427
    %v502 = vunpack.c.l.b16 %v428
    %v503 = vunpack.c.l.b16 %v429
    %v504 = vunpack.c.h.b16 %v429
    %v505 = vunpack.c.l.b16 %v430
    %v506 = vunpack.c.l.b16 %v431
    %v507 = vunpack.c.h.b16 %v431
    %v508 = vunpack.c.l.b16 %v432
    %v509 = vunpack.c.l.b16 %v433
    %v510 = vunpack.c.h.b16 %v433
    %v511 = vunpack.c.l.b16 %v434
    %v512 = vunpack.c.l.b16 %v435
    %v513 = vunpack.c.h.b16 %v435
    %v514 = vunpack.c.l.b16 %v436
    %v515 = vunpack.c.l.b16 %v437
    %v516 = vunpack.c.h.b16 %v437
    %v517 = vunpack.c.l.b16 %v438
    %v518 = vunpack.c.l.b16 %v439
    %v519 = vunpack.c.h.b16 %v439
    %v520 = vunpack.c.l.b16 %v440
    %v521 = vpack.c.b16 %v476, %v473
    %v522 = vpack.c.b16 %v477, %v474
    %v523 = vpack.c.b16 %v478, %v475
    %v524 = vpack.c.b16 %v482, %v479
    %v525 = vpack.c.b16 %v483, %v480
    %v526 = vpack.c.b16 %v484, %v481
    %v527 = vpack.c.b16 %v488, %v485
    %v528 = vpack.c.b16 %v489, %v486
    %v529 = vpack.c.b16 %v490, %v487
    %v530 = vpack.c.b16 %v494, %v491
    %v531 = vpack.c.b16 %v495, %v492
    %v532 = vpack.c.b16 %v496, %v493
    %v533 = vpack.c.b16 %v500, %v497
    %v534 = vpack.c.b16 %v501, %v498
    %v535 = vpack.c.b16 %v502, %v499
    %v536 = vpack.c.b16 %v506, %v503
    %v537 = vpack.c.b16 %v507, %v504
    %v538 = vpack.c.b16 %v508, %v505
    %v539 = vpack.c.b16 %v512, %v509
    %v540 = vpack.c.b16 %v513, %v510
    %v541 = vpack.c.b16 %v514, %v511
    %v542 = vpack.c.b16 %v518, %v515
    %v543 = vpack.c.b16 %v519, %v516
    %v544 = vpack.c.b16 %v520, %v517
    %569 = vmatprep.subr.bf16.mxu0 %v522
    %570 = vmatpush1.bf16.msra.mxu0 %v521
    %571 = vmatprep.subr.bf16.mxu0 %v525
    %572 = vmatpush1.bf16.msra.mxu0 %v524
    %573 = vmatprep.subr.bf16.mxu0 %v528
    %574 = vmatpush1.bf16.msra.mxu0 %v527
    %575 = vmatprep.subr.bf16.mxu0 %v531
    %576 = vmatpush1.bf16.msra.mxu0 %v530
    %577 = vmatprep.subr.bf16.mxu0 %v534
    %578 = vmatpush1.bf16.msra.mxu0 %v533
    %579 = vmatprep.subr.bf16.mxu0 %v537
    %580 = vmatpush1.bf16.msra.mxu0 %v536
    %581 = vmatprep.subr.bf16.mxu0 %v540
    %582 = vmatpush1.bf16.msra.mxu0 %v539
    %583 = vmatprep.subr.bf16.mxu0 %v543
    %584 = vmatpush1.bf16.msra.mxu0 %v542
    %585 = vmatprep.subr.bf16.mxu0 0
    %586 = vmatpush1.bf16.msra.mxu0 0
    %587 = vmatprep.subr.bf16.mxu0 0
    %588 = vmatpush1.bf16.msra.mxu0 0
    %589 = vmatprep.subr.bf16.mxu0 0
    %590 = vmatpush1.bf16.msra.mxu0 0
    %591 = vmatprep.subr.bf16.mxu0 0
    %592 = vmatpush1.bf16.msra.mxu0 0
    %593 = vmatprep.subr.bf16.mxu0 0
    %594 = vmatpush1.bf16.msra.mxu0 0
    %595 = vmatprep.subr.bf16.mxu0 0
    %596 = vmatpush1.bf16.msra.mxu0 0
    %597 = vmatprep.subr.bf16.mxu0 0
    %598 = vmatpush1.bf16.msra.mxu0 0
    %599 = vmatprep.subr.bf16.mxu0 0
    %600 = vmatpush1.bf16.msra.mxu0 0
    %601 = vmatprep.mubr.bf16.mxu0 0
    %602 = vmatmul.mubr.bf16.gmra.mrb[0].mxu0 %v404
    %v603 = vpop.f32.mrb[0].mxu0
    %v604 = vadd.f32 0.0, %v603
    %v605 = vpop.f32.mrb[0].mxu0
    %v606 = vadd.f32 0.0, %v605
    %v607 = vpop.f32.mrb[0].mxu0
    %v608 = vadd.f32 0.0, %v607
    %v609 = vpop.f32.mrb[0].mxu0
    %v610 = vadd.f32 0.0, %v609
    %611 = vmatprep.mubr.bf16.mxu0 0
    %612 = vmatmul.mubr.bf16.gmra.mrb[0].mxu0 %v405
    %v613 = vpop.f32.mrb[0].mxu0
    %v614 = vadd.f32 0.0, %v613
    %v615 = vpop.f32.mrb[0].mxu0
    %v616 = vadd.f32 0.0, %v615
    %v617 = vpop.f32.mrb[0].mxu0
    %v618 = vadd.f32 0.0, %v617
    %v619 = vpop.f32.mrb[0].mxu0
    %v620 = vadd.f32 0.0, %v619
    %621 = vmatprep.mubr.bf16.mxu0 0
    %622 = vmatmul.mubr.bf16.gmra.mrb[0].mxu0 %v406
    %v623 = vpop.f32.mrb[0].mxu0
    %v624 = vadd.f32 0.0, %v623
    %v625 = vpop.f32.mrb[0].mxu0
    %v626 = vadd.f32 0.0, %v625
    %v627 = vpop.f32.mrb[0].mxu0
    %v628 = vadd.f32 0.0, %v627
    %v629 = vpop.f32.mrb[0].mxu0
    %v630 = vadd.f32 0.0, %v629
    %631 = vmatprep.mubr.bf16.mxu0 0
    %632 = vmatmul.mubr.bf16.gmra.mrb[0].mxu0 %v407
    %v633 = vpop.f32.mrb[0].mxu0
    %v634 = vadd.f32 0.0, %v633
    %v635 = vpop.f32.mrb[0].mxu0
    %v636 = vadd.f32 0.0, %v635
    %v637 = vpop.f32.mrb[0].mxu0
    %v638 = vadd.f32 0.0, %v637
    %v639 = vpop.f32.mrb[0].mxu0
    %v640 = vadd.f32 0.0, %v639
    %641 = vmatprep.mubr.bf16.mxu0 0
    %642 = vmatmul.mubr.bf16.gmra.mrb[0].mxu0 %v408
    %v643 = vpop.f32.mrb[0].mxu0
    %v644 = vadd.f32 0.0, %v643
    %v645 = vpop.f32.mrb[0].mxu0
    %v646 = vadd.f32 0.0, %v645
    %v647 = vpop.f32.mrb[0].mxu0
    %v648 = vadd.f32 0.0, %v647
    %v649 = vpop.f32.mrb[0].mxu0
    %v650 = vadd.f32 0.0, %v649
    %651 = vdwg.mxu0
    %652 = vmatprep.subr.bf16.mxu0 0
    %653 = vmatpush1.bf16.msra.mxu0 %v523
    %654 = vmatprep.subr.bf16.mxu0 0
    %655 = vmatpush1.bf16.msra.mxu0 %v526
    %656 = vmatprep.subr.bf16.mxu0 0
    %657 = vmatpush1.bf16.msra.mxu0 %v529
    %658 = vmatprep.subr.bf16.mxu0 0
    %659 = vmatpush1.bf16.msra.mxu0 %v532
    %660 = vmatprep.subr.bf16.mxu0 0
    %661 = vmatpush1.bf16.msra.mxu0 %v535
    %662 = vmatprep.subr.bf16.mxu0 0
    %663 = vmatpush1.bf16.msra.mxu0 %v538
    %664 = vmatprep.subr.bf16.mxu0 0
    %665 = vmatpush1.bf16.msra.mxu0 %v541
    %666 = vmatprep.subr.bf16.mxu0 0
    %667 = vmatpush1.bf16.msra.mxu0 %v544
    %668 = vmatprep.subr.bf16.mxu0 0
    %669 = vmatpush1.bf16.msra.mxu0 0
    %670 = vmatprep.subr.bf16.mxu0 0
    %671 = vmatpush1.bf16.msra.mxu0 0
    %672 = vmatprep.subr.bf16.mxu0 0
    %673 = vmatpush1.bf16.msra.mxu0 0
    %674 = vmatprep.subr.bf16.mxu0 0
    %675 = vmatpush1.bf16.msra.mxu0 0
    %676 = vmatprep.subr.bf16.mxu0 0
    %677 = vmatpush1.bf16.msra.mxu0 0
    %678 = vmatprep.subr.bf16.mxu0 0
    %679 = vmatpush1.bf16.msra.mxu0 0
    %680 = vmatprep.subr.bf16.mxu0 0
    %681 = vmatpush1.bf16.msra.mxu0 0
    %682 = vmatprep.subr.bf16.mxu0 0
    %683 = vmatpush1.bf16.msra.mxu0 0
    %684 = vmatprep.mubr.bf16.mxu0 0
    %685 = vmatmul.mubr.bf16.gmra.mrb[0].mxu0 %v404
    %v686 = vpop.f32.mrb[0].mxu0
    %v687 = vadd.f32 0.0, %v686
    %v688 = vpop.f32.mrb[0].mxu0
    %v689 = vpop.f32.mrb[0].mxu0
    %v690 = vadd.f32 0.0, %v689
    %v691 = vpop.f32.mrb[0].mxu0
    %692 = vmatprep.mubr.bf16.mxu0 0
    %693 = vmatmul.mubr.bf16.gmra.mrb[0].mxu0 %v405
    %v694 = vpop.f32.mrb[0].mxu0
    %v695 = vadd.f32 0.0, %v694
    %v696 = vpop.f32.mrb[0].mxu0
    %v697 = vpop.f32.mrb[0].mxu0
    %v698 = vadd.f32 0.0, %v697
    %v699 = vpop.f32.mrb[0].mxu0
    %700 = vmatprep.mubr.bf16.mxu0 0
    %701 = vmatmul.mubr.bf16.gmra.mrb[0].mxu0 %v406
    %v702 = vpop.f32.mrb[0].mxu0
    %v703 = vadd.f32 0.0, %v702
    %v704 = vpop.f32.mrb[0].mxu0
    %v705 = vpop.f32.mrb[0].mxu0
    %v706 = vadd.f32 0.0, %v705
    %v707 = vpop.f32.mrb[0].mxu0
    %708 = vmatprep.mubr.bf16.mxu0 0
    %709 = vmatmul.mubr.bf16.gmra.mrb[0].mxu0 %v407
    %v710 = vpop.f32.mrb[0].mxu0
    %v711 = vadd.f32 0.0, %v710
    %v712 = vpop.f32.mrb[0].mxu0
    %v713 = vpop.f32.mrb[0].mxu0
    %v714 = vadd.f32 0.0, %v713
    %v715 = vpop.f32.mrb[0].mxu0
    %716 = vmatprep.mubr.bf16.mxu0 0
    %717 = vmatmul.mubr.bf16.gmra.mrb[0].mxu0 %v408
    %v718 = vpop.f32.mrb[0].mxu0
    %v719 = vadd.f32 0.0, %v718
    %v720 = vpop.f32.mrb[0].mxu0
    %v721 = vpop.f32.mrb[0].mxu0
    %v722 = vadd.f32 0.0, %v721
    %v723 = vpop.f32.mrb[0].mxu0
    %724 = vdwg.mxu0
    %v725 = vpack.c.bf16 %v608, %v604
    %v726 = vpack.c.bf16 %v610, %v606
    %v727 = vpack.c.bf16 %v690, %v687
    %v728 = vpack.c.bf16 %v618, %v614
    %v729 = vpack.c.bf16 %v620, %v616
    %v730 = vpack.c.bf16 %v698, %v695
    %v731 = vpack.c.bf16 %v628, %v624
    %v732 = vpack.c.bf16 %v630, %v626
    %v733 = vpack.c.bf16 %v706, %v703
    %v734 = vpack.c.bf16 %v638, %v634
    %v735 = vpack.c.bf16 %v640, %v636
    %v736 = vpack.c.bf16 %v714, %v711
    %v737 = vpack.c.bf16 %v648, %v644
    %v738 = vpack.c.bf16 %v650, %v646
    %v739 = vpack.c.bf16 %v722, %v719
    %740 = vmatprep.subr.bf16.mxu0 0
    %741 = vmatpush1.bf16.xpose.msra.mxu0 %v726
    %742 = vmatprep.subr.bf16.mxu0 0
    %743 = vmatpush1.bf16.xpose.msra.mxu0 %v729
    %744 = vmatprep.subr.bf16.mxu0 0
    %745 = vmatpush1.bf16.xpose.msra.mxu0 %v732
    %746 = vmatprep.subr.bf16.mxu0 0
    %747 = vmatpush1.bf16.xpose.msra.mxu0 %v735
    %748 = vmatprep.subr.bf16.mxu0 0
    %749 = vmatpush1.bf16.xpose.msra.mxu0 %v738
    %750 = vmatprep.subr.bf16.mxu0 0
    %751 = vmatpush1.bf16.xpose.msra.mxu0 0
    %752 = vmatprep.subr.bf16.mxu0 0
    %753 = vmatpush1.bf16.xpose.msra.mxu0 0
    %754 = vmatprep.subr.bf16.mxu0 0
    %755 = vmatpush1.bf16.xpose.msra.mxu0 0
    %756 = vmatprep.subr.bf16.mxu0 0
    %757 = vmatpush1.bf16.xpose.msra.mxu0 0
    %758 = vmatprep.subr.bf16.mxu0 0
    %759 = vmatpush1.bf16.xpose.msra.mxu0 0
    %760 = vmatprep.subr.bf16.mxu0 0
    %761 = vmatpush1.bf16.xpose.msra.mxu0 0
    %762 = vmatprep.subr.bf16.mxu0 0
    %763 = vmatpush1.bf16.xpose.msra.mxu0 0
    %764 = vmatprep.subr.bf16.mxu0 0
    %765 = vmatpush1.bf16.xpose.msra.mxu0 0
    %766 = vmatprep.subr.bf16.mxu0 0
    %767 = vmatpush1.bf16.xpose.msra.mxu0 0
    %768 = vmatprep.subr.bf16.mxu0 0
    %769 = vmatpush1.bf16.xpose.msra.mxu0 0
    %770 = vmatprep.subr.bf16.mxu0 0
    %771 = vmatpush1.bf16.xpose.msra.mxu0 0
    %772 = vmatprep.mubr.bf16.mxu0 0
    %773 = vmatmul.mubr.bf16.gmra.mrb[0].mxu0 %v725
    %v774 = vpop.f32.mrb[0].mxu0
    %v775 = vadd.f32 0.0, %v774
    %v776 = vpop.f32.mrb[0].mxu0
    %v777 = vpop.f32.mrb[0].mxu0
    %v778 = vadd.f32 0.0, %v777
    %v779 = vpop.f32.mrb[0].mxu0
    %780 = vmatprep.mubr.bf16.mxu0 0
    %781 = vmatmul.mubr.bf16.gmra.mrb[0].mxu0 %v728
    %v782 = vpop.f32.mrb[0].mxu0
    %v783 = vadd.f32 0.0, %v782
    %v784 = vpop.f32.mrb[0].mxu0
    %v785 = vpop.f32.mrb[0].mxu0
    %v786 = vadd.f32 0.0, %v785
    %v787 = vpop.f32.mrb[0].mxu0
    %788 = vmatprep.mubr.bf16.mxu0 0
    %789 = vmatmul.mubr.bf16.gmra.mrb[0].mxu0 %v731
    %v790 = vpop.f32.mrb[0].mxu0
    %v791 = vadd.f32 0.0, %v790
    %v792 = vpop.f32.mrb[0].mxu0
    %v793 = vpop.f32.mrb[0].mxu0
    %v794 = vadd.f32 0.0, %v793
    %v795 = vpop.f32.mrb[0].mxu0
    %796 = vmatprep.mubr.bf16.mxu0 0
    %797 = vmatmul.mubr.bf16.gmra.mrb[0].mxu0 %v734
    %v798 = vpop.f32.mrb[0].mxu0
    %v799 = vadd.f32 0.0, %v798
    %v800 = vpop.f32.mrb[0].mxu0
    %v801 = vpop.f32.mrb[0].mxu0
    %v802 = vadd.f32 0.0, %v801
    %v803 = vpop.f32.mrb[0].mxu0
    %804 = vmatprep.mubr.bf16.mxu0 0
    %805 = vmatmul.mubr.bf16.gmra.mrb[0].mxu0 %v737
    %v806 = vpop.f32.mrb[0].mxu0
    %v807 = vadd.f32 0.0, %v806
    %v808 = vpop.f32.mrb[0].mxu0
    %v809 = vpop.f32.mrb[0].mxu0
    %v810 = vadd.f32 0.0, %v809
    %v811 = vpop.f32.mrb[0].mxu0
    %812 = vdwg.mxu0
    %v813 = vlaneseq
    %v814 = vshrl.u32 %v813, 7
    %v815 = vadd.s32 %v814, 8
    %v816 = vadd.s32 %v814, 16
    %v817 = vadd.s32 %v814, 24
    %v818 = vadd.s32 %v814, 32
    %v819 = vadd.s32 %v814, 40
    %v820 = vadd.s32 %v814, 48
    %v821 = vadd.s32 %v814, 56
    %v822 = vadd.s32 %v814, 64
    %v823 = vadd.s32 %v814, 72
    %v824 = vlaneseq
    %v825 = vand.u32 %v824, 127
    %vm826 = vcmp.le.s32.totalorder %v825, %v814
    %vm827 = vcmp.le.s32.totalorder %v825, %v815
    %vm828 = vcmp.le.s32.totalorder %v825, %v816
    %vm829 = vcmp.le.s32.totalorder %v825, %v817
    %vm830 = vcmp.le.s32.totalorder %v825, %v818
    %vm831 = vcmp.le.s32.totalorder %v825, %v819
    %vm832 = vcmp.le.s32.totalorder %v825, %v820
    %vm833 = vcmp.le.s32.totalorder %v825, %v821
    %vm834 = vcmp.le.s32.totalorder %v825, %v822
    %vm835 = vcmp.le.s32.totalorder %v825, %v823
    %v836 = vsel %vm826, %v775, -1e+30
    %v837 = vsel %vm827, %v778, -1e+30
    %v838 = vsel %vm828, %v783, -1e+30
    %v839 = vsel %vm829, %v786, -1e+30
    %v840 = vsel %vm830, %v791, -1e+30
    %v841 = vsel %vm831, %v794, -1e+30
    %v842 = vsel %vm832, %v799, -1e+30
    %v843 = vsel %vm833, %v802, -1e+30
    %v844 = vsel %vm834, %v807, -1e+30
    %v845 = vsel %vm835, %v810, -1e+30
    %vm846 = vcmask 654336
    %v847 = vsel %vm846, %v836, -inf
    %848 = vmax.xlane.f32.xlu0 %v847
    %v849 = vpop.xlane.xlu0 %848
    %v850 = vsel %vm846, %v837, -inf
    %851 = vmax.xlane.f32.xlu0 %v850
    %v852 = vpop.xlane.xlu0 %851
    %v853 = vsel %vm846, %v838, -inf
    %854 = vmax.xlane.f32.xlu0 %v853
    %v855 = vpop.xlane.xlu0 %854
    %v856 = vsel %vm846, %v839, -inf
    %857 = vmax.xlane.f32.xlu0 %v856
    %v858 = vpop.xlane.xlu0 %857
    %v859 = vsel %vm846, %v840, -inf
    %860 = vmax.xlane.f32.xlu0 %v859
    %v861 = vpop.xlane.xlu0 %860
    %v862 = vsel %vm846, %v841, -inf
    %863 = vmax.xlane.f32.xlu0 %v862
    %v864 = vpop.xlane.xlu0 %863
    %v865 = vsel %vm846, %v842, -inf
    %866 = vmax.xlane.f32.xlu0 %v865
    %v867 = vpop.xlane.xlu0 %866
    %v868 = vsel %vm846, %v843, -inf
    %869 = vmax.xlane.f32.xlu0 %v868
    %v870 = vpop.xlane.xlu0 %869
    %v871 = vsel %vm846, %v844, -inf
    %872 = vmax.xlane.f32.xlu0 %v871
    %v873 = vpop.xlane.xlu0 %872
    %v874 = vsel %vm846, %v845, -inf
    %875 = vmax.xlane.f32.xlu0 %v874
    %v876 = vpop.xlane.xlu0 %875
    %v877 = vsub.f32 %v836, %v849
    %v878 = vsub.f32 %v837, %v852
    %v879 = vsub.f32 %v838, %v855
    %v880 = vsub.f32 %v839, %v858
    %v881 = vsub.f32 %v840, %v861
    %v882 = vsub.f32 %v841, %v864
    %v883 = vsub.f32 %v842, %v867
    %v884 = vsub.f32 %v843, %v870
    %v885 = vsub.f32 %v844, %v873
    %v886 = vsub.f32 %v845, %v876
    %v887 = vmul.f32 %v877, 1.442695
    %v888 = vpow.pop %v887
    %v889 = vmul.f32 %v878, 1.442695
    %v890 = vpow.pop %v889
    %v891 = vmul.f32 %v879, 1.442695
    %v892 = vpow.pop %v891
    %v893 = vmul.f32 %v880, 1.442695
    %v894 = vpow.pop %v893
    %v895 = vmul.f32 %v881, 1.442695
    %v896 = vpow.pop %v895
    %v897 = vmul.f32 %v882, 1.442695
    %v898 = vpow.pop %v897
    %v899 = vmul.f32 %v883, 1.442695
    %v900 = vpow.pop %v899
    %v901 = vmul.f32 %v884, 1.442695
    %v902 = vpow.pop %v901
    %v903 = vmul.f32 %v885, 1.442695
    %v904 = vpow.pop %v903
    %v905 = vmul.f32 %v886, 1.442695
    %v906 = vpow.pop %v905
    %v907 = vsel %vm846, %v888, 0.0
    %908 = vadd.xlane.f32.xlu0 %v907
    %v909 = vpop.xlane.xlu0 %908
    %v910 = vsel %vm846, %v890, 0.0
    %911 = vadd.xlane.f32.xlu0 %v910
    %v912 = vpop.xlane.xlu0 %911
    %v913 = vsel %vm846, %v892, 0.0
    %914 = vadd.xlane.f32.xlu0 %v913
    %v915 = vpop.xlane.xlu0 %914
    %v916 = vsel %vm846, %v894, 0.0
    %917 = vadd.xlane.f32.xlu0 %v916
    %v918 = vpop.xlane.xlu0 %917
    %v919 = vsel %vm846, %v896, 0.0
    %920 = vadd.xlane.f32.xlu0 %v919
    %v921 = vpop.xlane.xlu0 %920
    %v922 = vsel %vm846, %v898, 0.0
    %923 = vadd.xlane.f32.xlu0 %v922
    %v924 = vpop.xlane.xlu0 %923
    %v925 = vsel %vm846, %v900, 0.0
    %926 = vadd.xlane.f32.xlu0 %v925
    %v927 = vpop.xlane.xlu0 %926
    %v928 = vsel %vm846, %v902, 0.0
    %929 = vadd.xlane.f32.xlu0 %v928
    %v930 = vpop.xlane.xlu0 %929
    %v931 = vsel %vm846, %v904, 0.0
    %932 = vadd.xlane.f32.xlu0 %v931
    %v933 = vpop.xlane.xlu0 %932
    %v934 = vsel %vm846, %v906, 0.0
    %935 = vadd.xlane.f32.xlu0 %v934
    %v936 = vpop.xlane.xlu0 %935
    %v937 = vrcp.pop %v909
    %v938 = vrcp.pop %v912
    %v939 = vrcp.pop %v915
    %v940 = vrcp.pop %v918
    %v941 = vrcp.pop %v921
    %v942 = vrcp.pop %v924
    %v943 = vrcp.pop %v927
    %v944 = vrcp.pop %v930
    %v945 = vrcp.pop %v933
    %v946 = vrcp.pop %v936
    %v947 = vmul.f32 %v888, %v937
    %v948 = vmul.f32 %v890, %v938
    %v949 = vmul.f32 %v892, %v939
    %v950 = vmul.f32 %v894, %v940
    %v951 = vmul.f32 %v896, %v941
    %v952 = vmul.f32 %v898, %v942
    %v953 = vmul.f32 %v900, %v943
    %v954 = vmul.f32 %v902, %v944
    %v955 = vmul.f32 %v904, %v945
    %v956 = vmul.f32 %v906, %v946
    %v957 = vpack.c.bf16 %v948, %v947
    %v958 = vpack.c.bf16 %v950, %v949
    %v959 = vpack.c.bf16 %v952, %v951
    %v960 = vpack.c.bf16 %v954, %v953
    %v961 = vpack.c.bf16 %v956, %v955
    %v963 = vsel %vm846, %v957, 0
    %v966 = vsel %vm846, %v958, 0
    %v969 = vsel %vm846, %v959, 0
    %v972 = vsel %vm846, %v960, 0
    %v975 = vsel %vm846, %v961, 0
    %977 = vmatprep.subr.bf16.mxu0 0
    %978 = vmatpush1.bf16.msra.mxu0 %v727
    %979 = vmatprep.subr.bf16.mxu0 0
    %980 = vmatpush1.bf16.msra.mxu0 %v730
    %981 = vmatprep.subr.bf16.mxu0 0
    %982 = vmatpush1.bf16.msra.mxu0 %v733
    %983 = vmatprep.subr.bf16.mxu0 0
    %984 = vmatpush1.bf16.msra.mxu0 %v736
    %985 = vmatprep.subr.bf16.mxu0 0
    %986 = vmatpush1.bf16.msra.mxu0 %v739
    %987 = vmatprep.subr.bf16.mxu0 0
    %988 = vmatpush1.bf16.msra.mxu0 0
    %989 = vmatprep.subr.bf16.mxu0 0
    %990 = vmatpush1.bf16.msra.mxu0 0
    %991 = vmatprep.subr.bf16.mxu0 0
    %992 = vmatpush1.bf16.msra.mxu0 0
    %993 = vmatprep.subr.bf16.mxu0 0
    %994 = vmatpush1.bf16.msra.mxu0 0
    %995 = vmatprep.subr.bf16.mxu0 0
    %996 = vmatpush1.bf16.msra.mxu0 0
    %997 = vmatprep.subr.bf16.mxu0 0
    %998 = vmatpush1.bf16.msra.mxu0 0
    %999 = vmatprep.subr.bf16.mxu0 0
    %1000 = vmatpush1.bf16.msra.mxu0 0
    %1001 = vmatprep.subr.bf16.mxu0 0
    %1002 = vmatpush1.bf16.msra.mxu0 0
    %1003 = vmatprep.subr.bf16.mxu0 0
    %1004 = vmatpush1.bf16.msra.mxu0 0
    %1005 = vmatprep.subr.bf16.mxu0 0
    %1006 = vmatpush1.bf16.msra.mxu0 0
    %1007 = vmatprep.subr.bf16.mxu0 0
    %1008 = vmatpush1.bf16.msra.mxu0 0
    %1009 = vmatprep.mubr.bf16.mxu0 0
    %1010 = vmatmul.mubr.bf16.gmra.mrb[0].mxu0 %v963
    %v1011 = vpop.f32.mrb[0].mxu0
    %v1012 = vadd.f32 0.0, %v1011
    %v1013 = vpop.f32.mrb[0].mxu0
    %v1014 = vpop.f32.mrb[0].mxu0
    %v1015 = vadd.f32 0.0, %v1014
    %v1016 = vpop.f32.mrb[0].mxu0
    %1017 = vmatprep.mubr.bf16.mxu0 0
    %1018 = vmatmul.mubr.bf16.gmra.mrb[0].mxu0 %v966
    %v1019 = vpop.f32.mrb[0].mxu0
    %v1020 = vadd.f32 0.0, %v1019
    %v1021 = vpop.f32.mrb[0].mxu0
    %v1022 = vpop.f32.mrb[0].mxu0
    %v1023 = vadd.f32 0.0, %v1022
    %v1024 = vpop.f32.mrb[0].mxu0
    %1025 = vmatprep.mubr.bf16.mxu0 0
    %1026 = vmatmul.mubr.bf16.gmra.mrb[0].mxu0 %v969
    %v1027 = vpop.f32.mrb[0].mxu0
    %v1028 = vadd.f32 0.0, %v1027
    %v1029 = vpop.f32.mrb[0].mxu0
    %v1030 = vpop.f32.mrb[0].mxu0
    %v1031 = vadd.f32 0.0, %v1030
    %v1032 = vpop.f32.mrb[0].mxu0
    %1033 = vmatprep.mubr.bf16.mxu0 0
    %1034 = vmatmul.mubr.bf16.gmra.mrb[0].mxu0 %v972
    %v1035 = vpop.f32.mrb[0].mxu0
    %v1036 = vadd.f32 0.0, %v1035
    %v1037 = vpop.f32.mrb[0].mxu0
    %v1038 = vpop.f32.mrb[0].mxu0
    %v1039 = vadd.f32 0.0, %v1038
    %v1040 = vpop.f32.mrb[0].mxu0
    %1041 = vmatprep.mubr.bf16.mxu0 0
    %1042 = vmatmul.mubr.bf16.gmra.mrb[0].mxu0 %v975
    %v1043 = vpop.f32.mrb[0].mxu0
    %v1044 = vadd.f32 0.0, %v1043
    %v1045 = vpop.f32.mrb[0].mxu0
    %v1046 = vpop.f32.mrb[0].mxu0
    %v1047 = vadd.f32 0.0, %v1046
    %v1048 = vpop.f32.mrb[0].mxu0
    %1049 = vdwg.mxu0
    %v1050 = vpack.c.bf16 %v1015, %v1012
    %v1051 = vpack.c.bf16 %v1023, %v1020
    %v1052 = vpack.c.bf16 %v1031, %v1028
    %v1053 = vpack.c.bf16 %v1039, %v1036
    %v1054 = vpack.c.bf16 %v1047, %v1044
    %v1055 = vld [vmem:[%s8] sm:$0xf]
    %v1056 = vld [vmem:[%s8 + $0x4] sm:$0xf]
    %v1057 = vld [vmem:[%s8 + $0x8] sm:$0xf]
    %v1058 = vld [vmem:[%s8 + $0xc] sm:$0xf]
    %v1059 = vld [vmem:[%s8 + $0x10] sm:$0xf]
    %v1060 = vld [vmem:[%s8 + $0x14] sm:$0xf]
    %v1061 = vld [vmem:[%s8 + $0x18] sm:$0xf]
    %v1062 = vld [vmem:[%s8 + $0x1c] sm:$0xf]
    %v1063 = vld [vmem:[%s8 + $0x20] sm:$0xf]
    %v1064 = vld [vmem:[%s8 + $0x24] sm:$0xf]
    %v1065 = vld [vmem:[%s8 + $0x28] sm:$0xf]
    %v1066 = vld [vmem:[%s8 + $0x2c] sm:$0xf]
    %v1067 = vld [vmem:[%s8 + $0x30] sm:$0xf]
    %v1068 = vld [vmem:[%s8 + $0x34] sm:$0xf]
    %v1069 = vld [vmem:[%s8 + $0x38] sm:$0xf]
    %v1070 = vld [vmem:[%s8 + $0x3c] sm:$0xf]
    %v1087 = vunpack.c.l.b16 %v1055
    %v1088 = vunpack.c.l.b16 %v1056
    %v1089 = vunpack.c.l.b16 %v1057
    %v1090 = vunpack.c.l.b16 %v1058
    %v1091 = vunpack.c.l.b16 %v1059
    %v1092 = vunpack.c.l.b16 %v1060
    %v1093 = vunpack.c.l.b16 %v1061
    %v1094 = vunpack.c.l.b16 %v1062
    %v1095 = vunpack.c.l.b16 %v1063
    %v1096 = vunpack.c.l.b16 %v1064
    %v1097 = vunpack.c.l.b16 %v1065
    %v1098 = vunpack.c.l.b16 %v1066
    %v1099 = vunpack.c.l.b16 %v1067
    %v1100 = vunpack.c.l.b16 %v1068
    %v1101 = vunpack.c.l.b16 %v1069
    %v1102 = vunpack.c.l.b16 %v1070
    %v1103 = vpack.c.b16 %v1088, %v1087
    %v1104 = vpack.c.b16 %v1090, %v1089
    %v1105 = vpack.c.b16 %v1092, %v1091
    %v1106 = vpack.c.b16 %v1094, %v1093
    %v1107 = vpack.c.b16 %v1096, %v1095
    %v1108 = vpack.c.b16 %v1098, %v1097
    %v1109 = vpack.c.b16 %v1100, %v1099
    %v1110 = vpack.c.b16 %v1102, %v1101
    %1119 = vmatprep.subr.bf16.mxu0 0
    %1120 = vmatpush1.bf16.msra.mxu0 %v1103
    %1121 = vmatprep.subr.bf16.mxu0 0
    %1122 = vmatpush1.bf16.msra.mxu0 %v1104
    %1123 = vmatprep.subr.bf16.mxu0 0
    %1124 = vmatpush1.bf16.msra.mxu0 %v1105
    %1125 = vmatprep.subr.bf16.mxu0 0
    %1126 = vmatpush1.bf16.msra.mxu0 %v1106
    %1127 = vmatprep.subr.bf16.mxu0 0
    %1128 = vmatpush1.bf16.msra.mxu0 %v1107
    %1129 = vmatprep.subr.bf16.mxu0 0
    %1130 = vmatpush1.bf16.msra.mxu0 %v1108
    %1131 = vmatprep.subr.bf16.mxu0 0
    %1132 = vmatpush1.bf16.msra.mxu0 %v1109
    %1133 = vmatprep.subr.bf16.mxu0 0
    %1134 = vmatpush1.bf16.msra.mxu0 %v1110
    %1135 = vmatprep.subr.bf16.mxu0 0
    %1136 = vmatpush1.bf16.msra.mxu0 0
    %1137 = vmatprep.subr.bf16.mxu0 0
    %1138 = vmatpush1.bf16.msra.mxu0 0
    %1139 = vmatprep.subr.bf16.mxu0 0
    %1140 = vmatpush1.bf16.msra.mxu0 0
    %1141 = vmatprep.subr.bf16.mxu0 0
    %1142 = vmatpush1.bf16.msra.mxu0 0
    %1143 = vmatprep.subr.bf16.mxu0 0
    %1144 = vmatpush1.bf16.msra.mxu0 0
    %1145 = vmatprep.subr.bf16.mxu0 0
    %1146 = vmatpush1.bf16.msra.mxu0 0
    %1147 = vmatprep.subr.bf16.mxu0 0
    %1148 = vmatpush1.bf16.msra.mxu0 0
    %1149 = vmatprep.subr.bf16.mxu0 0
    %1150 = vmatpush1.bf16.msra.mxu0 0
    %1151 = vmatprep.mubr.bf16.mxu0 0
    %1152 = vmatmul.mubr.bf16.gmra.mrb[0].mxu0 %v1050
    %v1153 = vpop.f32.mrb[0].mxu0
    %v1154 = vadd.f32 0.0, %v1153
    %v1155 = vpop.f32.mrb[0].mxu0
    %v1156 = vpop.f32.mrb[0].mxu0
    %v1157 = vadd.f32 0.0, %v1156
    %v1158 = vpop.f32.mrb[0].mxu0
    %1159 = vmatprep.mubr.bf16.mxu0 0
    %1160 = vmatmul.mubr.bf16.gmra.mrb[0].mxu0 %v1051
    %v1161 = vpop.f32.mrb[0].mxu0
    %v1162 = vadd.f32 0.0, %v1161
    %v1163 = vpop.f32.mrb[0].mxu0
    %v1164 = vpop.f32.mrb[0].mxu0
    %v1165 = vadd.f32 0.0, %v1164
    %v1166 = vpop.f32.mrb[0].mxu0
    %1167 = vmatprep.mubr.bf16.mxu0 0
    %1168 = vmatmul.mubr.bf16.gmra.mrb[0].mxu0 %v1052
    %v1169 = vpop.f32.mrb[0].mxu0
    %v1170 = vadd.f32 0.0, %v1169
    %v1171 = vpop.f32.mrb[0].mxu0
    %v1172 = vpop.f32.mrb[0].mxu0
    %v1173 = vadd.f32 0.0, %v1172
    %v1174 = vpop.f32.mrb[0].mxu0
    %1175 = vmatprep.mubr.bf16.mxu0 0
    %1176 = vmatmul.mubr.bf16.gmra.mrb[0].mxu0 %v1053
    %v1177 = vpop.f32.mrb[0].mxu0
    %v1178 = vadd.f32 0.0, %v1177
    %v1179 = vpop.f32.mrb[0].mxu0
    %v1180 = vpop.f32.mrb[0].mxu0
    %v1181 = vadd.f32 0.0, %v1180
    %v1182 = vpop.f32.mrb[0].mxu0
    %1183 = vmatprep.mubr.bf16.mxu0 0
    %1184 = vmatmul.mubr.bf16.gmra.mrb[0].mxu0 %v1054
    %v1185 = vpop.f32.mrb[0].mxu0
    %v1186 = vadd.f32 0.0, %v1185
    %v1187 = vpop.f32.mrb[0].mxu0
    %v1188 = vpop.f32.mrb[0].mxu0
    %v1189 = vadd.f32 0.0, %v1188
    %v1190 = vpop.f32.mrb[0].mxu0
    %1191 = vdwg.mxu0
    %v1192 = vadd.f32 %v306, %v1154
    %v1193 = vadd.f32 %v307, %v1157
    %v1194 = vadd.f32 %v308, %v1162
    %v1195 = vadd.f32 %v309, %v1165
    %v1196 = vadd.f32 %v310, %v1170
    %v1197 = vadd.f32 %v311, %v1173
    %v1198 = vadd.f32 %v312, %v1178
    %v1199 = vadd.f32 %v313, %v1181
    %v1200 = vadd.f32 %v314, %v1186
    %v1201 = vadd.f32 %v315, %v1189
    %v1202 = vld [vmem:[%s12] sm:$0x1]
    %v1203 = vmul.f32 %v1192, %v1192
    %v1204 = vmul.f32 %v1193, %v1193
    %v1205 = vmul.f32 %v1194, %v1194
    %v1206 = vmul.f32 %v1195, %v1195
    %v1207 = vmul.f32 %v1196, %v1196
    %v1208 = vmul.f32 %v1197, %v1197
    %v1209 = vmul.f32 %v1198, %v1198
    %v1210 = vmul.f32 %v1199, %v1199
    %v1211 = vmul.f32 %v1200, %v1200
    %v1212 = vmul.f32 %v1201, %v1201
    %1213 = vadd.xlane.f32.xlu0 %v1203
    %v1214 = vpop.xlane.xlu0 %1213
    %1215 = vadd.xlane.f32.xlu0 %v1204
    %v1216 = vpop.xlane.xlu0 %1215
    %1217 = vadd.xlane.f32.xlu0 %v1205
    %v1218 = vpop.xlane.xlu0 %1217
    %1219 = vadd.xlane.f32.xlu0 %v1206
    %v1220 = vpop.xlane.xlu0 %1219
    %1221 = vadd.xlane.f32.xlu0 %v1207
    %v1222 = vpop.xlane.xlu0 %1221
    %1223 = vadd.xlane.f32.xlu0 %v1208
    %v1224 = vpop.xlane.xlu0 %1223
    %1225 = vadd.xlane.f32.xlu0 %v1209
    %v1226 = vpop.xlane.xlu0 %1225
    %1227 = vadd.xlane.f32.xlu0 %v1210
    %v1228 = vpop.xlane.xlu0 %1227
    %1229 = vadd.xlane.f32.xlu0 %v1211
    %v1230 = vpop.xlane.xlu0 %1229
    %1231 = vadd.xlane.f32.xlu0 %v1212
    %v1232 = vpop.xlane.xlu0 %1231
    %v1233 = vmul.f32 %v1214, %v347
    %v1234 = vmul.f32 %v1216, %v347
    %v1235 = vmul.f32 %v1218, %v347
    %v1236 = vmul.f32 %v1220, %v347
    %v1237 = vmul.f32 %v1222, %v347
    %v1238 = vmul.f32 %v1224, %v347
    %v1239 = vmul.f32 %v1226, %v347
    %v1240 = vmul.f32 %v1228, %v347
    %v1241 = vmul.f32 %v1230, %v347
    %v1242 = vmul.f32 %v1232, %v347
    %v1243 = vadd.f32 %v1233, 1e-06
    %v1244 = vadd.f32 %v1234, 1e-06
    %v1245 = vadd.f32 %v1235, 1e-06
    %v1246 = vadd.f32 %v1236, 1e-06
    %v1247 = vadd.f32 %v1237, 1e-06
    %v1248 = vadd.f32 %v1238, 1e-06
    %v1249 = vadd.f32 %v1239, 1e-06
    %v1250 = vadd.f32 %v1240, 1e-06
    %v1251 = vadd.f32 %v1241, 1e-06
    %v1252 = vadd.f32 %v1242, 1e-06
    %v1253 = vrsqrt.pop %v1243
    %v1254 = vrsqrt.pop %v1244
    %v1255 = vrsqrt.pop %v1245
    %v1256 = vrsqrt.pop %v1246
    %v1257 = vrsqrt.pop %v1247
    %v1258 = vrsqrt.pop %v1248
    %v1259 = vrsqrt.pop %v1249
    %v1260 = vrsqrt.pop %v1250
    %v1261 = vrsqrt.pop %v1251
    %v1262 = vrsqrt.pop %v1252
    %v1263 = vmul.f32 %v1192, %v1253
    %v1264 = vmul.f32 %v1193, %v1254
    %v1265 = vmul.f32 %v1194, %v1255
    %v1266 = vmul.f32 %v1195, %v1256
    %v1267 = vmul.f32 %v1196, %v1257
    %v1268 = vmul.f32 %v1197, %v1258
    %v1269 = vmul.f32 %v1198, %v1259
    %v1270 = vmul.f32 %v1199, %v1260
    %v1271 = vmul.f32 %v1200, %v1261
    %v1272 = vmul.f32 %v1201, %v1262
    %v1274 = vlaneseq
    %v1275 = vshrl.u32 %v1274, 7
    %v1276 = vsub.s32 0, %v1275
    %v1277 = vrot.slane %v1202, %v1276
    %v1279 = vmul.f32 %v1263, %v1277
    %v1280 = vmul.f32 %v1264, %v1277
    %v1281 = vmul.f32 %v1265, %v1277
    %v1282 = vmul.f32 %v1266, %v1277
    %v1283 = vmul.f32 %v1267, %v1277
    %v1284 = vmul.f32 %v1268, %v1277
    %v1285 = vmul.f32 %v1269, %v1277
    %v1286 = vmul.f32 %v1270, %v1277
    %v1287 = vmul.f32 %v1271, %v1277
    %v1288 = vmul.f32 %v1272, %v1277
    %v1289 = vpack.c.bf16 %v1280, %v1279
    %v1290 = vpack.c.bf16 %v1282, %v1281
    %v1291 = vpack.c.bf16 %v1284, %v1283
    %v1292 = vpack.c.bf16 %v1286, %v1285
    %v1293 = vpack.c.bf16 %v1288, %v1287
    %v1294 = vld [vmem:[%s9] sm:$0xff]
    %v1295 = vld [vmem:[%s9 + $0x8] sm:$0xff]
    %v1296 = vld [vmem:[%s9 + $0x10] sm:$0xff]
    %v1297 = vld [vmem:[%s9 + $0x18] sm:$0xff]
    %v1298 = vld [vmem:[%s9 + $0x20] sm:$0xff]
    %v1299 = vld [vmem:[%s9 + $0x28] sm:$0xff]
    %v1300 = vld [vmem:[%s9 + $0x30] sm:$0xff]
    %v1301 = vld [vmem:[%s9 + $0x38] sm:$0xff]
    %v1302 = vld [vmem:[%s9 + $0x40] sm:$0xff]
    %v1303 = vld [vmem:[%s9 + $0x48] sm:$0xff]
    %v1304 = vld [vmem:[%s9 + $0x50] sm:$0xff]
    %v1305 = vld [vmem:[%s9 + $0x58] sm:$0xff]
    %v1306 = vld [vmem:[%s9 + $0x60] sm:$0xff]
    %v1307 = vld [vmem:[%s9 + $0x68] sm:$0xff]
    %v1308 = vld [vmem:[%s9 + $0x70] sm:$0xff]
    %v1309 = vld [vmem:[%s9 + $0x78] sm:$0xff]
    %v1310 = vld [vmem:[%s9 + $0x80] sm:$0xff]
    %v1311 = vld [vmem:[%s9 + $0x88] sm:$0xff]
    %v1312 = vld [vmem:[%s9 + $0x90] sm:$0xff]
    %v1313 = vld [vmem:[%s9 + $0x98] sm:$0xff]
    %v1314 = vld [vmem:[%s9 + $0xa0] sm:$0xff]
    %v1315 = vld [vmem:[%s9 + $0xa8] sm:$0xff]
    %v1316 = vld [vmem:[%s9 + $0xb0] sm:$0xff]
    %v1317 = vld [vmem:[%s9 + $0xb8] sm:$0xff]
    %v1318 = vld [vmem:[%s9 + $0xc0] sm:$0xff]
    %v1319 = vld [vmem:[%s9 + $0xc8] sm:$0xff]
    %v1320 = vld [vmem:[%s9 + $0xd0] sm:$0xff]
    %v1321 = vld [vmem:[%s9 + $0xd8] sm:$0xff]
    %v1322 = vld [vmem:[%s9 + $0xe0] sm:$0xff]
    %v1323 = vld [vmem:[%s9 + $0xe8] sm:$0xff]
    %v1324 = vld [vmem:[%s9 + $0xf0] sm:$0xff]
    %v1325 = vld [vmem:[%s9 + $0xf8] sm:$0xff]
    %v1358 = vunpack.c.l.b16 %v1294
    %v1359 = vunpack.c.h.b16 %v1294
    %v1360 = vunpack.c.l.b16 %v1295
    %v1361 = vunpack.c.h.b16 %v1295
    %v1362 = vunpack.c.l.b16 %v1296
    %v1363 = vunpack.c.h.b16 %v1296
    %v1364 = vunpack.c.l.b16 %v1297
    %v1365 = vunpack.c.h.b16 %v1297
    %v1366 = vunpack.c.l.b16 %v1298
    %v1367 = vunpack.c.h.b16 %v1298
    %v1368 = vunpack.c.l.b16 %v1299
    %v1369 = vunpack.c.h.b16 %v1299
    %v1370 = vunpack.c.l.b16 %v1300
    %v1371 = vunpack.c.h.b16 %v1300
    %v1372 = vunpack.c.l.b16 %v1301
    %v1373 = vunpack.c.h.b16 %v1301
    %v1374 = vunpack.c.l.b16 %v1302
    %v1375 = vunpack.c.h.b16 %v1302
    %v1376 = vunpack.c.l.b16 %v1303
    %v1377 = vunpack.c.h.b16 %v1303
    %v1378 = vunpack.c.l.b16 %v1304
    %v1379 = vunpack.c.h.b16 %v1304
    %v1380 = vunpack.c.l.b16 %v1305
    %v1381 = vunpack.c.h.b16 %v1305
    %v1382 = vunpack.c.l.b16 %v1306
    %v1383 = vunpack.c.h.b16 %v1306
    %v1384 = vunpack.c.l.b16 %v1307
    %v1385 = vunpack.c.h.b16 %v1307
    %v1386 = vunpack.c.l.b16 %v1308
    %v1387 = vunpack.c.h.b16 %v1308
    %v1388 = vunpack.c.l.b16 %v1309
    %v1389 = vunpack.c.h.b16 %v1309
    %v1390 = vunpack.c.l.b16 %v1310
    %v1391 = vunpack.c.h.b16 %v1310
    %v1392 = vunpack.c.l.b16 %v1311
    %v1393 = vunpack.c.h.b16 %v1311
    %v1394 = vunpack.c.l.b16 %v1312
    %v1395 = vunpack.c.h.b16 %v1312
    %v1396 = vunpack.c.l.b16 %v1313
    %v1397 = vunpack.c.h.b16 %v1313
    %v1398 = vunpack.c.l.b16 %v1314
    %v1399 = vunpack.c.h.b16 %v1314
    %v1400 = vunpack.c.l.b16 %v1315
    %v1401 = vunpack.c.h.b16 %v1315
    %v1402 = vunpack.c.l.b16 %v1316
    %v1403 = vunpack.c.h.b16 %v1316
    %v1404 = vunpack.c.l.b16 %v1317
    %v1405 = vunpack.c.h.b16 %v1317
    %v1406 = vunpack.c.l.b16 %v1318
    %v1407 = vunpack.c.h.b16 %v1318
    %v1408 = vunpack.c.l.b16 %v1319
    %v1409 = vunpack.c.h.b16 %v1319
    %v1410 = vunpack.c.l.b16 %v1320
    %v1411 = vunpack.c.h.b16 %v1320
    %v1412 = vunpack.c.l.b16 %v1321
    %v1413 = vunpack.c.h.b16 %v1321
    %v1414 = vunpack.c.l.b16 %v1322
    %v1415 = vunpack.c.h.b16 %v1322
    %v1416 = vunpack.c.l.b16 %v1323
    %v1417 = vunpack.c.h.b16 %v1323
    %v1418 = vunpack.c.l.b16 %v1324
    %v1419 = vunpack.c.h.b16 %v1324
    %v1420 = vunpack.c.l.b16 %v1325
    %v1421 = vunpack.c.h.b16 %v1325
    %v1422 = vpack.c.b16 %v1362, %v1358
    %v1423 = vpack.c.b16 %v1363, %v1359
    %v1424 = vpack.c.b16 %v1364, %v1360
    %v1425 = vpack.c.b16 %v1365, %v1361
    %v1426 = vpack.c.b16 %v1370, %v1366
    %v1427 = vpack.c.b16 %v1371, %v1367
    %v1428 = vpack.c.b16 %v1372, %v1368
    %v1429 = vpack.c.b16 %v1373, %v1369
    %v1430 = vpack.c.b16 %v1378, %v1374
    %v1431 = vpack.c.b16 %v1379, %v1375
    %v1432 = vpack.c.b16 %v1380, %v1376
    %v1433 = vpack.c.b16 %v1381, %v1377
    %v1434 = vpack.c.b16 %v1386, %v1382
    %v1435 = vpack.c.b16 %v1387, %v1383
    %v1436 = vpack.c.b16 %v1388, %v1384
    %v1437 = vpack.c.b16 %v1389, %v1385
    %v1438 = vpack.c.b16 %v1394, %v1390
    %v1439 = vpack.c.b16 %v1395, %v1391
    %v1440 = vpack.c.b16 %v1396, %v1392
    %v1441 = vpack.c.b16 %v1397, %v1393
    %v1442 = vpack.c.b16 %v1402, %v1398
    %v1443 = vpack.c.b16 %v1403, %v1399
    %v1444 = vpack.c.b16 %v1404, %v1400
    %v1445 = vpack.c.b16 %v1405, %v1401
    %v1446 = vpack.c.b16 %v1410, %v1406
    %v1447 = vpack.c.b16 %v1411, %v1407
    %v1448 = vpack.c.b16 %v1412, %v1408
    %v1449 = vpack.c.b16 %v1413, %v1409
    %v1450 = vpack.c.b16 %v1418, %v1414
    %v1451 = vpack.c.b16 %v1419, %v1415
    %v1452 = vpack.c.b16 %v1420, %v1416
    %v1453 = vpack.c.b16 %v1421, %v1417
    %1486 = vmatprep.subr.bf16.mxu0 %v1423
    %1487 = vmatpush1.bf16.msra.mxu0 %v1422
    %1488 = vmatprep.subr.bf16.mxu0 %v1427
    %1489 = vmatpush1.bf16.msra.mxu0 %v1426
    %1490 = vmatprep.subr.bf16.mxu0 %v1431
    %1491 = vmatpush1.bf16.msra.mxu0 %v1430
    %1492 = vmatprep.subr.bf16.mxu0 %v1435
    %1493 = vmatpush1.bf16.msra.mxu0 %v1434
    %1494 = vmatprep.subr.bf16.mxu0 %v1439
    %1495 = vmatpush1.bf16.msra.mxu0 %v1438
    %1496 = vmatprep.subr.bf16.mxu0 %v1443
    %1497 = vmatpush1.bf16.msra.mxu0 %v1442
    %1498 = vmatprep.subr.bf16.mxu0 %v1447
    %1499 = vmatpush1.bf16.msra.mxu0 %v1446
    %1500 = vmatprep.subr.bf16.mxu0 %v1451
    %1501 = vmatpush1.bf16.msra.mxu0 %v1450
    %1502 = vmatprep.subr.bf16.mxu0 0
    %1503 = vmatpush1.bf16.msra.mxu0 0
    %1504 = vmatprep.subr.bf16.mxu0 0
    %1505 = vmatpush1.bf16.msra.mxu0 0
    %1506 = vmatprep.subr.bf16.mxu0 0
    %1507 = vmatpush1.bf16.msra.mxu0 0
    %1508 = vmatprep.subr.bf16.mxu0 0
    %1509 = vmatpush1.bf16.msra.mxu0 0
    %1510 = vmatprep.subr.bf16.mxu0 0
    %1511 = vmatpush1.bf16.msra.mxu0 0
    %1512 = vmatprep.subr.bf16.mxu0 0
    %1513 = vmatpush1.bf16.msra.mxu0 0
    %1514 = vmatprep.subr.bf16.mxu0 0
    %1515 = vmatpush1.bf16.msra.mxu0 0
    %1516 = vmatprep.subr.bf16.mxu0 0
    %1517 = vmatpush1.bf16.msra.mxu0 0
    %1518 = vmatprep.mubr.bf16.mxu0 0
    %1519 = vmatmul.mubr.bf16.gmra.mrb[0].mxu0 %v1289
    %v1520 = vpop.f32.mrb[0].mxu0
    %v1521 = vadd.f32 0.0, %v1520
    %v1522 = vpop.f32.mrb[0].mxu0
    %v1523 = vadd.f32 0.0, %v1522
    %v1524 = vpop.f32.mrb[0].mxu0
    %v1525 = vadd.f32 0.0, %v1524
    %v1526 = vpop.f32.mrb[0].mxu0
    %v1527 = vadd.f32 0.0, %v1526
    %1528 = vmatprep.mubr.bf16.mxu0 0
    %1529 = vmatmul.mubr.bf16.gmra.mrb[0].mxu0 %v1290
    %v1530 = vpop.f32.mrb[0].mxu0
    %v1531 = vadd.f32 0.0, %v1530
    %v1532 = vpop.f32.mrb[0].mxu0
    %v1533 = vadd.f32 0.0, %v1532
    %v1534 = vpop.f32.mrb[0].mxu0
    %v1535 = vadd.f32 0.0, %v1534
    %v1536 = vpop.f32.mrb[0].mxu0
    %v1537 = vadd.f32 0.0, %v1536
    %1538 = vmatprep.mubr.bf16.mxu0 0
    %1539 = vmatmul.mubr.bf16.gmra.mrb[0].mxu0 %v1291
    %v1540 = vpop.f32.mrb[0].mxu0
    %v1541 = vadd.f32 0.0, %v1540
    %v1542 = vpop.f32.mrb[0].mxu0
    %v1543 = vadd.f32 0.0, %v1542
    %v1544 = vpop.f32.mrb[0].mxu0
    %v1545 = vadd.f32 0.0, %v1544
    %v1546 = vpop.f32.mrb[0].mxu0
    %v1547 = vadd.f32 0.0, %v1546
    %1548 = vmatprep.mubr.bf16.mxu0 0
    %1549 = vmatmul.mubr.bf16.gmra.mrb[0].mxu0 %v1292
    %v1550 = vpop.f32.mrb[0].mxu0
    %v1551 = vadd.f32 0.0, %v1550
    %v1552 = vpop.f32.mrb[0].mxu0
    %v1553 = vadd.f32 0.0, %v1552
    %v1554 = vpop.f32.mrb[0].mxu0
    %v1555 = vadd.f32 0.0, %v1554
    %v1556 = vpop.f32.mrb[0].mxu0
    %v1557 = vadd.f32 0.0, %v1556
    %1558 = vmatprep.mubr.bf16.mxu0 0
    %1559 = vmatmul.mubr.bf16.gmra.mrb[0].mxu0 %v1293
    %v1560 = vpop.f32.mrb[0].mxu0
    %v1561 = vadd.f32 0.0, %v1560
    %v1562 = vpop.f32.mrb[0].mxu0
    %v1563 = vadd.f32 0.0, %v1562
    %v1564 = vpop.f32.mrb[0].mxu0
    %v1565 = vadd.f32 0.0, %v1564
    %v1566 = vpop.f32.mrb[0].mxu0
    %v1567 = vadd.f32 0.0, %v1566
    %1568 = vdwg.mxu0
    %1569 = vmatprep.subr.bf16.mxu0 %v1425
    %1570 = vmatpush1.bf16.msra.mxu0 %v1424
    %1571 = vmatprep.subr.bf16.mxu0 %v1429
    %1572 = vmatpush1.bf16.msra.mxu0 %v1428
    %1573 = vmatprep.subr.bf16.mxu0 %v1433
    %1574 = vmatpush1.bf16.msra.mxu0 %v1432
    %1575 = vmatprep.subr.bf16.mxu0 %v1437
    %1576 = vmatpush1.bf16.msra.mxu0 %v1436
    %1577 = vmatprep.subr.bf16.mxu0 %v1441
    %1578 = vmatpush1.bf16.msra.mxu0 %v1440
    %1579 = vmatprep.subr.bf16.mxu0 %v1445
    %1580 = vmatpush1.bf16.msra.mxu0 %v1444
    %1581 = vmatprep.subr.bf16.mxu0 %v1449
    %1582 = vmatpush1.bf16.msra.mxu0 %v1448
    %1583 = vmatprep.subr.bf16.mxu0 %v1453
    %1584 = vmatpush1.bf16.msra.mxu0 %v1452
    %1585 = vmatprep.subr.bf16.mxu0 0
    %1586 = vmatpush1.bf16.msra.mxu0 0
    %1587 = vmatprep.subr.bf16.mxu0 0
    %1588 = vmatpush1.bf16.msra.mxu0 0
    %1589 = vmatprep.subr.bf16.mxu0 0
    %1590 = vmatpush1.bf16.msra.mxu0 0
    %1591 = vmatprep.subr.bf16.mxu0 0
    %1592 = vmatpush1.bf16.msra.mxu0 0
    %1593 = vmatprep.subr.bf16.mxu0 0
    %1594 = vmatpush1.bf16.msra.mxu0 0
    %1595 = vmatprep.subr.bf16.mxu0 0
    %1596 = vmatpush1.bf16.msra.mxu0 0
    %1597 = vmatprep.subr.bf16.mxu0 0
    %1598 = vmatpush1.bf16.msra.mxu0 0
    %1599 = vmatprep.subr.bf16.mxu0 0
    %1600 = vmatpush1.bf16.msra.mxu0 0
    %1601 = vmatprep.mubr.bf16.mxu0 0
    %1602 = vmatmul.mubr.bf16.gmra.mrb[0].mxu0 %v1289
    %v1603 = vpop.f32.mrb[0].mxu0
    %v1604 = vadd.f32 0.0, %v1603
    %v1605 = vpop.f32.mrb[0].mxu0
    %v1606 = vadd.f32 0.0, %v1605
    %v1607 = vpop.f32.mrb[0].mxu0
    %v1608 = vadd.f32 0.0, %v1607
    %v1609 = vpop.f32.mrb[0].mxu0
    %v1610 = vadd.f32 0.0, %v1609
    %1611 = vmatprep.mubr.bf16.mxu0 0
    %1612 = vmatmul.mubr.bf16.gmra.mrb[0].mxu0 %v1290
    %v1613 = vpop.f32.mrb[0].mxu0
    %v1614 = vadd.f32 0.0, %v1613
    %v1615 = vpop.f32.mrb[0].mxu0
    %v1616 = vadd.f32 0.0, %v1615
    %v1617 = vpop.f32.mrb[0].mxu0
    %v1618 = vadd.f32 0.0, %v1617
    %v1619 = vpop.f32.mrb[0].mxu0
    %v1620 = vadd.f32 0.0, %v1619
    %1621 = vmatprep.mubr.bf16.mxu0 0
    %1622 = vmatmul.mubr.bf16.gmra.mrb[0].mxu0 %v1291
    %v1623 = vpop.f32.mrb[0].mxu0
    %v1624 = vadd.f32 0.0, %v1623
    %v1625 = vpop.f32.mrb[0].mxu0
    %v1626 = vadd.f32 0.0, %v1625
    %v1627 = vpop.f32.mrb[0].mxu0
    %v1628 = vadd.f32 0.0, %v1627
    %v1629 = vpop.f32.mrb[0].mxu0
    %v1630 = vadd.f32 0.0, %v1629
    %1631 = vmatprep.mubr.bf16.mxu0 0
    %1632 = vmatmul.mubr.bf16.gmra.mrb[0].mxu0 %v1292
    %v1633 = vpop.f32.mrb[0].mxu0
    %v1634 = vadd.f32 0.0, %v1633
    %v1635 = vpop.f32.mrb[0].mxu0
    %v1636 = vadd.f32 0.0, %v1635
    %v1637 = vpop.f32.mrb[0].mxu0
    %v1638 = vadd.f32 0.0, %v1637
    %v1639 = vpop.f32.mrb[0].mxu0
    %v1640 = vadd.f32 0.0, %v1639
    %1641 = vmatprep.mubr.bf16.mxu0 0
    %1642 = vmatmul.mubr.bf16.gmra.mrb[0].mxu0 %v1293
    %v1643 = vpop.f32.mrb[0].mxu0
    %v1644 = vadd.f32 0.0, %v1643
    %v1645 = vpop.f32.mrb[0].mxu0
    %v1646 = vadd.f32 0.0, %v1645
    %v1647 = vpop.f32.mrb[0].mxu0
    %v1648 = vadd.f32 0.0, %v1647
    %v1649 = vpop.f32.mrb[0].mxu0
    %v1650 = vadd.f32 0.0, %v1649
    %1651 = vdwg.mxu0
    %v1652 = vxor.u32 %v1521, 2147483648
    %v1653 = vxor.u32 %v1523, 2147483648
    %v1654 = vxor.u32 %v1525, 2147483648
    %v1655 = vxor.u32 %v1527, 2147483648
    %v1656 = vxor.u32 %v1531, 2147483648
    %v1657 = vxor.u32 %v1533, 2147483648
    %v1658 = vxor.u32 %v1535, 2147483648
    %v1659 = vxor.u32 %v1537, 2147483648
    %v1660 = vxor.u32 %v1541, 2147483648
    %v1661 = vxor.u32 %v1543, 2147483648
    %v1662 = vxor.u32 %v1545, 2147483648
    %v1663 = vxor.u32 %v1547, 2147483648
    %v1664 = vxor.u32 %v1551, 2147483648
    %v1665 = vxor.u32 %v1553, 2147483648
    %v1666 = vxor.u32 %v1555, 2147483648
    %v1667 = vxor.u32 %v1557, 2147483648
    %v1668 = vxor.u32 %v1561, 2147483648
    %v1669 = vxor.u32 %v1563, 2147483648
    %v1670 = vxor.u32 %v1565, 2147483648
    %v1671 = vxor.u32 %v1567, 2147483648
    %v1672 = vmul.f32 %v1652, 1.442695
    %v1673 = vpow.pop %v1672
    %v1674 = vmul.f32 %v1653, 1.442695
    %v1675 = vpow.pop %v1674
    %v1676 = vmul.f32 %v1654, 1.442695
    %v1677 = vpow.pop %v1676
    %v1678 = vmul.f32 %v1655, 1.442695
    %v1679 = vpow.pop %v1678
    %v1680 = vmul.f32 %v1656, 1.442695
    %v1681 = vpow.pop %v1680
    %v1682 = vmul.f32 %v1657, 1.442695
    %v1683 = vpow.pop %v1682
    %v1684 = vmul.f32 %v1658, 1.442695
    %v1685 = vpow.pop %v1684
    %v1686 = vmul.f32 %v1659, 1.442695
    %v1687 = vpow.pop %v1686
    %v1688 = vmul.f32 %v1660, 1.442695
    %v1689 = vpow.pop %v1688
    %v1690 = vmul.f32 %v1661, 1.442695
    %v1691 = vpow.pop %v1690
    %v1692 = vmul.f32 %v1662, 1.442695
    %v1693 = vpow.pop %v1692
    %v1694 = vmul.f32 %v1663, 1.442695
    %v1695 = vpow.pop %v1694
    %v1696 = vmul.f32 %v1664, 1.442695
    %v1697 = vpow.pop %v1696
    %v1698 = vmul.f32 %v1665, 1.442695
    %v1699 = vpow.pop %v1698
    %v1700 = vmul.f32 %v1666, 1.442695
    %v1701 = vpow.pop %v1700
    %v1702 = vmul.f32 %v1667, 1.442695
    %v1703 = vpow.pop %v1702
    %v1704 = vmul.f32 %v1668, 1.442695
    %v1705 = vpow.pop %v1704
    %v1706 = vmul.f32 %v1669, 1.442695
    %v1707 = vpow.pop %v1706
    %v1708 = vmul.f32 %v1670, 1.442695
    %v1709 = vpow.pop %v1708
    %v1710 = vmul.f32 %v1671, 1.442695
    %v1711 = vpow.pop %v1710
    %v1712 = vadd.f32 %v1673, 1.0
    %v1713 = vadd.f32 %v1675, 1.0
    %v1714 = vadd.f32 %v1677, 1.0
    %v1715 = vadd.f32 %v1679, 1.0
    %v1716 = vadd.f32 %v1681, 1.0
    %v1717 = vadd.f32 %v1683, 1.0
    %v1718 = vadd.f32 %v1685, 1.0
    %v1719 = vadd.f32 %v1687, 1.0
    %v1720 = vadd.f32 %v1689, 1.0
    %v1721 = vadd.f32 %v1691, 1.0
    %v1722 = vadd.f32 %v1693, 1.0
    %v1723 = vadd.f32 %v1695, 1.0
    %v1724 = vadd.f32 %v1697, 1.0
    %v1725 = vadd.f32 %v1699, 1.0
    %v1726 = vadd.f32 %v1701, 1.0
    %v1727 = vadd.f32 %v1703, 1.0
    %v1728 = vadd.f32 %v1705, 1.0
    %v1729 = vadd.f32 %v1707, 1.0
    %v1730 = vadd.f32 %v1709, 1.0
    %v1731 = vadd.f32 %v1711, 1.0
    %v1732 = vrcp.pop %v1712
    %v1733 = vmul.f32 1.0, %v1732
    %v1734 = vrcp.pop %v1713
    %v1735 = vmul.f32 1.0, %v1734
    %v1736 = vrcp.pop %v1714
    %v1737 = vmul.f32 1.0, %v1736
    %v1738 = vrcp.pop %v1715
    %v1739 = vmul.f32 1.0, %v1738
    %v1740 = vrcp.pop %v1716
    %v1741 = vmul.f32 1.0, %v1740
    %v1742 = vrcp.pop %v1717
    %v1743 = vmul.f32 1.0, %v1742
    %v1744 = vrcp.pop %v1718
    %v1745 = vmul.f32 1.0, %v1744
    %v1746 = vrcp.pop %v1719
    %v1747 = vmul.f32 1.0, %v1746
    %v1748 = vrcp.pop %v1720
    %v1749 = vmul.f32 1.0, %v1748
    %v1750 = vrcp.pop %v1721
    %v1751 = vmul.f32 1.0, %v1750
    %v1752 = vrcp.pop %v1722
    %v1753 = vmul.f32 1.0, %v1752
    %v1754 = vrcp.pop %v1723
    %v1755 = vmul.f32 1.0, %v1754
    %v1756 = vrcp.pop %v1724
    %v1757 = vmul.f32 1.0, %v1756
    %v1758 = vrcp.pop %v1725
    %v1759 = vmul.f32 1.0, %v1758
    %v1760 = vrcp.pop %v1726
    %v1761 = vmul.f32 1.0, %v1760
    %v1762 = vrcp.pop %v1727
    %v1763 = vmul.f32 1.0, %v1762
    %v1764 = vrcp.pop %v1728
    %v1765 = vmul.f32 1.0, %v1764
    %v1766 = vrcp.pop %v1729
    %v1767 = vmul.f32 1.0, %v1766
    %v1768 = vrcp.pop %v1730
    %v1769 = vmul.f32 1.0, %v1768
    %v1770 = vrcp.pop %v1731
    %v1771 = vmul.f32 1.0, %v1770
    %v1772 = vmul.f32 %v1521, %v1733
    %v1773 = vmul.f32 %v1523, %v1735
    %v1774 = vmul.f32 %v1525, %v1737
    %v1775 = vmul.f32 %v1527, %v1739
    %v1776 = vmul.f32 %v1531, %v1741
    %v1777 = vmul.f32 %v1533, %v1743
    %v1778 = vmul.f32 %v1535, %v1745
    %v1779 = vmul.f32 %v1537, %v1747
    %v1780 = vmul.f32 %v1541, %v1749
    %v1781 = vmul.f32 %v1543, %v1751
    %v1782 = vmul.f32 %v1545, %v1753
    %v1783 = vmul.f32 %v1547, %v1755
    %v1784 = vmul.f32 %v1551, %v1757
    %v1785 = vmul.f32 %v1553, %v1759
    %v1786 = vmul.f32 %v1555, %v1761
    %v1787 = vmul.f32 %v1557, %v1763
    %v1788 = vmul.f32 %v1561, %v1765
    %v1789 = vmul.f32 %v1563, %v1767
    %v1790 = vmul.f32 %v1565, %v1769
    %v1791 = vmul.f32 %v1567, %v1771
    %v1792 = vmul.f32 %v1772, %v1604
    %v1793 = vmul.f32 %v1773, %v1606
    %v1794 = vmul.f32 %v1774, %v1608
    %v1795 = vmul.f32 %v1775, %v1610
    %v1796 = vmul.f32 %v1776, %v1614
    %v1797 = vmul.f32 %v1777, %v1616
    %v1798 = vmul.f32 %v1778, %v1618
    %v1799 = vmul.f32 %v1779, %v1620
    %v1800 = vmul.f32 %v1780, %v1624
    %v1801 = vmul.f32 %v1781, %v1626
    %v1802 = vmul.f32 %v1782, %v1628
    %v1803 = vmul.f32 %v1783, %v1630
    %v1804 = vmul.f32 %v1784, %v1634
    %v1805 = vmul.f32 %v1785, %v1636
    %v1806 = vmul.f32 %v1786, %v1638
    %v1807 = vmul.f32 %v1787, %v1640
    %v1808 = vmul.f32 %v1788, %v1644
    %v1809 = vmul.f32 %v1789, %v1646
    %v1810 = vmul.f32 %v1790, %v1648
    %v1811 = vmul.f32 %v1791, %v1650
    %v1812 = vpack.c.bf16 %v1794, %v1792
    %v1813 = vpack.c.bf16 %v1795, %v1793
    %v1814 = vpack.c.bf16 %v1798, %v1796
    %v1815 = vpack.c.bf16 %v1799, %v1797
    %v1816 = vpack.c.bf16 %v1802, %v1800
    %v1817 = vpack.c.bf16 %v1803, %v1801
    %v1818 = vpack.c.bf16 %v1806, %v1804
    %v1819 = vpack.c.bf16 %v1807, %v1805
    %v1820 = vpack.c.bf16 %v1810, %v1808
    %v1821 = vpack.c.bf16 %v1811, %v1809
    %v1822 = vld [vmem:[%s10] sm:$0xf]
    %v1823 = vld [vmem:[%s10 + $0x4] sm:$0xf]
    %v1824 = vld [vmem:[%s10 + $0x8] sm:$0xf]
    %v1825 = vld [vmem:[%s10 + $0xc] sm:$0xf]
    %v1826 = vld [vmem:[%s10 + $0x10] sm:$0xf]
    %v1827 = vld [vmem:[%s10 + $0x14] sm:$0xf]
    %v1828 = vld [vmem:[%s10 + $0x18] sm:$0xf]
    %v1829 = vld [vmem:[%s10 + $0x1c] sm:$0xf]
    %v1830 = vld [vmem:[%s10 + $0x20] sm:$0xf]
    %v1831 = vld [vmem:[%s10 + $0x24] sm:$0xf]
    %v1832 = vld [vmem:[%s10 + $0x28] sm:$0xf]
    %v1833 = vld [vmem:[%s10 + $0x2c] sm:$0xf]
    %v1834 = vld [vmem:[%s10 + $0x30] sm:$0xf]
    %v1835 = vld [vmem:[%s10 + $0x34] sm:$0xf]
    %v1836 = vld [vmem:[%s10 + $0x38] sm:$0xf]
    %v1837 = vld [vmem:[%s10 + $0x3c] sm:$0xf]
    %v1838 = vld [vmem:[%s10 + $0x40] sm:$0xf]
    %v1839 = vld [vmem:[%s10 + $0x44] sm:$0xf]
    %v1840 = vld [vmem:[%s10 + $0x48] sm:$0xf]
    %v1841 = vld [vmem:[%s10 + $0x4c] sm:$0xf]
    %v1842 = vld [vmem:[%s10 + $0x50] sm:$0xf]
    %v1843 = vld [vmem:[%s10 + $0x54] sm:$0xf]
    %v1844 = vld [vmem:[%s10 + $0x58] sm:$0xf]
    %v1845 = vld [vmem:[%s10 + $0x5c] sm:$0xf]
    %v1846 = vld [vmem:[%s10 + $0x60] sm:$0xf]
    %v1847 = vld [vmem:[%s10 + $0x64] sm:$0xf]
    %v1848 = vld [vmem:[%s10 + $0x68] sm:$0xf]
    %v1849 = vld [vmem:[%s10 + $0x6c] sm:$0xf]
    %v1850 = vld [vmem:[%s10 + $0x70] sm:$0xf]
    %v1851 = vld [vmem:[%s10 + $0x74] sm:$0xf]
    %v1852 = vld [vmem:[%s10 + $0x78] sm:$0xf]
    %v1853 = vld [vmem:[%s10 + $0x7c] sm:$0xf]
    %v1886 = vunpack.c.l.b16 %v1822
    %v1887 = vunpack.c.l.b16 %v1823
    %v1888 = vunpack.c.l.b16 %v1824
    %v1889 = vunpack.c.l.b16 %v1825
    %v1890 = vunpack.c.l.b16 %v1826
    %v1891 = vunpack.c.l.b16 %v1827
    %v1892 = vunpack.c.l.b16 %v1828
    %v1893 = vunpack.c.l.b16 %v1829
    %v1894 = vunpack.c.l.b16 %v1830
    %v1895 = vunpack.c.l.b16 %v1831
    %v1896 = vunpack.c.l.b16 %v1832
    %v1897 = vunpack.c.l.b16 %v1833
    %v1898 = vunpack.c.l.b16 %v1834
    %v1899 = vunpack.c.l.b16 %v1835
    %v1900 = vunpack.c.l.b16 %v1836
    %v1901 = vunpack.c.l.b16 %v1837
    %v1902 = vunpack.c.l.b16 %v1838
    %v1903 = vunpack.c.l.b16 %v1839
    %v1904 = vunpack.c.l.b16 %v1840
    %v1905 = vunpack.c.l.b16 %v1841
    %v1906 = vunpack.c.l.b16 %v1842
    %v1907 = vunpack.c.l.b16 %v1843
    %v1908 = vunpack.c.l.b16 %v1844
    %v1909 = vunpack.c.l.b16 %v1845
    %v1910 = vunpack.c.l.b16 %v1846
    %v1911 = vunpack.c.l.b16 %v1847
    %v1912 = vunpack.c.l.b16 %v1848
    %v1913 = vunpack.c.l.b16 %v1849
    %v1914 = vunpack.c.l.b16 %v1850
    %v1915 = vunpack.c.l.b16 %v1851
    %v1916 = vunpack.c.l.b16 %v1852
    %v1917 = vunpack.c.l.b16 %v1853
    %v1918 = vpack.c.b16 %v1887, %v1886
    %v1919 = vpack.c.b16 %v1889, %v1888
    %v1920 = vpack.c.b16 %v1891, %v1890
    %v1921 = vpack.c.b16 %v1893, %v1892
    %v1922 = vpack.c.b16 %v1895, %v1894
    %v1923 = vpack.c.b16 %v1897, %v1896
    %v1924 = vpack.c.b16 %v1899, %v1898
    %v1925 = vpack.c.b16 %v1901, %v1900
    %v1926 = vpack.c.b16 %v1903, %v1902
    %v1927 = vpack.c.b16 %v1905, %v1904
    %v1928 = vpack.c.b16 %v1907, %v1906
    %v1929 = vpack.c.b16 %v1909, %v1908
    %v1930 = vpack.c.b16 %v1911, %v1910
    %v1931 = vpack.c.b16 %v1913, %v1912
    %v1932 = vpack.c.b16 %v1915, %v1914
    %v1933 = vpack.c.b16 %v1917, %v1916
    %1950 = vmatprep.subr.bf16.mxu0 0
    %1951 = vmatpush1.bf16.msra.mxu0 %v1918
    %1952 = vmatprep.subr.bf16.mxu0 0
    %1953 = vmatpush1.bf16.msra.mxu0 %v1919
    %1954 = vmatprep.subr.bf16.mxu0 0
    %1955 = vmatpush1.bf16.msra.mxu0 %v1920
    %1956 = vmatprep.subr.bf16.mxu0 0
    %1957 = vmatpush1.bf16.msra.mxu0 %v1921
    %1958 = vmatprep.subr.bf16.mxu0 0
    %1959 = vmatpush1.bf16.msra.mxu0 %v1922
    %1960 = vmatprep.subr.bf16.mxu0 0
    %1961 = vmatpush1.bf16.msra.mxu0 %v1923
    %1962 = vmatprep.subr.bf16.mxu0 0
    %1963 = vmatpush1.bf16.msra.mxu0 %v1924
    %1964 = vmatprep.subr.bf16.mxu0 0
    %1965 = vmatpush1.bf16.msra.mxu0 %v1925
    %1966 = vmatprep.subr.bf16.mxu0 0
    %1967 = vmatpush1.bf16.msra.mxu0 %v1926
    %1968 = vmatprep.subr.bf16.mxu0 0
    %1969 = vmatpush1.bf16.msra.mxu0 %v1927
    %1970 = vmatprep.subr.bf16.mxu0 0
    %1971 = vmatpush1.bf16.msra.mxu0 %v1928
    %1972 = vmatprep.subr.bf16.mxu0 0
    %1973 = vmatpush1.bf16.msra.mxu0 %v1929
    %1974 = vmatprep.subr.bf16.mxu0 0
    %1975 = vmatpush1.bf16.msra.mxu0 %v1930
    %1976 = vmatprep.subr.bf16.mxu0 0
    %1977 = vmatpush1.bf16.msra.mxu0 %v1931
    %1978 = vmatprep.subr.bf16.mxu0 0
    %1979 = vmatpush1.bf16.msra.mxu0 %v1932
    %1980 = vmatprep.subr.bf16.mxu0 0
    %1981 = vmatpush1.bf16.msra.mxu0 %v1933
    %1982 = vmatprep.mubr.bf16.mxu0 %v1813
    %1983 = vmatmul.mubr.bf16.gmra.mrb[0].mxu0 %v1812
    %v1984 = vpop.f32.mrb[0].mxu0
    %v1985 = vadd.f32 0.0, %v1984
    %v1986 = vpop.f32.mrb[0].mxu0
    %v1987 = vpop.f32.mrb[0].mxu0
    %v1988 = vadd.f32 0.0, %v1987
    %v1989 = vpop.f32.mrb[0].mxu0
    %1990 = vmatprep.mubr.bf16.mxu0 %v1815
    %1991 = vmatmul.mubr.bf16.gmra.mrb[0].mxu0 %v1814
    %v1992 = vpop.f32.mrb[0].mxu0
    %v1993 = vadd.f32 0.0, %v1992
    %v1994 = vpop.f32.mrb[0].mxu0
    %v1995 = vpop.f32.mrb[0].mxu0
    %v1996 = vadd.f32 0.0, %v1995
    %v1997 = vpop.f32.mrb[0].mxu0
    %1998 = vmatprep.mubr.bf16.mxu0 %v1817
    %1999 = vmatmul.mubr.bf16.gmra.mrb[0].mxu0 %v1816
    %v2000 = vpop.f32.mrb[0].mxu0
    %v2001 = vadd.f32 0.0, %v2000
    %v2002 = vpop.f32.mrb[0].mxu0
    %v2003 = vpop.f32.mrb[0].mxu0
    %v2004 = vadd.f32 0.0, %v2003
    %v2005 = vpop.f32.mrb[0].mxu0
    %2006 = vmatprep.mubr.bf16.mxu0 %v1819
    %2007 = vmatmul.mubr.bf16.gmra.mrb[0].mxu0 %v1818
    %v2008 = vpop.f32.mrb[0].mxu0
    %v2009 = vadd.f32 0.0, %v2008
    %v2010 = vpop.f32.mrb[0].mxu0
    %v2011 = vpop.f32.mrb[0].mxu0
    %v2012 = vadd.f32 0.0, %v2011
    %v2013 = vpop.f32.mrb[0].mxu0
    %2014 = vmatprep.mubr.bf16.mxu0 %v1821
    %2015 = vmatmul.mubr.bf16.gmra.mrb[0].mxu0 %v1820
    %v2016 = vpop.f32.mrb[0].mxu0
    %v2017 = vadd.f32 0.0, %v2016
    %v2018 = vpop.f32.mrb[0].mxu0
    %v2019 = vpop.f32.mrb[0].mxu0
    %v2020 = vadd.f32 0.0, %v2019
    %v2021 = vpop.f32.mrb[0].mxu0
    %2022 = vdwg.mxu0
    %v2023 = vadd.f32 %v1192, %v1985
    %v2024 = vadd.f32 %v1193, %v1988
    %v2025 = vadd.f32 %v1194, %v1993
    %v2026 = vadd.f32 %v1195, %v1996
    %v2027 = vadd.f32 %v1196, %v2001
    %v2028 = vadd.f32 %v1197, %v2004
    %v2029 = vadd.f32 %v1198, %v2009
    %v2030 = vadd.f32 %v1199, %v2012
    %v2031 = vadd.f32 %v1200, %v2017
    %v2032 = vadd.f32 %v1201, %v2020
    %v2033 = vld [vmem:[%s13] sm:$0x1]
    %v2034 = vmul.f32 %v2023, %v2023
    %v2035 = vmul.f32 %v2024, %v2024
    %v2036 = vmul.f32 %v2025, %v2025
    %v2037 = vmul.f32 %v2026, %v2026
    %v2038 = vmul.f32 %v2027, %v2027
    %v2039 = vmul.f32 %v2028, %v2028
    %v2040 = vmul.f32 %v2029, %v2029
    %v2041 = vmul.f32 %v2030, %v2030
    %v2042 = vmul.f32 %v2031, %v2031
    %v2043 = vmul.f32 %v2032, %v2032
    %2044 = vadd.xlane.f32.xlu0 %v2034
    %v2045 = vpop.xlane.xlu0 %2044
    %2046 = vadd.xlane.f32.xlu0 %v2035
    %v2047 = vpop.xlane.xlu0 %2046
    %2048 = vadd.xlane.f32.xlu0 %v2036
    %v2049 = vpop.xlane.xlu0 %2048
    %2050 = vadd.xlane.f32.xlu0 %v2037
    %v2051 = vpop.xlane.xlu0 %2050
    %2052 = vadd.xlane.f32.xlu0 %v2038
    %v2053 = vpop.xlane.xlu0 %2052
    %2054 = vadd.xlane.f32.xlu0 %v2039
    %v2055 = vpop.xlane.xlu0 %2054
    %2056 = vadd.xlane.f32.xlu0 %v2040
    %v2057 = vpop.xlane.xlu0 %2056
    %2058 = vadd.xlane.f32.xlu0 %v2041
    %v2059 = vpop.xlane.xlu0 %2058
    %2060 = vadd.xlane.f32.xlu0 %v2042
    %v2061 = vpop.xlane.xlu0 %2060
    %2062 = vadd.xlane.f32.xlu0 %v2043
    %v2063 = vpop.xlane.xlu0 %2062
    %v2064 = vmul.f32 %v2045, %v347
    %v2065 = vmul.f32 %v2047, %v347
    %v2066 = vmul.f32 %v2049, %v347
    %v2067 = vmul.f32 %v2051, %v347
    %v2068 = vmul.f32 %v2053, %v347
    %v2069 = vmul.f32 %v2055, %v347
    %v2070 = vmul.f32 %v2057, %v347
    %v2071 = vmul.f32 %v2059, %v347
    %v2072 = vmul.f32 %v2061, %v347
    %v2073 = vmul.f32 %v2063, %v347
    %v2074 = vadd.f32 %v2064, 1e-06
    %v2075 = vadd.f32 %v2065, 1e-06
    %v2076 = vadd.f32 %v2066, 1e-06
    %v2077 = vadd.f32 %v2067, 1e-06
    %v2078 = vadd.f32 %v2068, 1e-06
    %v2079 = vadd.f32 %v2069, 1e-06
    %v2080 = vadd.f32 %v2070, 1e-06
    %v2081 = vadd.f32 %v2071, 1e-06
    %v2082 = vadd.f32 %v2072, 1e-06
    %v2083 = vadd.f32 %v2073, 1e-06
    %v2084 = vrsqrt.pop %v2074
    %v2085 = vrsqrt.pop %v2075
    %v2086 = vrsqrt.pop %v2076
    %v2087 = vrsqrt.pop %v2077
    %v2088 = vrsqrt.pop %v2078
    %v2089 = vrsqrt.pop %v2079
    %v2090 = vrsqrt.pop %v2080
    %v2091 = vrsqrt.pop %v2081
    %v2092 = vrsqrt.pop %v2082
    %v2093 = vrsqrt.pop %v2083
    %v2094 = vmul.f32 %v2023, %v2084
    %v2095 = vmul.f32 %v2024, %v2085
    %v2096 = vmul.f32 %v2025, %v2086
    %v2097 = vmul.f32 %v2026, %v2087
    %v2098 = vmul.f32 %v2027, %v2088
    %v2099 = vmul.f32 %v2028, %v2089
    %v2100 = vmul.f32 %v2029, %v2090
    %v2101 = vmul.f32 %v2030, %v2091
    %v2102 = vmul.f32 %v2031, %v2092
    %v2103 = vmul.f32 %v2032, %v2093
    %v2105 = vlaneseq
    %v2106 = vshrl.u32 %v2105, 7
    %v2107 = vsub.s32 0, %v2106
    %v2108 = vrot.slane %v2033, %v2107
    %v2110 = vmul.f32 %v2094, %v2108
    %v2111 = vmul.f32 %v2095, %v2108
    %v2112 = vmul.f32 %v2096, %v2108
    %v2113 = vmul.f32 %v2097, %v2108
    %v2114 = vmul.f32 %v2098, %v2108
    %v2115 = vmul.f32 %v2099, %v2108
    %v2116 = vmul.f32 %v2100, %v2108
    %v2117 = vmul.f32 %v2101, %v2108
    %v2118 = vmul.f32 %v2102, %v2108
    %v2119 = vmul.f32 %v2103, %v2108
    %v2120 = vpack.c.bf16 %v2111, %v2110
    %v2121 = vpack.c.bf16 %v2113, %v2112
    %v2122 = vpack.c.bf16 %v2115, %v2114
    %v2123 = vpack.c.bf16 %v2117, %v2116
    %v2124 = vpack.c.bf16 %v2119, %v2118
    %v2125 = vld [vmem:[%s14] sm:$0xf]
    %v2126 = vld [vmem:[%s14 + $0x4] sm:$0xf]
    %v2127 = vld [vmem:[%s14 + $0x8] sm:$0xf]
    %v2128 = vld [vmem:[%s14 + $0xc] sm:$0xf]
    %v2129 = vld [vmem:[%s14 + $0x10] sm:$0xf]
    %v2130 = vld [vmem:[%s14 + $0x14] sm:$0xf]
    %v2131 = vld [vmem:[%s14 + $0x18] sm:$0xf]
    %v2132 = vld [vmem:[%s14 + $0x1c] sm:$0xf]
    %v2133 = vld [vmem:[%s14 + $0x20] sm:$0xf]
    %v2134 = vld [vmem:[%s14 + $0x24] sm:$0xf]
    %v2135 = vld [vmem:[%s14 + $0x28] sm:$0xf]
    %v2136 = vld [vmem:[%s14 + $0x2c] sm:$0xf]
    %v2137 = vld [vmem:[%s14 + $0x30] sm:$0xf]
    %v2138 = vld [vmem:[%s14 + $0x34] sm:$0xf]
    %v2139 = vld [vmem:[%s14 + $0x38] sm:$0xf]
    %v2140 = vld [vmem:[%s14 + $0x3c] sm:$0xf]
    %v2157 = vunpack.c.l.b16 %v2125
    %v2158 = vunpack.c.l.b16 %v2126
    %v2159 = vunpack.c.l.b16 %v2127
    %v2160 = vunpack.c.l.b16 %v2128
    %v2161 = vunpack.c.l.b16 %v2129
    %v2162 = vunpack.c.l.b16 %v2130
    %v2163 = vunpack.c.l.b16 %v2131
    %v2164 = vunpack.c.l.b16 %v2132
    %v2165 = vunpack.c.l.b16 %v2133
    %v2166 = vunpack.c.l.b16 %v2134
    %v2167 = vunpack.c.l.b16 %v2135
    %v2168 = vunpack.c.l.b16 %v2136
    %v2169 = vunpack.c.l.b16 %v2137
    %v2170 = vunpack.c.l.b16 %v2138
    %v2171 = vunpack.c.l.b16 %v2139
    %v2172 = vunpack.c.l.b16 %v2140
    %v2173 = vpack.c.b16 %v2158, %v2157
    %v2174 = vpack.c.b16 %v2160, %v2159
    %v2175 = vpack.c.b16 %v2162, %v2161
    %v2176 = vpack.c.b16 %v2164, %v2163
    %v2177 = vpack.c.b16 %v2166, %v2165
    %v2178 = vpack.c.b16 %v2168, %v2167
    %v2179 = vpack.c.b16 %v2170, %v2169
    %v2180 = vpack.c.b16 %v2172, %v2171
    %2189 = vmatprep.subr.bf16.mxu0 0
    %2190 = vmatpush1.bf16.msra.mxu0 %v2173
    %2191 = vmatprep.subr.bf16.mxu0 0
    %2192 = vmatpush1.bf16.msra.mxu0 %v2174
    %2193 = vmatprep.subr.bf16.mxu0 0
    %2194 = vmatpush1.bf16.msra.mxu0 %v2175
    %2195 = vmatprep.subr.bf16.mxu0 0
    %2196 = vmatpush1.bf16.msra.mxu0 %v2176
    %2197 = vmatprep.subr.bf16.mxu0 0
    %2198 = vmatpush1.bf16.msra.mxu0 %v2177
    %2199 = vmatprep.subr.bf16.mxu0 0
    %2200 = vmatpush1.bf16.msra.mxu0 %v2178
    %2201 = vmatprep.subr.bf16.mxu0 0
    %2202 = vmatpush1.bf16.msra.mxu0 %v2179
    %2203 = vmatprep.subr.bf16.mxu0 0
    %2204 = vmatpush1.bf16.msra.mxu0 %v2180
    %2205 = vmatprep.subr.bf16.mxu0 0
    %2206 = vmatpush1.bf16.msra.mxu0 0
    %2207 = vmatprep.subr.bf16.mxu0 0
    %2208 = vmatpush1.bf16.msra.mxu0 0
    %2209 = vmatprep.subr.bf16.mxu0 0
    %2210 = vmatpush1.bf16.msra.mxu0 0
    %2211 = vmatprep.subr.bf16.mxu0 0
    %2212 = vmatpush1.bf16.msra.mxu0 0
    %2213 = vmatprep.subr.bf16.mxu0 0
    %2214 = vmatpush1.bf16.msra.mxu0 0
    %2215 = vmatprep.subr.bf16.mxu0 0
    %2216 = vmatpush1.bf16.msra.mxu0 0
    %2217 = vmatprep.subr.bf16.mxu0 0
    %2218 = vmatpush1.bf16.msra.mxu0 0
    %2219 = vmatprep.subr.bf16.mxu0 0
    %2220 = vmatpush1.bf16.msra.mxu0 0
    %2221 = vmatprep.mubr.bf16.mxu0 0
    %2222 = vmatmul.mubr.bf16.gmra.mrb[0].mxu0 %v2120
    %v2223 = vpop.f32.mrb[0].mxu0
    %v2224 = vadd.f32 0.0, %v2223
    %v2225 = vpop.f32.mrb[0].mxu0
    %v2226 = vpop.f32.mrb[0].mxu0
    %v2227 = vadd.f32 0.0, %v2226
    %v2228 = vpop.f32.mrb[0].mxu0
    %2229 = vmatprep.mubr.bf16.mxu0 0
    %2230 = vmatmul.mubr.bf16.gmra.mrb[0].mxu0 %v2121
    %v2231 = vpop.f32.mrb[0].mxu0
    %v2232 = vadd.f32 0.0, %v2231
    %v2233 = vpop.f32.mrb[0].mxu0
    %v2234 = vpop.f32.mrb[0].mxu0
    %v2235 = vadd.f32 0.0, %v2234
    %v2236 = vpop.f32.mrb[0].mxu0
    %2237 = vmatprep.mubr.bf16.mxu0 0
    %2238 = vmatmul.mubr.bf16.gmra.mrb[0].mxu0 %v2122
    %v2239 = vpop.f32.mrb[0].mxu0
    %v2240 = vadd.f32 0.0, %v2239
    %v2241 = vpop.f32.mrb[0].mxu0
    %v2242 = vpop.f32.mrb[0].mxu0
    %v2243 = vadd.f32 0.0, %v2242
    %v2244 = vpop.f32.mrb[0].mxu0
    %2245 = vmatprep.mubr.bf16.mxu0 0
    %2246 = vmatmul.mubr.bf16.gmra.mrb[0].mxu0 %v2123
    %v2247 = vpop.f32.mrb[0].mxu0
    %v2248 = vadd.f32 0.0, %v2247
    %v2249 = vpop.f32.mrb[0].mxu0
    %v2250 = vpop.f32.mrb[0].mxu0
    %v2251 = vadd.f32 0.0, %v2250
    %v2252 = vpop.f32.mrb[0].mxu0
    %2253 = vmatprep.mubr.bf16.mxu0 0
    %2254 = vmatmul.mubr.bf16.gmra.mrb[0].mxu0 %v2124
    %v2255 = vpop.f32.mrb[0].mxu0
    %v2256 = vadd.f32 0.0, %v2255
    %v2257 = vpop.f32.mrb[0].mxu0
    %v2258 = vpop.f32.mrb[0].mxu0
    %v2259 = vadd.f32 0.0, %v2258
    %v2260 = vpop.f32.mrb[0].mxu0
    %2261 = vdwg.mxu0
    %v2262 = vld [vmem:[%s3] sm:$0xff]
    %v2263 = vld [vmem:[%s3 + $0x8] sm:$0xff]
    %v2264 = vld [vmem:[%s3 + $0x10] sm:$0xff]
    %v2265 = vld [vmem:[%s3 + $0x18] sm:$0xff]
    %v2266 = vld [vmem:[%s3 + $0x20] sm:$0xff]
    %v2267 = vld [vmem:[%s3 + $0x28] sm:$0xff]
    %v2268 = vld [vmem:[%s3 + $0x30] sm:$0xff]
    %v2269 = vld [vmem:[%s3 + $0x38] sm:$0xff]
    %v2270 = vld [vmem:[%s3 + $0x40] sm:$0xff]
    %v2271 = vld [vmem:[%s3 + $0x48] sm:$0xff]
    %2272 = vmax.xlane.f32.xlu0 %v2224
    %v2273 = vpop.xlane.xlu0 %2272
    %2274 = vmax.xlane.f32.xlu0 %v2227
    %v2275 = vpop.xlane.xlu0 %2274
    %2276 = vmax.xlane.f32.xlu0 %v2232
    %v2277 = vpop.xlane.xlu0 %2276
    %2278 = vmax.xlane.f32.xlu0 %v2235
    %v2279 = vpop.xlane.xlu0 %2278
    %2280 = vmax.xlane.f32.xlu0 %v2240
    %v2281 = vpop.xlane.xlu0 %2280
    %2282 = vmax.xlane.f32.xlu0 %v2243
    %v2283 = vpop.xlane.xlu0 %2282
    %2284 = vmax.xlane.f32.xlu0 %v2248
    %v2285 = vpop.xlane.xlu0 %2284
    %2286 = vmax.xlane.f32.xlu0 %v2251
    %v2287 = vpop.xlane.xlu0 %2286
    %2288 = vmax.xlane.f32.xlu0 %v2256
    %v2289 = vpop.xlane.xlu0 %2288
    %2290 = vmax.xlane.f32.xlu0 %v2259
    %v2291 = vpop.xlane.xlu0 %2290
    %v2292 = vsub.f32 %v2224, %v2273
    %v2293 = vsub.f32 %v2227, %v2275
    %v2294 = vsub.f32 %v2232, %v2277
    %v2295 = vsub.f32 %v2235, %v2279
    %v2296 = vsub.f32 %v2240, %v2281
    %v2297 = vsub.f32 %v2243, %v2283
    %v2298 = vsub.f32 %v2248, %v2285
    %v2299 = vsub.f32 %v2251, %v2287
    %v2300 = vsub.f32 %v2256, %v2289
    %v2301 = vsub.f32 %v2259, %v2291
    %v2302 = vmul.f32 %v2292, 1.442695
    %v2303 = vpow.pop %v2302
    %v2304 = vmul.f32 %v2293, 1.442695
    %v2305 = vpow.pop %v2304
    %v2306 = vmul.f32 %v2294, 1.442695
    %v2307 = vpow.pop %v2306
    %v2308 = vmul.f32 %v2295, 1.442695
    %v2309 = vpow.pop %v2308
    %v2310 = vmul.f32 %v2296, 1.442695
    %v2311 = vpow.pop %v2310
    %v2312 = vmul.f32 %v2297, 1.442695
    %v2313 = vpow.pop %v2312
    %v2314 = vmul.f32 %v2298, 1.442695
    %v2315 = vpow.pop %v2314
    %v2316 = vmul.f32 %v2299, 1.442695
    %v2317 = vpow.pop %v2316
    %v2318 = vmul.f32 %v2300, 1.442695
    %v2319 = vpow.pop %v2318
    %v2320 = vmul.f32 %v2301, 1.442695
    %v2321 = vpow.pop %v2320
    %2322 = vadd.xlane.f32.xlu0 %v2303
    %v2323 = vpop.xlane.xlu0 %2322
    %2324 = vadd.xlane.f32.xlu0 %v2305
    %v2325 = vpop.xlane.xlu0 %2324
    %2326 = vadd.xlane.f32.xlu0 %v2307
    %v2327 = vpop.xlane.xlu0 %2326
    %2328 = vadd.xlane.f32.xlu0 %v2309
    %v2329 = vpop.xlane.xlu0 %2328
    %2330 = vadd.xlane.f32.xlu0 %v2311
    %v2331 = vpop.xlane.xlu0 %2330
    %2332 = vadd.xlane.f32.xlu0 %v2313
    %v2333 = vpop.xlane.xlu0 %2332
    %2334 = vadd.xlane.f32.xlu0 %v2315
    %v2335 = vpop.xlane.xlu0 %2334
    %2336 = vadd.xlane.f32.xlu0 %v2317
    %v2337 = vpop.xlane.xlu0 %2336
    %2338 = vadd.xlane.f32.xlu0 %v2319
    %v2339 = vpop.xlane.xlu0 %2338
    %2340 = vadd.xlane.f32.xlu0 %v2321
    %v2341 = vpop.xlane.xlu0 %2340
    %v2342 = vlog2.pop %v2323
    %v2343 = vmul.f32 %v2342, 0.6931472
    %v2344 = vlog2.pop %v2325
    %v2345 = vmul.f32 %v2344, 0.6931472
    %v2346 = vlog2.pop %v2327
    %v2347 = vmul.f32 %v2346, 0.6931472
    %v2348 = vlog2.pop %v2329
    %v2349 = vmul.f32 %v2348, 0.6931472
    %v2350 = vlog2.pop %v2331
    %v2351 = vmul.f32 %v2350, 0.6931472
    %v2352 = vlog2.pop %v2333
    %v2353 = vmul.f32 %v2352, 0.6931472
    %v2354 = vlog2.pop %v2335
    %v2355 = vmul.f32 %v2354, 0.6931472
    %v2356 = vlog2.pop %v2337
    %v2357 = vmul.f32 %v2356, 0.6931472
    %v2358 = vlog2.pop %v2339
    %v2359 = vmul.f32 %v2358, 0.6931472
    %v2360 = vlog2.pop %v2341
    %v2361 = vmul.f32 %v2360, 0.6931472
    %v2362 = vadd.f32 %v2343, %v2273
    %v2363 = vadd.f32 %v2345, %v2275
    %v2364 = vadd.f32 %v2347, %v2277
    %v2365 = vadd.f32 %v2349, %v2279
    %v2366 = vadd.f32 %v2351, %v2281
    %v2367 = vadd.f32 %v2353, %v2283
    %v2368 = vadd.f32 %v2355, %v2285
    %v2369 = vadd.f32 %v2357, %v2287
    %v2370 = vadd.f32 %v2359, %v2289
    %v2371 = vadd.f32 %v2361, %v2291
    %2372 = vset.pattern.permute.xlu0 0
    %2373 = vperm.xlu0 %2372, %v2262
    %v2374 = vpop.permute.xlu0 %2373
    %2375 = vset.pattern.permute.xlu0 0
    %2376 = vperm.xlu0 %2375, %v2263
    %v2377 = vpop.permute.xlu0 %2376
    %2378 = vset.pattern.permute.xlu0 0
    %2379 = vperm.xlu0 %2378, %v2264
    %v2380 = vpop.permute.xlu0 %2379
    %2381 = vset.pattern.permute.xlu0 0
    %2382 = vperm.xlu0 %2381, %v2265
    %v2383 = vpop.permute.xlu0 %2382
    %2384 = vset.pattern.permute.xlu0 0
    %2385 = vperm.xlu0 %2384, %v2266
    %v2386 = vpop.permute.xlu0 %2385
    %2387 = vset.pattern.permute.xlu0 0
    %2388 = vperm.xlu0 %2387, %v2267
    %v2389 = vpop.permute.xlu0 %2388
    %2390 = vset.pattern.permute.xlu0 0
    %2391 = vperm.xlu0 %2390, %v2268
    %v2392 = vpop.permute.xlu0 %2391
    %2393 = vset.pattern.permute.xlu0 0
    %2394 = vperm.xlu0 %2393, %v2269
    %v2395 = vpop.permute.xlu0 %2394
    %2396 = vset.pattern.permute.xlu0 0
    %2397 = vperm.xlu0 %2396, %v2270
    %v2398 = vpop.permute.xlu0 %2397
    %2399 = vset.pattern.permute.xlu0 0
    %2400 = vperm.xlu0 %2399, %v2271
    %v2401 = vpop.permute.xlu0 %2400
    %vm2402 = vcmp.eq.s32.totalorder %v825, %v2374
    %vm2403 = vcmp.eq.s32.totalorder %v825, %v2377
    %vm2404 = vcmp.eq.s32.totalorder %v825, %v2380
    %vm2405 = vcmp.eq.s32.totalorder %v825, %v2383
    %vm2406 = vcmp.eq.s32.totalorder %v825, %v2386
    %vm2407 = vcmp.eq.s32.totalorder %v825, %v2389
    %vm2408 = vcmp.eq.s32.totalorder %v825, %v2392
    %vm2409 = vcmp.eq.s32.totalorder %v825, %v2395
    %vm2410 = vcmp.eq.s32.totalorder %v825, %v2398
    %vm2411 = vcmp.eq.s32.totalorder %v825, %v2401
    %v2412 = vsel %vm2402, %v2224, 0.0
    %v2413 = vsel %vm2403, %v2227, 0.0
    %v2414 = vsel %vm2404, %v2232, 0.0
    %v2415 = vsel %vm2405, %v2235, 0.0
    %v2416 = vsel %vm2406, %v2240, 0.0
    %v2417 = vsel %vm2407, %v2243, 0.0
    %v2418 = vsel %vm2408, %v2248, 0.0
    %v2419 = vsel %vm2409, %v2251, 0.0
    %v2420 = vsel %vm2410, %v2256, 0.0
    %v2421 = vsel %vm2411, %v2259, 0.0
    %2422 = vadd.xlane.f32.xlu0 %v2412
    %v2423 = vpop.xlane.xlu0 %2422
    %2424 = vadd.xlane.f32.xlu0 %v2413
    %v2425 = vpop.xlane.xlu0 %2424
    %2426 = vadd.xlane.f32.xlu0 %v2414
    %v2427 = vpop.xlane.xlu0 %2426
    %2428 = vadd.xlane.f32.xlu0 %v2415
    %v2429 = vpop.xlane.xlu0 %2428
    %2430 = vadd.xlane.f32.xlu0 %v2416
    %v2431 = vpop.xlane.xlu0 %2430
    %2432 = vadd.xlane.f32.xlu0 %v2417
    %v2433 = vpop.xlane.xlu0 %2432
    %2434 = vadd.xlane.f32.xlu0 %v2418
    %v2435 = vpop.xlane.xlu0 %2434
    %2436 = vadd.xlane.f32.xlu0 %v2419
    %v2437 = vpop.xlane.xlu0 %2436
    %2438 = vadd.xlane.f32.xlu0 %v2420
    %v2439 = vpop.xlane.xlu0 %2438
    %2440 = vadd.xlane.f32.xlu0 %v2421
    %v2441 = vpop.xlane.xlu0 %2440
    %vm2442 = vcmp.ne.s32.totalorder %v2262, 4294967096
    %vm2443 = vcmp.ne.s32.totalorder %v2263, 4294967096
    %vm2444 = vcmp.ne.s32.totalorder %v2264, 4294967096
    %vm2445 = vcmp.ne.s32.totalorder %v2265, 4294967096
    %vm2446 = vcmp.ne.s32.totalorder %v2266, 4294967096
    %vm2447 = vcmp.ne.s32.totalorder %v2267, 4294967096
    %vm2448 = vcmp.ne.s32.totalorder %v2268, 4294967096
    %vm2449 = vcmp.ne.s32.totalorder %v2269, 4294967096
    %vm2450 = vcmp.ne.s32.totalorder %v2270, 4294967096
    %vm2451 = vcmp.ne.s32.totalorder %v2271, 4294967096
    %v2452 = vsel %vm2442, 1, 0
    %v2453 = vsel %vm2443, 1, 0
    %v2454 = vsel %vm2444, 1, 0
    %v2455 = vsel %vm2445, 1, 0
    %v2456 = vsel %vm2446, 1, 0
    %v2457 = vsel %vm2447, 1, 0
    %v2458 = vsel %vm2448, 1, 0
    %v2459 = vsel %vm2449, 1, 0
    %v2460 = vsel %vm2450, 1, 0
    %v2461 = vsel %vm2451, 1, 0
    %v2462 = vcvt.s32.f32 %v2452
    %v2463 = vcvt.s32.f32 %v2453
    %v2464 = vcvt.s32.f32 %v2454
    %v2465 = vcvt.s32.f32 %v2455
    %v2466 = vcvt.s32.f32 %v2456
    %v2467 = vcvt.s32.f32 %v2457
    %v2468 = vcvt.s32.f32 %v2458
    %v2469 = vcvt.s32.f32 %v2459
    %v2470 = vcvt.s32.f32 %v2460
    %v2471 = vcvt.s32.f32 %v2461
    %v2472 = vsub.f32 %v2362, %v2423
    %v2473 = vsub.f32 %v2363, %v2425
    %v2474 = vsub.f32 %v2364, %v2427
    %v2475 = vsub.f32 %v2365, %v2429
    %v2476 = vsub.f32 %v2366, %v2431
    %v2477 = vsub.f32 %v2367, %v2433
    %v2478 = vsub.f32 %v2368, %v2435
    %v2479 = vsub.f32 %v2369, %v2437
    %v2480 = vsub.f32 %v2370, %v2439
    %v2481 = vsub.f32 %v2371, %v2441
    %v2482 = vmul.f32 %v2462, %v2472
    %v2483 = vmul.f32 %v2463, %v2473
    %v2484 = vmul.f32 %v2464, %v2474
    %v2485 = vmul.f32 %v2465, %v2475
    %v2486 = vmul.f32 %v2466, %v2476
    %v2487 = vmul.f32 %v2467, %v2477
    %v2488 = vmul.f32 %v2468, %v2478
    %v2489 = vmul.f32 %v2469, %v2479
    %v2490 = vmul.f32 %v2470, %v2480
    %v2491 = vmul.f32 %v2471, %v2481
    %vm2492 = vcmask 7168
    %v2493 = vsel %vm2492, %v2482, 0.0
    %v2494 = vsel %vm2492, %v2483, 0.0
    %v2495 = vadd.f32 %v2493, %v2494
    %v2496 = vsel %vm2492, %v2484, 0.0
    %v2497 = vadd.f32 %v2495, %v2496
    %v2498 = vsel %vm2492, %v2485, 0.0
    %v2499 = vadd.f32 %v2497, %v2498
    %v2500 = vsel %vm2492, %v2486, 0.0
    %v2501 = vadd.f32 %v2499, %v2500
    %v2502 = vsel %vm2492, %v2487, 0.0
    %v2503 = vadd.f32 %v2501, %v2502
    %v2504 = vsel %vm2492, %v2488, 0.0
    %v2505 = vadd.f32 %v2503, %v2504
    %v2506 = vsel %vm2492, %v2489, 0.0
    %v2507 = vadd.f32 %v2505, %v2506
    %v2508 = vsel %vm2492, %v2490, 0.0
    %v2509 = vadd.f32 %v2507, %v2508
    %v2510 = vsel %vm2492, %v2491, 0.0
    %v2511 = vadd.f32 %v2509, %v2510
    %v2512 = vrot.slane %v2511, 4
    %v2513 = vadd.f32 %v2511, %v2512
    %v2514 = vrot.slane %v2513, 2
    %v2515 = vadd.f32 %v2513, %v2514
    %v2516 = vrot.slane %v2515, 1
    %v2517 = vadd.f32 %v2515, %v2516
    %v2518 = vsel %vm2492, %v2462, 0.0
    %v2519 = vsel %vm2492, %v2463, 0.0
    %v2520 = vadd.f32 %v2518, %v2519
    %v2521 = vsel %vm2492, %v2464, 0.0
    %v2522 = vadd.f32 %v2520, %v2521
    %v2523 = vsel %vm2492, %v2465, 0.0
    %v2524 = vadd.f32 %v2522, %v2523
    %v2525 = vsel %vm2492, %v2466, 0.0
    %v2526 = vadd.f32 %v2524, %v2525
    %v2527 = vsel %vm2492, %v2467, 0.0
    %v2528 = vadd.f32 %v2526, %v2527
    %v2529 = vsel %vm2492, %v2468, 0.0
    %v2530 = vadd.f32 %v2528, %v2529
    %v2531 = vsel %vm2492, %v2469, 0.0
    %v2532 = vadd.f32 %v2530, %v2531
    %v2533 = vsel %vm2492, %v2470, 0.0
    %v2534 = vadd.f32 %v2532, %v2533
    %v2535 = vsel %vm2492, %v2471, 0.0
    %v2536 = vadd.f32 %v2534, %v2535
    %v2537 = vrot.slane %v2536, 4
    %v2538 = vadd.f32 %v2536, %v2537
    %v2539 = vrot.slane %v2538, 2
    %v2540 = vadd.f32 %v2538, %v2539
    %v2541 = vrot.slane %v2540, 1
    %v2542 = vadd.f32 %v2540, %v2541
    %v2543 = vmax.f32 %v2542, 1.0
    %v2544 = vrcp.pop %v2543
    %v2545 = vmul.f32 %v2517, %v2544
    %v2546 = vsub.f32 0.0, %v2545
    %vm2547 = vcmask 0
    %2548 = vst.msk [vmem:[#allocation6] sm:$0x1] %vm2547, %v2546
    // Predicated region
    $region54: #{minigpt_forward.1} parent=1 // pred_check
      _
    $region55: #{minigpt_forward.1} parent=1 // pred_check_branch
      %2550 = sbr.rel (0) target = $region57
    $region56: #{minigpt_forward.1} parent=1 // pred_region
      %s2552 = ssub.s32 16, 16
      %2553 = vsyncadd [#allocation7], %s2552
      %s2555 = sshll.u32 [#allocation6], 4
      %s2556 = int_to_ptr.vmem [resolvable:$true] %s2555
      %2558 = dma.vmem_to_hbm [thread:$0]  %s2556, 16, %s15, [#allocation7]
    $region57: #{minigpt_forward.1} parent=1 // pred_fallthru
      _
    // Predicated region
    $region58: #{minigpt_forward.1} parent=1 // pred_check
      _
    $region59: #{minigpt_forward.1} parent=1 // pred_check_branch
      %2560 = sbr.rel (0) target = $region61
    $region60: #{minigpt_forward.1} parent=1 // pred_region
      %2561 = dma.done [#allocation7], 16
    $region61: #{minigpt_forward.1} parent=1 // pred_fallthru
      _
    %2562 = vsyncpa [#allocation7], 1

</llo_original>
